<compile_context>
chip_gen: v6e
topology: v6e:2x2x1
jax: 0.10.0
libtpu: 0.0.40
codegen_flags: <defaults>
</compile_context>

<pallas_src>
import jax
import jax.numpy as jnp
import numpy as np
from jax import lax
from jax.experimental import pallas as pl
from jax.experimental.pallas import tpu as pltpu


# ----------------------------------------------------------------------------
# Host-side tiling heuristics
# ----------------------------------------------------------------------------
def _vmem_bytes(bt, T, In, H, C, layer_in_dims):
    """Rough per-grid-step VMEM working-set estimate (f32, double buffers)."""
    f32 = 4
    xblk = 2 * T * bt * In * f32                         # pipelined input slab
    hseq = T * bt * H * f32                              # hidden-seq scratch
    xproj = T * bt * 4 * H * f32                         # gate-proj scratch
    w = 2 * sum((d * 4 * H + H * 4 * H + 4 * H) * f32 for d in layer_in_dims)
    fc = 2 * (H * C + C) * f32
    outb = 2 * bt * C * f32
    return xblk + hseq + xproj + w + fc + outb


def _pick_batch_tile(B, T, In, H, C, layer_in_dims, vmem_budget=24 << 20):
    """Largest multiple-of-8 divisor of B that fills the MXU and fits VMEM."""
    assert B % 8 == 0, "batch must be a multiple of 8 (sublane alignment)"
    divs = [d for d in range(8, B + 1, 8) if B % d == 0]
    cands = [d for d in divs if d <= 256] or [min(divs)]
    bt = max(cands)
    # v7x has two TensorCores: keep >= 2 grid steps when the batch is large
    # enough that halving the tile does not starve the MXU M dimension.
    if B // bt < 2 and B >= 128:
        smaller = [d for d in divs if d <= B // 2]
        if smaller:
            bt = max(smaller)
    # Shrink until the working set fits comfortably (v7x: 64 MiB physical).
    while bt > 8 and _vmem_bytes(bt, T, In, H, C, layer_in_dims) > vmem_budget:
        smaller = [d for d in divs if d < bt]
        if not smaller:
            break
        bt = max(smaller)
    return bt


def _pick_n_sub(bt):
    """Number of independent batch sub-tiles to interleave per timestep."""
    for n in (4, 3, 2):
        if bt % (8 * n) == 0:
            return n
    return 1


def _pick_chunk_t(T, bt, widest):
    """Whole timesteps per xproj streaming chunk (~1 MiB of live rows)."""
    limit_rows = max((1 << 20) // (4 * max(widest, 1)), bt)
    for ct in range(T, 0, -1):
        if T % ct == 0 and ct * bt <= limit_rows:
            return ct
    return 1


# ----------------------------------------------------------------------------
# Kernel
# ----------------------------------------------------------------------------
def _make_recognizer_kernel(num_layers, seq_len, hidden, batch_tile, n_sub,
                            chunk_t, unroll_t):
    """Fused multi-layer LSTM + fc kernel for static sizes."""
    T, H, bt, L = seq_len, hidden, batch_tile, num_layers
    SUB = bt // n_sub

    def sigmoid(v):
        # exp lowers to the EUP, add/div to the VPU; safe in f32.
        return 1.0 / (1.0 + jnp.exp(-v))

    def kernel(x_ref, *args):
        # args layout: L * (wih, whh, bias), wfc, bfc, out_ref, xproj, hseq
        layer_refs = [args[3 * l:3 * l + 3] for l in range(L)]
        wfc_ref = args[3 * L]
        bfc_ref = args[3 * L + 1]
        out_ref = args[3 * L + 2]
        xproj_ref = args[3 * L + 3]          # VMEM scratch (T*bt, 4H) f32
        hseq_ref = args[3 * L + 4]           # VMEM scratch (T*bt, H)

        h_last = None
        for l, (wih_ref, whh_ref, b_ref) in enumerate(layer_refs):
            wih = wih_ref[...]               # (in_l, 4H)  lane-dense
            whh = whh_ref[...]               # (H,    4H)
            b = b_ref[...]                   # (1,    4H)  (b_ih + b_hh), f32
            src_ref = x_ref if l == 0 else hseq_ref

            # Consolidated input->gates projection for ALL timesteps of this
            # layer (one big MXU matmul per chunk), streamed to VMEM so the
            # result never stays live as vregs across the recurrence loop.
            rows = chunk_t * bt
            for c0 in range(0, T * bt, rows):
                xproj_ref[c0:c0 + rows, :] = (
                    jnp.dot(src_ref[c0:c0 + rows, :], wih,
                            preferred_element_type=jnp.float32) + b)

            # Sequential recurrence.  n_sub independent batch sub-tiles are
            # interleaved inside each timestep: while one sub-tile's
            # sigmoid/tanh (EUP) + elementwise update (VPU) run, another
            # sub-tile's (SUB,H)@(H,4H) matmul occupies the MXU.
            def step_block(k, carry):
                carry = list(carry)
                for u in range(unroll_t):            # small manual unroll
                    t = k * unroll_t + u
                    for s in range(n_sub):
                        h_s = carry[2 * s]
                        c_s = carry[2 * s + 1]
                        row0 = pl.multiple_of(t * bt + s * SUB, 8)
                        gates = xproj_ref[pl.ds(row0, SUB), :] + jnp.dot(
                            h_s.astype(whh.dtype), whh,
                            preferred_element_type=jnp.float32)   # (SUB, 4H)
                        # Two full-width activations (one EUP push each);
                        # i/f/g/o blocks (PyTorch order) sliced afterwards —
                        # the offset lane slices lower to XLU rotates that
                        # overlap the MXU/VPU work.
                        sig = sigmoid(gates)
                        th = jnp.tanh(gates)
                        i_g = sig[:, 0 * H:1 * H]
                        f_g = sig[:, 1 * H:2 * H]
                        g_g = th[:, 2 * H:3 * H]
                        o_g = sig[:, 3 * H:4 * H]
                        c_n = f_g * c_s + i_g * g_g
                        h_n = o_g * jnp.tanh(c_n)
                        if l < L - 1:        # only needed as next layer input
                            hseq_ref[pl.ds(row0, SUB), :] = h_n.astype(
                                hseq_ref.dtype)
                        carry[2 * s] = h_n
                        carry[2 * s + 1] = c_n
                return tuple(carry)

            init = tuple(jnp.zeros((SUB, H), jnp.float32)
                         for _ in range(2 * n_sub))
            carry = lax.fori_loop(0, T // unroll_t, step_block, init)
            if n_sub == 1:
                h_last = carry[0]
            else:
                h_last = jnp.concatenate(
                    [carry[2 * s] for s in range(n_sub)], axis=0)   # (bt, H)

        # Fused fc on the last timestep's hidden state of the last layer.
        out_ref[...] = (jnp.dot(h_last.astype(wfc_ref.dtype), wfc_ref[...],
                                preferred_element_type=jnp.float32)
                        + bfc_ref[...])

    return kernel


# ----------------------------------------------------------------------------
# Wrapper
# ----------------------------------------------------------------------------
def recognizer_forward(x, lstm_params, fc_w, fc_b, *, batch_tile=None,
                       matmul_dtype=jnp.float32):
    """x: (B, T, input_size) float32, batch_first like the PyTorch module.

    lstm_params: list of per-layer tuples (w_ih (4H,in_l), w_hh (4H,H),
                 b_ih (4H,), b_hh (4H,)) in PyTorch convention (gate order
                 i, f, g, o along the 4H axis).
    fc_w: (num_classes, H), fc_b: (num_classes,).
    matmul_dtype: set to jnp.bfloat16 on v6e/v7x for ~2-3x MXU rate (f32
                  accumulation and f32 gate math are kept either way).
    """
    B, T, In = x.shape
    L = len(lstm_params)
    H = lstm_params[0][1].shape[1]          # w_hh: (4H, H)
    C = fc_w.shape[0]
    layer_in_dims = [In] + [H] * (L - 1)

    bt = (_pick_batch_tile(B, T, In, H, C, layer_in_dims)
          if batch_tile is None else batch_tile)
    assert B % bt == 0 and bt % 8 == 0, "batch tile must be a multiple of 8"
    nb = B // bt
    n_sub = _pick_n_sub(bt)
    unroll_t = 2 if T % 2 == 0 else 1
    chunk_t = _pick_chunk_t(T, bt, max(In, 4 * H))

    # Host-side layout prep: time-major, batch-tile-major slab so each grid
    # step reads one contiguous (T*bt, In) block with rows ordered (t, b) and
    # every per-timestep slice inside the kernel is dense and 8-aligned.
    # NOTE: for large (B, T, In) this extra pass over x should be hoisted out
    # of the steady-state call path by the caller (negligible at these sizes).
    x_tm = jnp.transpose(x, (1, 0, 2))                      # (T, B, In)
    x_blk = (x_tm.reshape(T, nb, bt, In)
                 .transpose(1, 0, 2, 3)
                 .reshape(nb, T * bt, In).astype(matmul_dtype))

    args = [x_blk]
    in_specs = [pl.BlockSpec((None, T * bt, In), lambda i: (i, 0, 0))]
    for (w_ih, w_hh, b_ih, b_hh) in lstm_params:
        in_l = w_ih.shape[1]
        args += [w_ih.T.astype(matmul_dtype),               # (in_l, 4H)
                 w_hh.T.astype(matmul_dtype),               # (H,    4H)
                 (b_ih + b_hh).reshape(1, 4 * H).astype(jnp.float32)]
        # Constant index maps -> weights stay resident across grid steps.
        in_specs += [pl.BlockSpec((in_l, 4 * H), lambda i: (0, 0)),
                     pl.BlockSpec((H, 4 * H), lambda i: (0, 0)),
                     pl.BlockSpec((1, 4 * H), lambda i: (0, 0))]
    args += [fc_w.T.astype(matmul_dtype),
             fc_b.reshape(1, C).astype(jnp.float32)]
    in_specs += [pl.BlockSpec((H, C), lambda i: (0, 0)),
                 pl.BlockSpec((1, C), lambda i: (0, 0))]

    kernel = _make_recognizer_kernel(L, T, H, bt, n_sub, chunk_t, unroll_t)

    est = _vmem_bytes(bt, T, In, H, C, layer_in_dims)
    vmem_limit = int(min(64 << 20, max(32 << 20, 2 * est)))

    return pl.pallas_call(
        kernel,
        out_shape=jax.ShapeDtypeStruct((B, C), jnp.float32),
        grid=(nb,),
        in_specs=in_specs,
        out_specs=pl.BlockSpec((bt, C), lambda i: (i, 0)),
        scratch_shapes=[pltpu.VMEM((T * bt, 4 * H), jnp.float32),
                        pltpu.VMEM((T * bt, H), matmul_dtype)],
        compiler_params=pltpu.CompilerParams(
            dimension_semantics=("parallel",),
            vmem_limit_bytes=vmem_limit),
    )(*args)


# ----------------------------------------------------------------------------
# Pure-JAX reference (reproduces the PyTorch forward exactly)
# ----------------------------------------------------------------------------
def recognizer_reference(x, lstm_params, fc_w, fc_b):
    B, T, _ = x.shape
    layer_in = x
    for (w_ih, w_hh, b_ih, b_hh) in lstm_params:
        H = w_hh.shape[1]
        h = jnp.zeros((B, H), jnp.float32)
        c = jnp.zeros((B, H), jnp.float32)
        outs = []
        for t in range(T):
            xt = layer_in[:, t, :]
            gates = xt @ w_ih.T + b_ih + h @ w_hh.T + b_hh
            i_g = jax.nn.sigmoid(gates[:, 0 * H:1 * H])
            f_g = jax.nn.sigmoid(gates[:, 1 * H:2 * H])
            g_g = jnp.tanh(gates[:, 2 * H:3 * H])
            o_g = jax.nn.sigmoid(gates[:, 3 * H:4 * H])
            c = f_g * c + i_g * g_g
            h = o_g * jnp.tanh(c)
            outs.append(h)
        layer_in = jnp.stack(outs, axis=1)                  # (B, T, H)
    return layer_in[:, -1, :] @ fc_w.T + fc_b


if __name__ == "__main__":
    # Small shapes consistent with the module (TPU-friendly: 4*hidden = 128
    # lanes, batch a multiple of 8 sublanes, large enough to exercise the
    # sub-tile interleaving and the multi-grid-step path).
    B, T = 32, 8
    input_size, hidden_size, num_layers, num_classes = 32, 32, 2, 16

    key = jax.random.PRNGKey(0)
    keys = jax.random.split(key, 2 + 4 * num_layers + 2)

    x = jax.random.normal(keys[0], (B, T, input_size), jnp.float32)

    lstm_params = []
    k_idx = 1
    for l in range(num_layers):
        in_l = input_size if l == 0 else hidden_size
        w_ih = 0.1 * jax.random.normal(keys[k_idx + 0],
                                       (4 * hidden_size, in_l), jnp.float32)
        w_hh = 0.1 * jax.random.normal(keys[k_idx + 1],
                                       (4 * hidden_size, hidden_size),
                                       jnp.float32)
        b_ih = 0.1 * jax.random.normal(keys[k_idx + 2],
                                       (4 * hidden_size,), jnp.float32)
        b_hh = 0.1 * jax.random.normal(keys[k_idx + 3],
                                       (4 * hidden_size,), jnp.float32)
        lstm_params.append((w_ih, w_hh, b_ih, b_hh))
        k_idx += 4

    fc_w = 0.1 * jax.random.normal(keys[k_idx], (num_classes, hidden_size),
                                   jnp.float32)
    fc_b = 0.1 * jax.random.normal(keys[k_idx + 1], (num_classes,),
                                   jnp.float32)

    ref = jax.block_until_ready(recognizer_reference(x, lstm_params, fc_w, fc_b))

    # Auto-tiled path: bt = 32 (one grid step, 4 interleaved sub-tiles).
    out = jax.block_until_ready(recognizer_forward(x, lstm_params, fc_w, fc_b))
    np.testing.assert_allclose(np.asarray(out), np.asarray(ref),
                               rtol=1e-4, atol=1e-4)

    # Multi-grid-step path (exercises the batch-tile index maps, as used for
    # v7x grid sharding): bt = 16 -> grid=(2,), 2 interleaved sub-tiles each.
    out2 = jax.block_until_ready(
        recognizer_forward(x, lstm_params, fc_w, fc_b, batch_tile=16))
    np.testing.assert_allclose(np.asarray(out2), np.asarray(ref),
                               rtol=1e-4, atol=1e-4)

    print("KERNEL_OK")
</pallas_src>

<mosaic_0001>
module attributes {stable_mosaic.version = 11 : i64} {
  func.func @kernel(%arg0: i32, %arg1: memref<1x256x32xf32, #tpu.memory_space<vmem>>, %arg2: memref<32x128xf32, #tpu.memory_space<vmem>>, %arg3: memref<32x128xf32, #tpu.memory_space<vmem>>, %arg4: memref<1x128xf32, #tpu.memory_space<vmem>>, %arg5: memref<32x128xf32, #tpu.memory_space<vmem>>, %arg6: memref<32x128xf32, #tpu.memory_space<vmem>>, %arg7: memref<1x128xf32, #tpu.memory_space<vmem>>, %arg8: memref<32x16xf32, #tpu.memory_space<vmem>>, %arg9: memref<1x16xf32, #tpu.memory_space<vmem>>, %arg10: memref<32x16xf32, #tpu.memory_space<vmem>>, %arg11: memref<256x128xf32, #tpu.memory_space<vmem>>, %arg12: memref<256x32xf32, #tpu.memory_space<vmem>>) attributes {dimension_semantics = [#tpu.dimension_semantics<parallel>], iteration_bounds = array<i64: 1>, scalar_prefetch = 0 : i64, scratch_operands = 2 : i64, tpu.core_type = #tpu.core_type<tc>, window_params = [{transform_indices = @transform_0, window_bounds = array<i64: 1, 256, 32>}, {pipeline_mode = #tpu.pipeline_mode<synchronous>, transform_indices = @transform_1, window_bounds = array<i64: 32, 128>}, {pipeline_mode = #tpu.pipeline_mode<synchronous>, transform_indices = @transform_2, window_bounds = array<i64: 32, 128>}, {pipeline_mode = #tpu.pipeline_mode<synchronous>, transform_indices = @transform_3, window_bounds = array<i64: 1, 128>}, {pipeline_mode = #tpu.pipeline_mode<synchronous>, transform_indices = @transform_4, window_bounds = array<i64: 32, 128>}, {pipeline_mode = #tpu.pipeline_mode<synchronous>, transform_indices = @transform_5, window_bounds = array<i64: 32, 128>}, {pipeline_mode = #tpu.pipeline_mode<synchronous>, transform_indices = @transform_6, window_bounds = array<i64: 1, 128>}, {pipeline_mode = #tpu.pipeline_mode<synchronous>, transform_indices = @transform_7, window_bounds = array<i64: 32, 16>}, {pipeline_mode = #tpu.pipeline_mode<synchronous>, transform_indices = @transform_8, window_bounds = array<i64: 1, 16>}, {transform_indices = @transform_9, window_bounds = array<i64: 32, 16>}]} {
    %c0 = arith.constant 0 : index
    %c0_0 = arith.constant 0 : index
    %0 = vector.load %arg2[%c0, %c0_0] : memref<32x128xf32, #tpu.memory_space<vmem>>, vector<32x128xf32>
    %c0_1 = arith.constant 0 : index
    %c0_2 = arith.constant 0 : index
    %1 = vector.load %arg3[%c0_1, %c0_2] : memref<32x128xf32, #tpu.memory_space<vmem>>, vector<32x128xf32>
    %c0_3 = arith.constant 0 : index
    %c0_4 = arith.constant 0 : index
    %2 = vector.load %arg4[%c0_3, %c0_4] : memref<1x128xf32, #tpu.memory_space<vmem>>, vector<1x128xf32>
    %c0_5 = arith.constant 0 : index
    %c0_6 = arith.constant 0 : index
    %c0_7 = arith.constant 0 : index
    %3 = vector.load %arg1[%c0_5, %c0_6, %c0_7] : memref<1x256x32xf32, #tpu.memory_space<vmem>>, vector<1x256x32xf32>
    %4 = vector.shape_cast %3 : vector<1x256x32xf32> to vector<256x32xf32>
    %cst = arith.constant dense<0.000000e+00> : vector<256x128xf32>
    %5 = tpu.matmul %4, %0, %cst {dimension_numbers = #tpu.dot_dimension_numbers<[1], [0], [0], [1], [0, 0, 1, 1], [], []>} : vector<256x32xf32>, vector<32x128xf32>, vector<256x128xf32> -> vector<256x128xf32>
    %6 = vector.broadcast %2 : vector<1x128xf32> to vector<256x128xf32>
    %7 = arith.addf %5, %6 : vector<256x128xf32>
    %c0_8 = arith.constant 0 : index
    %c0_9 = arith.constant 0 : index
    %8 = vector.load %arg11[%c0_8, %c0_9] : memref<256x128xf32, #tpu.memory_space<vmem>>, vector<256x128xf32>
    tpu.vector_store %arg11[%c0_8, %c0_9], %7 {strides = array<i32>} : memref<256x128xf32, #tpu.memory_space<vmem>>, vector<256x128xf32>,
    %cst_10 = arith.constant 0.000000e+00 : f32
    %9 = vector.broadcast %cst_10 : f32 to vector<8x32xf32>
    %cst_11 = arith.constant 0.000000e+00 : f32
    %10 = vector.broadcast %cst_11 : f32 to vector<8x32xf32>
    %cst_12 = arith.constant 0.000000e+00 : f32
    %11 = vector.broadcast %cst_12 : f32 to vector<8x32xf32>
    %cst_13 = arith.constant 0.000000e+00 : f32
    %12 = vector.broadcast %cst_13 : f32 to vector<8x32xf32>
    %cst_14 = arith.constant 0.000000e+00 : f32
    %13 = vector.broadcast %cst_14 : f32 to vector<8x32xf32>
    %cst_15 = arith.constant 0.000000e+00 : f32
    %14 = vector.broadcast %cst_15 : f32 to vector<8x32xf32>
    %cst_16 = arith.constant 0.000000e+00 : f32
    %15 = vector.broadcast %cst_16 : f32 to vector<8x32xf32>
    %cst_17 = arith.constant 0.000000e+00 : f32
    %16 = vector.broadcast %cst_17 : f32 to vector<8x32xf32>
    %c0_i32 = arith.constant 0 : i32
    %c4_i32 = arith.constant 4 : i32
    %17 = arith.addi %c0_i32, %c4_i32 : i32
    %c1_i32 = arith.constant 1 : i32
    %18:8 = scf.for %arg13 = %c0_i32 to %17 step %c1_i32 iter_args(%arg14 = %9, %arg15 = %10, %arg16 = %11, %arg17 = %12, %arg18 = %13, %arg19 = %14, %arg20 = %15, %arg21 = %16) -> (vector<8x32xf32>, vector<8x32xf32>, vector<8x32xf32>, vector<8x32xf32>, vector<8x32xf32>, vector<8x32xf32>, vector<8x32xf32>, vector<8x32xf32>)  : i32 {
      %c2_i32 = arith.constant 2 : i32
      %44 = arith.muli %arg13, %c2_i32 : i32
      %c0_i32_49 = arith.constant 0 : i32
      %45 = arith.addi %44, %c0_i32_49 : i32
      %c32_i32 = arith.constant 32 : i32
      %46 = arith.muli %45, %c32_i32 : i32
      %c0_i32_50 = arith.constant 0 : i32
      %47 = arith.addi %46, %c0_i32_50 : i32
      %48 = tpu.assume_multiple %47, 8 : i32
      %49 = arith.index_cast %48 : i32 to index
      %c0_51 = arith.constant 0 : index
      %50 = vector.load %arg11[%49, %c0_51] : memref<256x128xf32, #tpu.memory_space<vmem>>, vector<8x128xf32>
      %cst_52 = arith.constant dense<0.000000e+00> : vector<8x128xf32>
      %51 = tpu.matmul %arg14, %1, %cst_52 {dimension_numbers = #tpu.dot_dimension_numbers<[1], [0], [0], [1], [0, 0, 1, 1], [], []>} : vector<8x32xf32>, vector<32x128xf32>, vector<8x128xf32> -> vector<8x128xf32>
      %52 = arith.addf %50, %51 : vector<8x128xf32>
      %cst_53 = arith.constant 0.000000e+00 : f32
      %53 = vector.broadcast %cst_53 : f32 to vector<8x128xf32>
      %54 = arith.subf %53, %52 : vector<8x128xf32>
      %55 = math.exp %54 : vector<8x128xf32>
      %cst_54 = arith.constant 1.000000e+00 : f32
      %56 = vector.broadcast %cst_54 : f32 to vector<8x128xf32>
      %57 = arith.addf %56, %55 : vector<8x128xf32>
      %cst_55 = arith.constant 1.000000e+00 : f32
      %58 = vector.broadcast %cst_55 : f32 to vector<8x128xf32>
      %59 = arith.divf %58, %57 : vector<8x128xf32>
      %60 = math.tanh %52 : vector<8x128xf32>
      %61 = vector.extract_strided_slice %59 {offsets = [0, 0], sizes = [8, 32], strides = [1, 1]} : vector<8x128xf32> to vector<8x32xf32>
      %62 = vector.extract_strided_slice %59 {offsets = [0, 32], sizes = [8, 32], strides = [1, 1]} : vector<8x128xf32> to vector<8x32xf32>
      %63 = vector.extract_strided_slice %60 {offsets = [0, 64], sizes = [8, 32], strides = [1, 1]} : vector<8x128xf32> to vector<8x32xf32>
      %64 = vector.extract_strided_slice %59 {offsets = [0, 96], sizes = [8, 32], strides = [1, 1]} : vector<8x128xf32> to vector<8x32xf32>
      %65 = arith.mulf %62, %arg15 : vector<8x32xf32>
      %66 = arith.mulf %61, %63 : vector<8x32xf32>
      %67 = arith.addf %65, %66 : vector<8x32xf32>
      %68 = math.tanh %67 : vector<8x32xf32>
      %69 = arith.mulf %64, %68 : vector<8x32xf32>
      %70 = arith.index_cast %48 : i32 to index
      %c0_56 = arith.constant 0 : index
      %71 = vector.load %arg12[%70, %c0_56] : memref<256x32xf32, #tpu.memory_space<vmem>>, vector<8x32xf32>
      tpu.vector_store %arg12[%70, %c0_56], %69 {strides = array<i32>} : memref<256x32xf32, #tpu.memory_space<vmem>>, vector<8x32xf32>,
      %c32_i32_57 = arith.constant 32 : i32
      %72 = arith.muli %45, %c32_i32_57 : i32
      %c8_i32 = arith.constant 8 : i32
      %73 = arith.addi %72, %c8_i32 : i32
      %74 = tpu.assume_multiple %73, 8 : i32
      %75 = arith.index_cast %74 : i32 to index
      %c0_58 = arith.constant 0 : index
      %76 = vector.load %arg11[%75, %c0_58] : memref<256x128xf32, #tpu.memory_space<vmem>>, vector<8x128xf32>
      %cst_59 = arith.constant dense<0.000000e+00> : vector<8x128xf32>
      %77 = tpu.matmul %arg16, %1, %cst_59 {dimension_numbers = #tpu.dot_dimension_numbers<[1], [0], [0], [1], [0, 0, 1, 1], [], []>} : vector<8x32xf32>, vector<32x128xf32>, vector<8x128xf32> -> vector<8x128xf32>
      %78 = arith.addf %76, %77 : vector<8x128xf32>
      %cst_60 = arith.constant 0.000000e+00 : f32
      %79 = vector.broadcast %cst_60 : f32 to vector<8x128xf32>
      %80 = arith.subf %79, %78 : vector<8x128xf32>
      %81 = math.exp %80 : vector<8x128xf32>
      %cst_61 = arith.constant 1.000000e+00 : f32
      %82 = vector.broadcast %cst_61 : f32 to vector<8x128xf32>
      %83 = arith.addf %82, %81 : vector<8x128xf32>
      %cst_62 = arith.constant 1.000000e+00 : f32
      %84 = vector.broadcast %cst_62 : f32 to vector<8x128xf32>
      %85 = arith.divf %84, %83 : vector<8x128xf32>
      %86 = math.tanh %78 : vector<8x128xf32>
      %87 = vector.extract_strided_slice %85 {offsets = [0, 0], sizes = [8, 32], strides = [1, 1]} : vector<8x128xf32> to vector<8x32xf32>
      %88 = vector.extract_strided_slice %85 {offsets = [0, 32], sizes = [8, 32], strides = [1, 1]} : vector<8x128xf32> to vector<8x32xf32>
      %89 = vector.extract_strided_slice %86 {offsets = [0, 64], sizes = [8, 32], strides = [1, 1]} : vector<8x128xf32> to vector<8x32xf32>
      %90 = vector.extract_strided_slice %85 {offsets = [0, 96], sizes = [8, 32], strides = [1, 1]} : vector<8x128xf32> to vector<8x32xf32>
      %91 = arith.mulf %88, %arg17 : vector<8x32xf32>
      %92 = arith.mulf %87, %89 : vector<8x32xf32>
      %93 = arith.addf %91, %92 : vector<8x32xf32>
      %94 = math.tanh %93 : vector<8x32xf32>
      %95 = arith.mulf %90, %94 : vector<8x32xf32>
      %96 = arith.index_cast %74 : i32 to index
      %c0_63 = arith.constant 0 : index
      %97 = vector.load %arg12[%96, %c0_63] : memref<256x32xf32, #tpu.memory_space<vmem>>, vector<8x32xf32>
      tpu.vector_store %arg12[%96, %c0_63], %95 {strides = array<i32>} : memref<256x32xf32, #tpu.memory_space<vmem>>, vector<8x32xf32>,
      %c32_i32_64 = arith.constant 32 : i32
      %98 = arith.muli %45, %c32_i32_64 : i32
      %c16_i32 = arith.constant 16 : i32
      %99 = arith.addi %98, %c16_i32 : i32
      %100 = tpu.assume_multiple %99, 8 : i32
      %101 = arith.index_cast %100 : i32 to index
      %c0_65 = arith.constant 0 : index
      %102 = vector.load %arg11[%101, %c0_65] : memref<256x128xf32, #tpu.memory_space<vmem>>, vector<8x128xf32>
      %cst_66 = arith.constant dense<0.000000e+00> : vector<8x128xf32>
      %103 = tpu.matmul %arg18, %1, %cst_66 {dimension_numbers = #tpu.dot_dimension_numbers<[1], [0], [0], [1], [0, 0, 1, 1], [], []>} : vector<8x32xf32>, vector<32x128xf32>, vector<8x128xf32> -> vector<8x128xf32>
      %104 = arith.addf %102, %103 : vector<8x128xf32>
      %cst_67 = arith.constant 0.000000e+00 : f32
      %105 = vector.broadcast %cst_67 : f32 to vector<8x128xf32>
      %106 = arith.subf %105, %104 : vector<8x128xf32>
      %107 = math.exp %106 : vector<8x128xf32>
      %cst_68 = arith.constant 1.000000e+00 : f32
      %108 = vector.broadcast %cst_68 : f32 to vector<8x128xf32>
      %109 = arith.addf %108, %107 : vector<8x128xf32>
      %cst_69 = arith.constant 1.000000e+00 : f32
      %110 = vector.broadcast %cst_69 : f32 to vector<8x128xf32>
      %111 = arith.divf %110, %109 : vector<8x128xf32>
      %112 = math.tanh %104 : vector<8x128xf32>
      %113 = vector.extract_strided_slice %111 {offsets = [0, 0], sizes = [8, 32], strides = [1, 1]} : vector<8x128xf32> to vector<8x32xf32>
      %114 = vector.extract_strided_slice %111 {offsets = [0, 32], sizes = [8, 32], strides = [1, 1]} : vector<8x128xf32> to vector<8x32xf32>
      %115 = vector.extract_strided_slice %112 {offsets = [0, 64], sizes = [8, 32], strides = [1, 1]} : vector<8x128xf32> to vector<8x32xf32>
      %116 = vector.extract_strided_slice %111 {offsets = [0, 96], sizes = [8, 32], strides = [1, 1]} : vector<8x128xf32> to vector<8x32xf32>
      %117 = arith.mulf %114, %arg19 : vector<8x32xf32>
      %118 = arith.mulf %113, %115 : vector<8x32xf32>
      %119 = arith.addf %117, %118 : vector<8x32xf32>
      %120 = math.tanh %119 : vector<8x32xf32>
      %121 = arith.mulf %116, %120 : vector<8x32xf32>
      %122 = arith.index_cast %100 : i32 to index
      %c0_70 = arith.constant 0 : index
      %123 = vector.load %arg12[%122, %c0_70] : memref<256x32xf32, #tpu.memory_space<vmem>>, vector<8x32xf32>
      tpu.vector_store %arg12[%122, %c0_70], %121 {strides = array<i32>} : memref<256x32xf32, #tpu.memory_space<vmem>>, vector<8x32xf32>,
      %c32_i32_71 = arith.constant 32 : i32
      %124 = arith.muli %45, %c32_i32_71 : i32
      %c24_i32 = arith.constant 24 : i32
      %125 = arith.addi %124, %c24_i32 : i32
      %126 = tpu.assume_multiple %125, 8 : i32
      %127 = arith.index_cast %126 : i32 to index
      %c0_72 = arith.constant 0 : index
      %128 = vector.load %arg11[%127, %c0_72] : memref<256x128xf32, #tpu.memory_space<vmem>>, vector<8x128xf32>
      %cst_73 = arith.constant dense<0.000000e+00> : vector<8x128xf32>
      %129 = tpu.matmul %arg20, %1, %cst_73 {dimension_numbers = #tpu.dot_dimension_numbers<[1], [0], [0], [1], [0, 0, 1, 1], [], []>} : vector<8x32xf32>, vector<32x128xf32>, vector<8x128xf32> -> vector<8x128xf32>
      %130 = arith.addf %128, %129 : vector<8x128xf32>
      %cst_74 = arith.constant 0.000000e+00 : f32
      %131 = vector.broadcast %cst_74 : f32 to vector<8x128xf32>
      %132 = arith.subf %131, %130 : vector<8x128xf32>
      %133 = math.exp %132 : vector<8x128xf32>
      %cst_75 = arith.constant 1.000000e+00 : f32
      %134 = vector.broadcast %cst_75 : f32 to vector<8x128xf32>
      %135 = arith.addf %134, %133 : vector<8x128xf32>
      %cst_76 = arith.constant 1.000000e+00 : f32
      %136 = vector.broadcast %cst_76 : f32 to vector<8x128xf32>
      %137 = arith.divf %136, %135 : vector<8x128xf32>
      %138 = math.tanh %130 : vector<8x128xf32>
      %139 = vector.extract_strided_slice %137 {offsets = [0, 0], sizes = [8, 32], strides = [1, 1]} : vector<8x128xf32> to vector<8x32xf32>
      %140 = vector.extract_strided_slice %137 {offsets = [0, 32], sizes = [8, 32], strides = [1, 1]} : vector<8x128xf32> to vector<8x32xf32>
      %141 = vector.extract_strided_slice %138 {offsets = [0, 64], sizes = [8, 32], strides = [1, 1]} : vector<8x128xf32> to vector<8x32xf32>
      %142 = vector.extract_strided_slice %137 {offsets = [0, 96], sizes = [8, 32], strides = [1, 1]} : vector<8x128xf32> to vector<8x32xf32>
      %143 = arith.mulf %140, %arg21 : vector<8x32xf32>
      %144 = arith.mulf %139, %141 : vector<8x32xf32>
      %145 = arith.addf %143, %144 : vector<8x32xf32>
      %146 = math.tanh %145 : vector<8x32xf32>
      %147 = arith.mulf %142, %146 : vector<8x32xf32>
      %148 = arith.index_cast %126 : i32 to index
      %c0_77 = arith.constant 0 : index
      %149 = vector.load %arg12[%148, %c0_77] : memref<256x32xf32, #tpu.memory_space<vmem>>, vector<8x32xf32>
      tpu.vector_store %arg12[%148, %c0_77], %147 {strides = array<i32>} : memref<256x32xf32, #tpu.memory_space<vmem>>, vector<8x32xf32>,
      %c2_i32_78 = arith.constant 2 : i32
      %150 = arith.muli %arg13, %c2_i32_78 : i32
      %c1_i32_79 = arith.constant 1 : i32
      %151 = arith.addi %150, %c1_i32_79 : i32
      %c32_i32_80 = arith.constant 32 : i32
      %152 = arith.muli %151, %c32_i32_80 : i32
      %c0_i32_81 = arith.constant 0 : i32
      %153 = arith.addi %152, %c0_i32_81 : i32
      %154 = tpu.assume_multiple %153, 8 : i32
      %155 = arith.index_cast %154 : i32 to index
      %c0_82 = arith.constant 0 : index
      %156 = vector.load %arg11[%155, %c0_82] : memref<256x128xf32, #tpu.memory_space<vmem>>, vector<8x128xf32>
      %cst_83 = arith.constant dense<0.000000e+00> : vector<8x128xf32>
      %157 = tpu.matmul %69, %1, %cst_83 {dimension_numbers = #tpu.dot_dimension_numbers<[1], [0], [0], [1], [0, 0, 1, 1], [], []>} : vector<8x32xf32>, vector<32x128xf32>, vector<8x128xf32> -> vector<8x128xf32>
      %158 = arith.addf %156, %157 : vector<8x128xf32>
      %cst_84 = arith.constant 0.000000e+00 : f32
      %159 = vector.broadcast %cst_84 : f32 to vector<8x128xf32>
      %160 = arith.subf %159, %158 : vector<8x128xf32>
      %161 = math.exp %160 : vector<8x128xf32>
      %cst_85 = arith.constant 1.000000e+00 : f32
      %162 = vector.broadcast %cst_85 : f32 to vector<8x128xf32>
      %163 = arith.addf %162, %161 : vector<8x128xf32>
      %cst_86 = arith.constant 1.000000e+00 : f32
      %164 = vector.broadcast %cst_86 : f32 to vector<8x128xf32>
      %165 = arith.divf %164, %163 : vector<8x128xf32>
      %166 = math.tanh %158 : vector<8x128xf32>
      %167 = vector.extract_strided_slice %165 {offsets = [0, 0], sizes = [8, 32], strides = [1, 1]} : vector<8x128xf32> to vector<8x32xf32>
      %168 = vector.extract_strided_slice %165 {offsets = [0, 32], sizes = [8, 32], strides = [1, 1]} : vector<8x128xf32> to vector<8x32xf32>
      %169 = vector.extract_strided_slice %166 {offsets = [0, 64], sizes = [8, 32], strides = [1, 1]} : vector<8x128xf32> to vector<8x32xf32>
      %170 = vector.extract_strided_slice %165 {offsets = [0, 96], sizes = [8, 32], strides = [1, 1]} : vector<8x128xf32> to vector<8x32xf32>
      %171 = arith.mulf %168, %67 : vector<8x32xf32>
      %172 = arith.mulf %167, %169 : vector<8x32xf32>
      %173 = arith.addf %171, %172 : vector<8x32xf32>
      %174 = math.tanh %173 : vector<8x32xf32>
      %175 = arith.mulf %170, %174 : vector<8x32xf32>
      %176 = arith.index_cast %154 : i32 to index
      %c0_87 = arith.constant 0 : index
      %177 = vector.load %arg12[%176, %c0_87] : memref<256x32xf32, #tpu.memory_space<vmem>>, vector<8x32xf32>
      tpu.vector_store %arg12[%176, %c0_87], %175 {strides = array<i32>} : memref<256x32xf32, #tpu.memory_space<vmem>>, vector<8x32xf32>,
      %c32_i32_88 = arith.constant 32 : i32
      %178 = arith.muli %151, %c32_i32_88 : i32
      %c8_i32_89 = arith.constant 8 : i32
      %179 = arith.addi %178, %c8_i32_89 : i32
      %180 = tpu.assume_multiple %179, 8 : i32
      %181 = arith.index_cast %180 : i32 to index
      %c0_90 = arith.constant 0 : index
      %182 = vector.load %arg11[%181, %c0_90] : memref<256x128xf32, #tpu.memory_space<vmem>>, vector<8x128xf32>
      %cst_91 = arith.constant dense<0.000000e+00> : vector<8x128xf32>
      %183 = tpu.matmul %95, %1, %cst_91 {dimension_numbers = #tpu.dot_dimension_numbers<[1], [0], [0], [1], [0, 0, 1, 1], [], []>} : vector<8x32xf32>, vector<32x128xf32>, vector<8x128xf32> -> vector<8x128xf32>
      %184 = arith.addf %182, %183 : vector<8x128xf32>
      %cst_92 = arith.constant 0.000000e+00 : f32
      %185 = vector.broadcast %cst_92 : f32 to vector<8x128xf32>
      %186 = arith.subf %185, %184 : vector<8x128xf32>
      %187 = math.exp %186 : vector<8x128xf32>
      %cst_93 = arith.constant 1.000000e+00 : f32
      %188 = vector.broadcast %cst_93 : f32 to vector<8x128xf32>
      %189 = arith.addf %188, %187 : vector<8x128xf32>
      %cst_94 = arith.constant 1.000000e+00 : f32
      %190 = vector.broadcast %cst_94 : f32 to vector<8x128xf32>
      %191 = arith.divf %190, %189 : vector<8x128xf32>
      %192 = math.tanh %184 : vector<8x128xf32>
      %193 = vector.extract_strided_slice %191 {offsets = [0, 0], sizes = [8, 32], strides = [1, 1]} : vector<8x128xf32> to vector<8x32xf32>
      %194 = vector.extract_strided_slice %191 {offsets = [0, 32], sizes = [8, 32], strides = [1, 1]} : vector<8x128xf32> to vector<8x32xf32>
      %195 = vector.extract_strided_slice %192 {offsets = [0, 64], sizes = [8, 32], strides = [1, 1]} : vector<8x128xf32> to vector<8x32xf32>
      %196 = vector.extract_strided_slice %191 {offsets = [0, 96], sizes = [8, 32], strides = [1, 1]} : vector<8x128xf32> to vector<8x32xf32>
      %197 = arith.mulf %194, %93 : vector<8x32xf32>
      %198 = arith.mulf %193, %195 : vector<8x32xf32>
      %199 = arith.addf %197, %198 : vector<8x32xf32>
      %200 = math.tanh %199 : vector<8x32xf32>
      %201 = arith.mulf %196, %200 : vector<8x32xf32>
      %202 = arith.index_cast %180 : i32 to index
      %c0_95 = arith.constant 0 : index
      %203 = vector.load %arg12[%202, %c0_95] : memref<256x32xf32, #tpu.memory_space<vmem>>, vector<8x32xf32>
      tpu.vector_store %arg12[%202, %c0_95], %201 {strides = array<i32>} : memref<256x32xf32, #tpu.memory_space<vmem>>, vector<8x32xf32>,
      %c32_i32_96 = arith.constant 32 : i32
      %204 = arith.muli %151, %c32_i32_96 : i32
      %c16_i32_97 = arith.constant 16 : i32
      %205 = arith.addi %204, %c16_i32_97 : i32
      %206 = tpu.assume_multiple %205, 8 : i32
      %207 = arith.index_cast %206 : i32 to index
      %c0_98 = arith.constant 0 : index
      %208 = vector.load %arg11[%207, %c0_98] : memref<256x128xf32, #tpu.memory_space<vmem>>, vector<8x128xf32>
      %cst_99 = arith.constant dense<0.000000e+00> : vector<8x128xf32>
      %209 = tpu.matmul %121, %1, %cst_99 {dimension_numbers = #tpu.dot_dimension_numbers<[1], [0], [0], [1], [0, 0, 1, 1], [], []>} : vector<8x32xf32>, vector<32x128xf32>, vector<8x128xf32> -> vector<8x128xf32>
      %210 = arith.addf %208, %209 : vector<8x128xf32>
      %cst_100 = arith.constant 0.000000e+00 : f32
      %211 = vector.broadcast %cst_100 : f32 to vector<8x128xf32>
      %212 = arith.subf %211, %210 : vector<8x128xf32>
      %213 = math.exp %212 : vector<8x128xf32>
      %cst_101 = arith.constant 1.000000e+00 : f32
      %214 = vector.broadcast %cst_101 : f32 to vector<8x128xf32>
      %215 = arith.addf %214, %213 : vector<8x128xf32>
      %cst_102 = arith.constant 1.000000e+00 : f32
      %216 = vector.broadcast %cst_102 : f32 to vector<8x128xf32>
      %217 = arith.divf %216, %215 : vector<8x128xf32>
      %218 = math.tanh %210 : vector<8x128xf32>
      %219 = vector.extract_strided_slice %217 {offsets = [0, 0], sizes = [8, 32], strides = [1, 1]} : vector<8x128xf32> to vector<8x32xf32>
      %220 = vector.extract_strided_slice %217 {offsets = [0, 32], sizes = [8, 32], strides = [1, 1]} : vector<8x128xf32> to vector<8x32xf32>
      %221 = vector.extract_strided_slice %218 {offsets = [0, 64], sizes = [8, 32], strides = [1, 1]} : vector<8x128xf32> to vector<8x32xf32>
      %222 = vector.extract_strided_slice %217 {offsets = [0, 96], sizes = [8, 32], strides = [1, 1]} : vector<8x128xf32> to vector<8x32xf32>
      %223 = arith.mulf %220, %119 : vector<8x32xf32>
      %224 = arith.mulf %219, %221 : vector<8x32xf32>
      %225 = arith.addf %223, %224 : vector<8x32xf32>
      %226 = math.tanh %225 : vector<8x32xf32>
      %227 = arith.mulf %222, %226 : vector<8x32xf32>
      %228 = arith.index_cast %206 : i32 to index
      %c0_103 = arith.constant 0 : index
      %229 = vector.load %arg12[%228, %c0_103] : memref<256x32xf32, #tpu.memory_space<vmem>>, vector<8x32xf32>
      tpu.vector_store %arg12[%228, %c0_103], %227 {strides = array<i32>} : memref<256x32xf32, #tpu.memory_space<vmem>>, vector<8x32xf32>,
      %c32_i32_104 = arith.constant 32 : i32
      %230 = arith.muli %151, %c32_i32_104 : i32
      %c24_i32_105 = arith.constant 24 : i32
      %231 = arith.addi %230, %c24_i32_105 : i32
      %232 = tpu.assume_multiple %231, 8 : i32
      %233 = arith.index_cast %232 : i32 to index
      %c0_106 = arith.constant 0 : index
      %234 = vector.load %arg11[%233, %c0_106] : memref<256x128xf32, #tpu.memory_space<vmem>>, vector<8x128xf32>
      %cst_107 = arith.constant dense<0.000000e+00> : vector<8x128xf32>
      %235 = tpu.matmul %147, %1, %cst_107 {dimension_numbers = #tpu.dot_dimension_numbers<[1], [0], [0], [1], [0, 0, 1, 1], [], []>} : vector<8x32xf32>, vector<32x128xf32>, vector<8x128xf32> -> vector<8x128xf32>
      %236 = arith.addf %234, %235 : vector<8x128xf32>
      %cst_108 = arith.constant 0.000000e+00 : f32
      %237 = vector.broadcast %cst_108 : f32 to vector<8x128xf32>
      %238 = arith.subf %237, %236 : vector<8x128xf32>
      %239 = math.exp %238 : vector<8x128xf32>
      %cst_109 = arith.constant 1.000000e+00 : f32
      %240 = vector.broadcast %cst_109 : f32 to vector<8x128xf32>
      %241 = arith.addf %240, %239 : vector<8x128xf32>
      %cst_110 = arith.constant 1.000000e+00 : f32
      %242 = vector.broadcast %cst_110 : f32 to vector<8x128xf32>
      %243 = arith.divf %242, %241 : vector<8x128xf32>
      %244 = math.tanh %236 : vector<8x128xf32>
      %245 = vector.extract_strided_slice %243 {offsets = [0, 0], sizes = [8, 32], strides = [1, 1]} : vector<8x128xf32> to vector<8x32xf32>
      %246 = vector.extract_strided_slice %243 {offsets = [0, 32], sizes = [8, 32], strides = [1, 1]} : vector<8x128xf32> to vector<8x32xf32>
      %247 = vector.extract_strided_slice %244 {offsets = [0, 64], sizes = [8, 32], strides = [1, 1]} : vector<8x128xf32> to vector<8x32xf32>
      %248 = vector.extract_strided_slice %243 {offsets = [0, 96], sizes = [8, 32], strides = [1, 1]} : vector<8x128xf32> to vector<8x32xf32>
      %249 = arith.mulf %246, %145 : vector<8x32xf32>
      %250 = arith.mulf %245, %247 : vector<8x32xf32>
      %251 = arith.addf %249, %250 : vector<8x32xf32>
      %252 = math.tanh %251 : vector<8x32xf32>
      %253 = arith.mulf %248, %252 : vector<8x32xf32>
      %254 = arith.index_cast %232 : i32 to index
      %c0_111 = arith.constant 0 : index
      %255 = vector.load %arg12[%254, %c0_111] : memref<256x32xf32, #tpu.memory_space<vmem>>, vector<8x32xf32>
      tpu.vector_store %arg12[%254, %c0_111], %253 {strides = array<i32>} : memref<256x32xf32, #tpu.memory_space<vmem>>, vector<8x32xf32>,
      scf.yield %175, %173, %201, %199, %227, %225, %253, %251 : vector<8x32xf32>, vector<8x32xf32>, vector<8x32xf32>, vector<8x32xf32>, vector<8x32xf32>, vector<8x32xf32>, vector<8x32xf32>, vector<8x32xf32>
    }
    %c4_i32_18 = arith.constant 4 : i32
    %c0_19 = arith.constant 0 : index
    %c0_20 = arith.constant 0 : index
    %19 = vector.load %arg5[%c0_19, %c0_20] : memref<32x128xf32, #tpu.memory_space<vmem>>, vector<32x128xf32>
    %c0_21 = arith.constant 0 : index
    %c0_22 = arith.constant 0 : index
    %20 = vector.load %arg6[%c0_21, %c0_22] : memref<32x128xf32, #tpu.memory_space<vmem>>, vector<32x128xf32>
    %c0_23 = arith.constant 0 : index
    %c0_24 = arith.constant 0 : index
    %21 = vector.load %arg7[%c0_23, %c0_24] : memref<1x128xf32, #tpu.memory_space<vmem>>, vector<1x128xf32>
    %c0_25 = arith.constant 0 : index
    %c0_26 = arith.constant 0 : index
    %22 = vector.load %arg12[%c0_25, %c0_26] : memref<256x32xf32, #tpu.memory_space<vmem>>, vector<256x32xf32>
    %cst_27 = arith.constant dense<0.000000e+00> : vector<256x128xf32>
    %23 = tpu.matmul %22, %19, %cst_27 {dimension_numbers = #tpu.dot_dimension_numbers<[1], [0], [0], [1], [0, 0, 1, 1], [], []>} : vector<256x32xf32>, vector<32x128xf32>, vector<256x128xf32> -> vector<256x128xf32>
    %24 = vector.broadcast %21 : vector<1x128xf32> to vector<256x128xf32>
    %25 = arith.addf %23, %24 : vector<256x128xf32>
    %c0_28 = arith.constant 0 : index
    %c0_29 = arith.constant 0 : index
    %26 = vector.load %arg11[%c0_28, %c0_29] : memref<256x128xf32, #tpu.memory_space<vmem>>, vector<256x128xf32>
    tpu.vector_store %arg11[%c0_28, %c0_29], %25 {strides = array<i32>} : memref<256x128xf32, #tpu.memory_space<vmem>>, vector<256x128xf32>,
    %cst_30 = arith.constant 0.000000e+00 : f32
    %27 = vector.broadcast %cst_30 : f32 to vector<8x32xf32>
    %cst_31 = arith.constant 0.000000e+00 : f32
    %28 = vector.broadcast %cst_31 : f32 to vector<8x32xf32>
    %cst_32 = arith.constant 0.000000e+00 : f32
    %29 = vector.broadcast %cst_32 : f32 to vector<8x32xf32>
    %cst_33 = arith.constant 0.000000e+00 : f32
    %30 = vector.broadcast %cst_33 : f32 to vector<8x32xf32>
    %cst_34 = arith.constant 0.000000e+00 : f32
    %31 = vector.broadcast %cst_34 : f32 to vector<8x32xf32>
    %cst_35 = arith.constant 0.000000e+00 : f32
    %32 = vector.broadcast %cst_35 : f32 to vector<8x32xf32>
    %cst_36 = arith.constant 0.000000e+00 : f32
    %33 = vector.broadcast %cst_36 : f32 to vector<8x32xf32>
    %cst_37 = arith.constant 0.000000e+00 : f32
    %34 = vector.broadcast %cst_37 : f32 to vector<8x32xf32>
    %c0_i32_38 = arith.constant 0 : i32
    %c4_i32_39 = arith.constant 4 : i32
    %35 = arith.addi %c0_i32_38, %c4_i32_39 : i32
    %c1_i32_40 = arith.constant 1 : i32
    %36:8 = scf.for %arg13 = %c0_i32_38 to %35 step %c1_i32_40 iter_args(%arg14 = %27, %arg15 = %28, %arg16 = %29, %arg17 = %30, %arg18 = %31, %arg19 = %32, %arg20 = %33, %arg21 = %34) -> (vector<8x32xf32>, vector<8x32xf32>, vector<8x32xf32>, vector<8x32xf32>, vector<8x32xf32>, vector<8x32xf32>, vector<8x32xf32>, vector<8x32xf32>)  : i32 {
      %c2_i32 = arith.constant 2 : i32
      %44 = arith.muli %arg13, %c2_i32 : i32
      %c0_i32_49 = arith.constant 0 : i32
      %45 = arith.addi %44, %c0_i32_49 : i32
      %c32_i32 = arith.constant 32 : i32
      %46 = arith.muli %45, %c32_i32 : i32
      %c0_i32_50 = arith.constant 0 : i32
      %47 = arith.addi %46, %c0_i32_50 : i32
      %48 = tpu.assume_multiple %47, 8 : i32
      %49 = arith.index_cast %48 : i32 to index
      %c0_51 = arith.constant 0 : index
      %50 = vector.load %arg11[%49, %c0_51] : memref<256x128xf32, #tpu.memory_space<vmem>>, vector<8x128xf32>
      %cst_52 = arith.constant dense<0.000000e+00> : vector<8x128xf32>
      %51 = tpu.matmul %arg14, %20, %cst_52 {dimension_numbers = #tpu.dot_dimension_numbers<[1], [0], [0], [1], [0, 0, 1, 1], [], []>} : vector<8x32xf32>, vector<32x128xf32>, vector<8x128xf32> -> vector<8x128xf32>
      %52 = arith.addf %50, %51 : vector<8x128xf32>
      %cst_53 = arith.constant 0.000000e+00 : f32
      %53 = vector.broadcast %cst_53 : f32 to vector<8x128xf32>
      %54 = arith.subf %53, %52 : vector<8x128xf32>
      %55 = math.exp %54 : vector<8x128xf32>
      %cst_54 = arith.constant 1.000000e+00 : f32
      %56 = vector.broadcast %cst_54 : f32 to vector<8x128xf32>
      %57 = arith.addf %56, %55 : vector<8x128xf32>
      %cst_55 = arith.constant 1.000000e+00 : f32
      %58 = vector.broadcast %cst_55 : f32 to vector<8x128xf32>
      %59 = arith.divf %58, %57 : vector<8x128xf32>
      %60 = math.tanh %52 : vector<8x128xf32>
      %61 = vector.extract_strided_slice %59 {offsets = [0, 0], sizes = [8, 32], strides = [1, 1]} : vector<8x128xf32> to vector<8x32xf32>
      %62 = vector.extract_strided_slice %59 {offsets = [0, 32], sizes = [8, 32], strides = [1, 1]} : vector<8x128xf32> to vector<8x32xf32>
      %63 = vector.extract_strided_slice %60 {offsets = [0, 64], sizes = [8, 32], strides = [1, 1]} : vector<8x128xf32> to vector<8x32xf32>
      %64 = vector.extract_strided_slice %59 {offsets = [0, 96], sizes = [8, 32], strides = [1, 1]} : vector<8x128xf32> to vector<8x32xf32>
      %65 = arith.mulf %62, %arg15 : vector<8x32xf32>
      %66 = arith.mulf %61, %63 : vector<8x32xf32>
      %67 = arith.addf %65, %66 : vector<8x32xf32>
      %68 = math.tanh %67 : vector<8x32xf32>
      %69 = arith.mulf %64, %68 : vector<8x32xf32>
      %c32_i32_56 = arith.constant 32 : i32
      %70 = arith.muli %45, %c32_i32_56 : i32
      %c8_i32 = arith.constant 8 : i32
      %71 = arith.addi %70, %c8_i32 : i32
      %72 = tpu.assume_multiple %71, 8 : i32
      %73 = arith.index_cast %72 : i32 to index
      %c0_57 = arith.constant 0 : index
      %74 = vector.load %arg11[%73, %c0_57] : memref<256x128xf32, #tpu.memory_space<vmem>>, vector<8x128xf32>
      %cst_58 = arith.constant dense<0.000000e+00> : vector<8x128xf32>
      %75 = tpu.matmul %arg16, %20, %cst_58 {dimension_numbers = #tpu.dot_dimension_numbers<[1], [0], [0], [1], [0, 0, 1, 1], [], []>} : vector<8x32xf32>, vector<32x128xf32>, vector<8x128xf32> -> vector<8x128xf32>
      %76 = arith.addf %74, %75 : vector<8x128xf32>
      %cst_59 = arith.constant 0.000000e+00 : f32
      %77 = vector.broadcast %cst_59 : f32 to vector<8x128xf32>
      %78 = arith.subf %77, %76 : vector<8x128xf32>
      %79 = math.exp %78 : vector<8x128xf32>
      %cst_60 = arith.constant 1.000000e+00 : f32
      %80 = vector.broadcast %cst_60 : f32 to vector<8x128xf32>
      %81 = arith.addf %80, %79 : vector<8x128xf32>
      %cst_61 = arith.constant 1.000000e+00 : f32
      %82 = vector.broadcast %cst_61 : f32 to vector<8x128xf32>
      %83 = arith.divf %82, %81 : vector<8x128xf32>
      %84 = math.tanh %76 : vector<8x128xf32>
      %85 = vector.extract_strided_slice %83 {offsets = [0, 0], sizes = [8, 32], strides = [1, 1]} : vector<8x128xf32> to vector<8x32xf32>
      %86 = vector.extract_strided_slice %83 {offsets = [0, 32], sizes = [8, 32], strides = [1, 1]} : vector<8x128xf32> to vector<8x32xf32>
      %87 = vector.extract_strided_slice %84 {offsets = [0, 64], sizes = [8, 32], strides = [1, 1]} : vector<8x128xf32> to vector<8x32xf32>
      %88 = vector.extract_strided_slice %83 {offsets = [0, 96], sizes = [8, 32], strides = [1, 1]} : vector<8x128xf32> to vector<8x32xf32>
      %89 = arith.mulf %86, %arg17 : vector<8x32xf32>
      %90 = arith.mulf %85, %87 : vector<8x32xf32>
      %91 = arith.addf %89, %90 : vector<8x32xf32>
      %92 = math.tanh %91 : vector<8x32xf32>
      %93 = arith.mulf %88, %92 : vector<8x32xf32>
      %c32_i32_62 = arith.constant 32 : i32
      %94 = arith.muli %45, %c32_i32_62 : i32
      %c16_i32 = arith.constant 16 : i32
      %95 = arith.addi %94, %c16_i32 : i32
      %96 = tpu.assume_multiple %95, 8 : i32
      %97 = arith.index_cast %96 : i32 to index
      %c0_63 = arith.constant 0 : index
      %98 = vector.load %arg11[%97, %c0_63] : memref<256x128xf32, #tpu.memory_space<vmem>>, vector<8x128xf32>
      %cst_64 = arith.constant dense<0.000000e+00> : vector<8x128xf32>
      %99 = tpu.matmul %arg18, %20, %cst_64 {dimension_numbers = #tpu.dot_dimension_numbers<[1], [0], [0], [1], [0, 0, 1, 1], [], []>} : vector<8x32xf32>, vector<32x128xf32>, vector<8x128xf32> -> vector<8x128xf32>
      %100 = arith.addf %98, %99 : vector<8x128xf32>
      %cst_65 = arith.constant 0.000000e+00 : f32
      %101 = vector.broadcast %cst_65 : f32 to vector<8x128xf32>
      %102 = arith.subf %101, %100 : vector<8x128xf32>
      %103 = math.exp %102 : vector<8x128xf32>
      %cst_66 = arith.constant 1.000000e+00 : f32
      %104 = vector.broadcast %cst_66 : f32 to vector<8x128xf32>
      %105 = arith.addf %104, %103 : vector<8x128xf32>
      %cst_67 = arith.constant 1.000000e+00 : f32
      %106 = vector.broadcast %cst_67 : f32 to vector<8x128xf32>
      %107 = arith.divf %106, %105 : vector<8x128xf32>
      %108 = math.tanh %100 : vector<8x128xf32>
      %109 = vector.extract_strided_slice %107 {offsets = [0, 0], sizes = [8, 32], strides = [1, 1]} : vector<8x128xf32> to vector<8x32xf32>
      %110 = vector.extract_strided_slice %107 {offsets = [0, 32], sizes = [8, 32], strides = [1, 1]} : vector<8x128xf32> to vector<8x32xf32>
      %111 = vector.extract_strided_slice %108 {offsets = [0, 64], sizes = [8, 32], strides = [1, 1]} : vector<8x128xf32> to vector<8x32xf32>
      %112 = vector.extract_strided_slice %107 {offsets = [0, 96], sizes = [8, 32], strides = [1, 1]} : vector<8x128xf32> to vector<8x32xf32>
      %113 = arith.mulf %110, %arg19 : vector<8x32xf32>
      %114 = arith.mulf %109, %111 : vector<8x32xf32>
      %115 = arith.addf %113, %114 : vector<8x32xf32>
      %116 = math.tanh %115 : vector<8x32xf32>
      %117 = arith.mulf %112, %116 : vector<8x32xf32>
      %c32_i32_68 = arith.constant 32 : i32
      %118 = arith.muli %45, %c32_i32_68 : i32
      %c24_i32 = arith.constant 24 : i32
      %119 = arith.addi %118, %c24_i32 : i32
      %120 = tpu.assume_multiple %119, 8 : i32
      %121 = arith.index_cast %120 : i32 to index
      %c0_69 = arith.constant 0 : index
      %122 = vector.load %arg11[%121, %c0_69] : memref<256x128xf32, #tpu.memory_space<vmem>>, vector<8x128xf32>
      %cst_70 = arith.constant dense<0.000000e+00> : vector<8x128xf32>
      %123 = tpu.matmul %arg20, %20, %cst_70 {dimension_numbers = #tpu.dot_dimension_numbers<[1], [0], [0], [1], [0, 0, 1, 1], [], []>} : vector<8x32xf32>, vector<32x128xf32>, vector<8x128xf32> -> vector<8x128xf32>
      %124 = arith.addf %122, %123 : vector<8x128xf32>
      %cst_71 = arith.constant 0.000000e+00 : f32
      %125 = vector.broadcast %cst_71 : f32 to vector<8x128xf32>
      %126 = arith.subf %125, %124 : vector<8x128xf32>
      %127 = math.exp %126 : vector<8x128xf32>
      %cst_72 = arith.constant 1.000000e+00 : f32
      %128 = vector.broadcast %cst_72 : f32 to vector<8x128xf32>
      %129 = arith.addf %128, %127 : vector<8x128xf32>
      %cst_73 = arith.constant 1.000000e+00 : f32
      %130 = vector.broadcast %cst_73 : f32 to vector<8x128xf32>
      %131 = arith.divf %130, %129 : vector<8x128xf32>
      %132 = math.tanh %124 : vector<8x128xf32>
      %133 = vector.extract_strided_slice %131 {offsets = [0, 0], sizes = [8, 32], strides = [1, 1]} : vector<8x128xf32> to vector<8x32xf32>
      %134 = vector.extract_strided_slice %131 {offsets = [0, 32], sizes = [8, 32], strides = [1, 1]} : vector<8x128xf32> to vector<8x32xf32>
      %135 = vector.extract_strided_slice %132 {offsets = [0, 64], sizes = [8, 32], strides = [1, 1]} : vector<8x128xf32> to vector<8x32xf32>
      %136 = vector.extract_strided_slice %131 {offsets = [0, 96], sizes = [8, 32], strides = [1, 1]} : vector<8x128xf32> to vector<8x32xf32>
      %137 = arith.mulf %134, %arg21 : vector<8x32xf32>
      %138 = arith.mulf %133, %135 : vector<8x32xf32>
      %139 = arith.addf %137, %138 : vector<8x32xf32>
      %140 = math.tanh %139 : vector<8x32xf32>
      %141 = arith.mulf %136, %140 : vector<8x32xf32>
      %c2_i32_74 = arith.constant 2 : i32
      %142 = arith.muli %arg13, %c2_i32_74 : i32
      %c1_i32_75 = arith.constant 1 : i32
      %143 = arith.addi %142, %c1_i32_75 : i32
      %c32_i32_76 = arith.constant 32 : i32
      %144 = arith.muli %143, %c32_i32_76 : i32
      %c0_i32_77 = arith.constant 0 : i32
      %145 = arith.addi %144, %c0_i32_77 : i32
      %146 = tpu.assume_multiple %145, 8 : i32
      %147 = arith.index_cast %146 : i32 to index
      %c0_78 = arith.constant 0 : index
      %148 = vector.load %arg11[%147, %c0_78] : memref<256x128xf32, #tpu.memory_space<vmem>>, vector<8x128xf32>
      %cst_79 = arith.constant dense<0.000000e+00> : vector<8x128xf32>
      %149 = tpu.matmul %69, %20, %cst_79 {dimension_numbers = #tpu.dot_dimension_numbers<[1], [0], [0], [1], [0, 0, 1, 1], [], []>} : vector<8x32xf32>, vector<32x128xf32>, vector<8x128xf32> -> vector<8x128xf32>
      %150 = arith.addf %148, %149 : vector<8x128xf32>
      %cst_80 = arith.constant 0.000000e+00 : f32
      %151 = vector.broadcast %cst_80 : f32 to vector<8x128xf32>
      %152 = arith.subf %151, %150 : vector<8x128xf32>
      %153 = math.exp %152 : vector<8x128xf32>
      %cst_81 = arith.constant 1.000000e+00 : f32
      %154 = vector.broadcast %cst_81 : f32 to vector<8x128xf32>
      %155 = arith.addf %154, %153 : vector<8x128xf32>
      %cst_82 = arith.constant 1.000000e+00 : f32
      %156 = vector.broadcast %cst_82 : f32 to vector<8x128xf32>
      %157 = arith.divf %156, %155 : vector<8x128xf32>
      %158 = math.tanh %150 : vector<8x128xf32>
      %159 = vector.extract_strided_slice %157 {offsets = [0, 0], sizes = [8, 32], strides = [1, 1]} : vector<8x128xf32> to vector<8x32xf32>
      %160 = vector.extract_strided_slice %157 {offsets = [0, 32], sizes = [8, 32], strides = [1, 1]} : vector<8x128xf32> to vector<8x32xf32>
      %161 = vector.extract_strided_slice %158 {offsets = [0, 64], sizes = [8, 32], strides = [1, 1]} : vector<8x128xf32> to vector<8x32xf32>
      %162 = vector.extract_strided_slice %157 {offsets = [0, 96], sizes = [8, 32], strides = [1, 1]} : vector<8x128xf32> to vector<8x32xf32>
      %163 = arith.mulf %160, %67 : vector<8x32xf32>
      %164 = arith.mulf %159, %161 : vector<8x32xf32>
      %165 = arith.addf %163, %164 : vector<8x32xf32>
      %166 = math.tanh %165 : vector<8x32xf32>
      %167 = arith.mulf %162, %166 : vector<8x32xf32>
      %c32_i32_83 = arith.constant 32 : i32
      %168 = arith.muli %143, %c32_i32_83 : i32
      %c8_i32_84 = arith.constant 8 : i32
      %169 = arith.addi %168, %c8_i32_84 : i32
      %170 = tpu.assume_multiple %169, 8 : i32
      %171 = arith.index_cast %170 : i32 to index
      %c0_85 = arith.constant 0 : index
      %172 = vector.load %arg11[%171, %c0_85] : memref<256x128xf32, #tpu.memory_space<vmem>>, vector<8x128xf32>
      %cst_86 = arith.constant dense<0.000000e+00> : vector<8x128xf32>
      %173 = tpu.matmul %93, %20, %cst_86 {dimension_numbers = #tpu.dot_dimension_numbers<[1], [0], [0], [1], [0, 0, 1, 1], [], []>} : vector<8x32xf32>, vector<32x128xf32>, vector<8x128xf32> -> vector<8x128xf32>
      %174 = arith.addf %172, %173 : vector<8x128xf32>
      %cst_87 = arith.constant 0.000000e+00 : f32
      %175 = vector.broadcast %cst_87 : f32 to vector<8x128xf32>
      %176 = arith.subf %175, %174 : vector<8x128xf32>
      %177 = math.exp %176 : vector<8x128xf32>
      %cst_88 = arith.constant 1.000000e+00 : f32
      %178 = vector.broadcast %cst_88 : f32 to vector<8x128xf32>
      %179 = arith.addf %178, %177 : vector<8x128xf32>
      %cst_89 = arith.constant 1.000000e+00 : f32
      %180 = vector.broadcast %cst_89 : f32 to vector<8x128xf32>
      %181 = arith.divf %180, %179 : vector<8x128xf32>
      %182 = math.tanh %174 : vector<8x128xf32>
      %183 = vector.extract_strided_slice %181 {offsets = [0, 0], sizes = [8, 32], strides = [1, 1]} : vector<8x128xf32> to vector<8x32xf32>
      %184 = vector.extract_strided_slice %181 {offsets = [0, 32], sizes = [8, 32], strides = [1, 1]} : vector<8x128xf32> to vector<8x32xf32>
      %185 = vector.extract_strided_slice %182 {offsets = [0, 64], sizes = [8, 32], strides = [1, 1]} : vector<8x128xf32> to vector<8x32xf32>
      %186 = vector.extract_strided_slice %181 {offsets = [0, 96], sizes = [8, 32], strides = [1, 1]} : vector<8x128xf32> to vector<8x32xf32>
      %187 = arith.mulf %184, %91 : vector<8x32xf32>
      %188 = arith.mulf %183, %185 : vector<8x32xf32>
      %189 = arith.addf %187, %188 : vector<8x32xf32>
      %190 = math.tanh %189 : vector<8x32xf32>
      %191 = arith.mulf %186, %190 : vector<8x32xf32>
      %c32_i32_90 = arith.constant 32 : i32
      %192 = arith.muli %143, %c32_i32_90 : i32
      %c16_i32_91 = arith.constant 16 : i32
      %193 = arith.addi %192, %c16_i32_91 : i32
      %194 = tpu.assume_multiple %193, 8 : i32
      %195 = arith.index_cast %194 : i32 to index
      %c0_92 = arith.constant 0 : index
      %196 = vector.load %arg11[%195, %c0_92] : memref<256x128xf32, #tpu.memory_space<vmem>>, vector<8x128xf32>
      %cst_93 = arith.constant dense<0.000000e+00> : vector<8x128xf32>
      %197 = tpu.matmul %117, %20, %cst_93 {dimension_numbers = #tpu.dot_dimension_numbers<[1], [0], [0], [1], [0, 0, 1, 1], [], []>} : vector<8x32xf32>, vector<32x128xf32>, vector<8x128xf32> -> vector<8x128xf32>
      %198 = arith.addf %196, %197 : vector<8x128xf32>
      %cst_94 = arith.constant 0.000000e+00 : f32
      %199 = vector.broadcast %cst_94 : f32 to vector<8x128xf32>
      %200 = arith.subf %199, %198 : vector<8x128xf32>
      %201 = math.exp %200 : vector<8x128xf32>
      %cst_95 = arith.constant 1.000000e+00 : f32
      %202 = vector.broadcast %cst_95 : f32 to vector<8x128xf32>
      %203 = arith.addf %202, %201 : vector<8x128xf32>
      %cst_96 = arith.constant 1.000000e+00 : f32
      %204 = vector.broadcast %cst_96 : f32 to vector<8x128xf32>
      %205 = arith.divf %204, %203 : vector<8x128xf32>
      %206 = math.tanh %198 : vector<8x128xf32>
      %207 = vector.extract_strided_slice %205 {offsets = [0, 0], sizes = [8, 32], strides = [1, 1]} : vector<8x128xf32> to vector<8x32xf32>
      %208 = vector.extract_strided_slice %205 {offsets = [0, 32], sizes = [8, 32], strides = [1, 1]} : vector<8x128xf32> to vector<8x32xf32>
      %209 = vector.extract_strided_slice %206 {offsets = [0, 64], sizes = [8, 32], strides = [1, 1]} : vector<8x128xf32> to vector<8x32xf32>
      %210 = vector.extract_strided_slice %205 {offsets = [0, 96], sizes = [8, 32], strides = [1, 1]} : vector<8x128xf32> to vector<8x32xf32>
      %211 = arith.mulf %208, %115 : vector<8x32xf32>
      %212 = arith.mulf %207, %209 : vector<8x32xf32>
      %213 = arith.addf %211, %212 : vector<8x32xf32>
      %214 = math.tanh %213 : vector<8x32xf32>
      %215 = arith.mulf %210, %214 : vector<8x32xf32>
      %c32_i32_97 = arith.constant 32 : i32
      %216 = arith.muli %143, %c32_i32_97 : i32
      %c24_i32_98 = arith.constant 24 : i32
      %217 = arith.addi %216, %c24_i32_98 : i32
      %218 = tpu.assume_multiple %217, 8 : i32
      %219 = arith.index_cast %218 : i32 to index
      %c0_99 = arith.constant 0 : index
      %220 = vector.load %arg11[%219, %c0_99] : memref<256x128xf32, #tpu.memory_space<vmem>>, vector<8x128xf32>
      %cst_100 = arith.constant dense<0.000000e+00> : vector<8x128xf32>
      %221 = tpu.matmul %141, %20, %cst_100 {dimension_numbers = #tpu.dot_dimension_numbers<[1], [0], [0], [1], [0, 0, 1, 1], [], []>} : vector<8x32xf32>, vector<32x128xf32>, vector<8x128xf32> -> vector<8x128xf32>
      %222 = arith.addf %220, %221 : vector<8x128xf32>
      %cst_101 = arith.constant 0.000000e+00 : f32
      %223 = vector.broadcast %cst_101 : f32 to vector<8x128xf32>
      %224 = arith.subf %223, %222 : vector<8x128xf32>
      %225 = math.exp %224 : vector<8x128xf32>
      %cst_102 = arith.constant 1.000000e+00 : f32
      %226 = vector.broadcast %cst_102 : f32 to vector<8x128xf32>
      %227 = arith.addf %226, %225 : vector<8x128xf32>
      %cst_103 = arith.constant 1.000000e+00 : f32
      %228 = vector.broadcast %cst_103 : f32 to vector<8x128xf32>
      %229 = arith.divf %228, %227 : vector<8x128xf32>
      %230 = math.tanh %222 : vector<8x128xf32>
      %231 = vector.extract_strided_slice %229 {offsets = [0, 0], sizes = [8, 32], strides = [1, 1]} : vector<8x128xf32> to vector<8x32xf32>
      %232 = vector.extract_strided_slice %229 {offsets = [0, 32], sizes = [8, 32], strides = [1, 1]} : vector<8x128xf32> to vector<8x32xf32>
      %233 = vector.extract_strided_slice %230 {offsets = [0, 64], sizes = [8, 32], strides = [1, 1]} : vector<8x128xf32> to vector<8x32xf32>
      %234 = vector.extract_strided_slice %229 {offsets = [0, 96], sizes = [8, 32], strides = [1, 1]} : vector<8x128xf32> to vector<8x32xf32>
      %235 = arith.mulf %232, %139 : vector<8x32xf32>
      %236 = arith.mulf %231, %233 : vector<8x32xf32>
      %237 = arith.addf %235, %236 : vector<8x32xf32>
      %238 = math.tanh %237 : vector<8x32xf32>
      %239 = arith.mulf %234, %238 : vector<8x32xf32>
      scf.yield %167, %165, %191, %189, %215, %213, %239, %237 : vector<8x32xf32>, vector<8x32xf32>, vector<8x32xf32>, vector<8x32xf32>, vector<8x32xf32>, vector<8x32xf32>, vector<8x32xf32>, vector<8x32xf32>
    }
    %c4_i32_41 = arith.constant 4 : i32
    %37 = tpu.concatenate %36#0, %36#2, %36#4, %36#6 in 0 : vector<8x32xf32>, vector<8x32xf32>, vector<8x32xf32>, vector<8x32xf32> -> vector<32x32xf32>
    %c0_42 = arith.constant 0 : index
    %c0_43 = arith.constant 0 : index
    %38 = vector.load %arg8[%c0_42, %c0_43] : memref<32x16xf32, #tpu.memory_space<vmem>>, vector<32x16xf32>
    %cst_44 = arith.constant dense<0.000000e+00> : vector<32x16xf32>
    %39 = tpu.matmul %37, %38, %cst_44 {dimension_numbers = #tpu.dot_dimension_numbers<[1], [0], [0], [1], [0, 0, 1, 1], [], []>} : vector<32x32xf32>, vector<32x16xf32>, vector<32x16xf32> -> vector<32x16xf32>
    %c0_45 = arith.constant 0 : index
    %c0_46 = arith.constant 0 : index
    %40 = vector.load %arg9[%c0_45, %c0_46] : memref<1x16xf32, #tpu.memory_space<vmem>>, vector<1x16xf32>
    %41 = vector.broadcast %40 : vector<1x16xf32> to vector<32x16xf32>
    %42 = arith.addf %39, %41 : vector<32x16xf32>
    %c0_47 = arith.constant 0 : index
    %c0_48 = arith.constant 0 : index
    %43 = vector.load %arg10[%c0_47, %c0_48] : memref<32x16xf32, #tpu.memory_space<vmem>>, vector<32x16xf32>
    tpu.vector_store %arg10[%c0_47, %c0_48], %42 {strides = array<i32>} : memref<32x16xf32, #tpu.memory_space<vmem>>, vector<32x16xf32>,
    return
  }
  func.func @transform_0(%arg0: i32) -> (i32, i32, i32) {
    %c0_i32 = arith.constant 0 : i32
    %c0_i32_0 = arith.constant 0 : i32
    %c0_i32_1 = arith.constant 0 : i32
    return %arg0, %c0_i32, %c0_i32_0 : i32, i32, i32
  }
  func.func @transform_1(%arg0: i32) -> (i32, i32) {
    %c0_i32 = arith.constant 0 : i32
    %c0_i32_0 = arith.constant 0 : i32
    %c0_i32_1 = arith.constant 0 : i32
    return %c0_i32, %c0_i32_0 : i32, i32
  }
  func.func @transform_2(%arg0: i32) -> (i32, i32) {
    %c0_i32 = arith.constant 0 : i32
    %c0_i32_0 = arith.constant 0 : i32
    %c0_i32_1 = arith.constant 0 : i32
    return %c0_i32, %c0_i32_0 : i32, i32
  }
  func.func @transform_3(%arg0: i32) -> (i32, i32) {
    %c0_i32 = arith.constant 0 : i32
    %c0_i32_0 = arith.constant 0 : i32
    %c0_i32_1 = arith.constant 0 : i32
    return %c0_i32, %c0_i32_0 : i32, i32
  }
  func.func @transform_4(%arg0: i32) -> (i32, i32) {
    %c0_i32 = arith.constant 0 : i32
    %c0_i32_0 = arith.constant 0 : i32
    %c0_i32_1 = arith.constant 0 : i32
    return %c0_i32, %c0_i32_0 : i32, i32
  }
  func.func @transform_5(%arg0: i32) -> (i32, i32) {
    %c0_i32 = arith.constant 0 : i32
    %c0_i32_0 = arith.constant 0 : i32
    %c0_i32_1 = arith.constant 0 : i32
    return %c0_i32, %c0_i32_0 : i32, i32
  }
  func.func @transform_6(%arg0: i32) -> (i32, i32) {
    %c0_i32 = arith.constant 0 : i32
    %c0_i32_0 = arith.constant 0 : i32
    %c0_i32_1 = arith.constant 0 : i32
    return %c0_i32, %c0_i32_0 : i32, i32
  }
  func.func @transform_7(%arg0: i32) -> (i32, i32) {
    %c0_i32 = arith.constant 0 : i32
    %c0_i32_0 = arith.constant 0 : i32
    %c0_i32_1 = arith.constant 0 : i32
    return %c0_i32, %c0_i32_0 : i32, i32
  }
  func.func @transform_8(%arg0: i32) -> (i32, i32) {
    %c0_i32 = arith.constant 0 : i32
    %c0_i32_0 = arith.constant 0 : i32
    %c0_i32_1 = arith.constant 0 : i32
    return %c0_i32, %c0_i32_0 : i32, i32
  }
  func.func @transform_9(%arg0: i32) -> (i32, i32) {
    %c0_i32 = arith.constant 0 : i32
    %c0_i32_0 = arith.constant 0 : i32
    return %arg0, %c0_i32 : i32, i32
  }
}

</mosaic_0001>

<llo_original>
// kernel: tpu_custom_call.1
$region0: #{tpu_custom_call.1}
  #allocation0 [shape = 'u32[]', space=smem, size = 0x4, offset = 0x4, fixed_abs, tag = 'smem constant byte address 0x4 - core index']
  #allocation1 [shape = 'u32[144,128]{1,0:T(1,128)}', space=vmem, size = 0x12000, scoped, tag = 'internal scratch']
  #allocation2 [shape = 'f32[256,128]{1,0:T(8,128)}', space=vmem, size = 0x20000, scoped, tag = 'scratch operand']
  #allocation3 [shape = 'f32[256,32]{1,0:T(8,128)}', space=vmem, size = 0x20000, scoped, tag = 'scratch operand']
  %s0 = inlined_call_operand.vmem [shape: f32[1,256,32], index: 0, kind: input, shape index: {}]
  %s1 = inlined_call_operand.vmem [shape: f32[32,128], index: 1, kind: input, shape index: {}]
  %s2 = inlined_call_operand.vmem [shape: f32[32,128], index: 2, kind: input, shape index: {}]
  %s3 = inlined_call_operand.vmem [shape: f32[1,128], index: 3, kind: input, shape index: {}]
  %s4 = inlined_call_operand.vmem [shape: f32[32,128], index: 4, kind: input, shape index: {}]
  %s5 = inlined_call_operand.vmem [shape: f32[32,128], index: 5, kind: input, shape index: {}]
  %s6 = inlined_call_operand.vmem [shape: f32[1,128], index: 6, kind: input, shape index: {}]
  %s7 = inlined_call_operand.vmem [shape: f32[32,16], index: 7, kind: input, shape index: {}]
  %s8 = inlined_call_operand.vmem [shape: f32[1,16], index: 8, kind: input, shape index: {}]
  %s9 = inlined_call_operand.vmem [shape: f32[32,16], index: 9, kind: output, shape index: {}]
  %s10 = sld [smem:[#allocation0]]
  $region60: #{tpu_custom_call.1} parent=0
    _
  %s12 = ssub.s32 1, %s10
  %s13 = scalar_select 0, %s12, %s10
  // Predicated region
  $region2: #{tpu_custom_call.1} parent=0 // pred_check
    _
  $region3: #{tpu_custom_call.1} parent=0 // pred_check_branch
    %15 = sbr.rel (0) target = $region5
  $region4: #{tpu_custom_call.1} parent=0 // pred_region
    _
  $region5: #{tpu_custom_call.1} parent=0 // pred_fallthru
    _
  // Predicated region
  $region6: #{tpu_custom_call.1} parent=0 // pred_check
    _
  $region7: #{tpu_custom_call.1} parent=0 // pred_check_branch
    %17 = sbr.rel (0) target = $region9
  $region8: #{tpu_custom_call.1} parent=0 // pred_region
    _
  $region9: #{tpu_custom_call.1} parent=0 // pred_fallthru
    _
  // Predicated region
  $region10: #{tpu_custom_call.1} parent=0 // pred_check
    _
  $region11: #{tpu_custom_call.1} parent=0 // pred_check_branch
    %19 = sbr.rel (0) target = $region13
  $region12: #{tpu_custom_call.1} parent=0 // pred_region
    _
  $region13: #{tpu_custom_call.1} parent=0 // pred_fallthru
    _
  // Predicated region
  $region14: #{tpu_custom_call.1} parent=0 // pred_check
    _
  $region15: #{tpu_custom_call.1} parent=0 // pred_check_branch
    %21 = sbr.rel (0) target = $region17
  $region16: #{tpu_custom_call.1} parent=0 // pred_region
    _
  $region17: #{tpu_custom_call.1} parent=0 // pred_fallthru
    _
  // Predicated region
  $region18: #{tpu_custom_call.1} parent=0 // pred_check
    _
  $region19: #{tpu_custom_call.1} parent=0 // pred_check_branch
    %23 = sbr.rel (0) target = $region21
  $region20: #{tpu_custom_call.1} parent=0 // pred_region
    _
  $region21: #{tpu_custom_call.1} parent=0 // pred_fallthru
    _
  // Predicated region
  $region22: #{tpu_custom_call.1} parent=0 // pred_check
    _
  $region23: #{tpu_custom_call.1} parent=0 // pred_check_branch
    %25 = sbr.rel (0) target = $region25
  $region24: #{tpu_custom_call.1} parent=0 // pred_region
    _
  $region25: #{tpu_custom_call.1} parent=0 // pred_fallthru
    _
  // Predicated region
  $region26: #{tpu_custom_call.1} parent=0 // pred_check
    _
  $region27: #{tpu_custom_call.1} parent=0 // pred_check_branch
    %27 = sbr.rel (0) target = $region29
  $region28: #{tpu_custom_call.1} parent=0 // pred_region
    _
  $region29: #{tpu_custom_call.1} parent=0 // pred_fallthru
    _
  // Predicated region
  $region30: #{tpu_custom_call.1} parent=0 // pred_check
    _
  $region31: #{tpu_custom_call.1} parent=0 // pred_check_branch
    %29 = sbr.rel (0) target = $region33
  $region32: #{tpu_custom_call.1} parent=0 // pred_region
    _
  $region33: #{tpu_custom_call.1} parent=0 // pred_fallthru
    _
  // Predicated region
  $region34: #{tpu_custom_call.1} parent=0 // pred_check
    _
  $region35: #{tpu_custom_call.1} parent=0 // pred_check_branch
    %31 = sbr.rel (0) target = $region37
  $region36: #{tpu_custom_call.1} parent=0 // pred_region
    _
  $region37: #{tpu_custom_call.1} parent=0 // pred_fallthru
    _
  %v32 = vld [vmem:[%s1] sm:$0xff]
  %v33 = vld [vmem:[%s1 + $0x8] sm:$0xff]
  %v34 = vld [vmem:[%s1 + $0x10] sm:$0xff]
  %v35 = vld [vmem:[%s1 + $0x18] sm:$0xff]
  %v36 = vld [vmem:[%s2] sm:$0xff]
  %v37 = vld [vmem:[%s2 + $0x8] sm:$0xff]
  %v38 = vld [vmem:[%s2 + $0x10] sm:$0xff]
  %v39 = vld [vmem:[%s2 + $0x18] sm:$0xff]
  %v40 = vld [vmem:[%s3] sm:$0x1]
  %v41 = vld [vmem:[%s0] sm:$0xff]
  %v42 = vld [vmem:[%s0 + $0x8] sm:$0xff]
  %v43 = vld [vmem:[%s0 + $0x10] sm:$0xff]
  %v44 = vld [vmem:[%s0 + $0x18] sm:$0xff]
  %v45 = vld [vmem:[%s0 + $0x20] sm:$0xff]
  %v46 = vld [vmem:[%s0 + $0x28] sm:$0xff]
  %v47 = vld [vmem:[%s0 + $0x30] sm:$0xff]
  %v48 = vld [vmem:[%s0 + $0x38] sm:$0xff]
  %v49 = vld [vmem:[%s0 + $0x40] sm:$0xff]
  %v50 = vld [vmem:[%s0 + $0x48] sm:$0xff]
  %v51 = vld [vmem:[%s0 + $0x50] sm:$0xff]
  %v52 = vld [vmem:[%s0 + $0x58] sm:$0xff]
  %v53 = vld [vmem:[%s0 + $0x60] sm:$0xff]
  %v54 = vld [vmem:[%s0 + $0x68] sm:$0xff]
  %v55 = vld [vmem:[%s0 + $0x70] sm:$0xff]
  %v56 = vld [vmem:[%s0 + $0x78] sm:$0xff]
  %v57 = vld [vmem:[%s0 + $0x80] sm:$0xff]
  %v58 = vld [vmem:[%s0 + $0x88] sm:$0xff]
  %v59 = vld [vmem:[%s0 + $0x90] sm:$0xff]
  %v60 = vld [vmem:[%s0 + $0x98] sm:$0xff]
  %v61 = vld [vmem:[%s0 + $0xa0] sm:$0xff]
  %v62 = vld [vmem:[%s0 + $0xa8] sm:$0xff]
  %v63 = vld [vmem:[%s0 + $0xb0] sm:$0xff]
  %v64 = vld [vmem:[%s0 + $0xb8] sm:$0xff]
  %v65 = vld [vmem:[%s0 + $0xc0] sm:$0xff]
  %v66 = vld [vmem:[%s0 + $0xc8] sm:$0xff]
  %v67 = vld [vmem:[%s0 + $0xd0] sm:$0xff]
  %v68 = vld [vmem:[%s0 + $0xd8] sm:$0xff]
  %v69 = vld [vmem:[%s0 + $0xe0] sm:$0xff]
  %v70 = vld [vmem:[%s0 + $0xe8] sm:$0xff]
  %v71 = vld [vmem:[%s0 + $0xf0] sm:$0xff]
  %v72 = vld [vmem:[%s0 + $0xf8] sm:$0xff]
  %v74 = vlaneseq
  %v75 = vshrl.u32 %v74, 7
  %v76 = vsub.s32 0, %v75
  %v77 = vrot.slane %v40, %v76
  %vm79 = vcmask 261120
  %v81 = vsel %vm79, %v41, 0
  %v84 = vsel %vm79, %v42, 0
  %v87 = vsel %vm79, %v43, 0
  %v90 = vsel %vm79, %v44, 0
  %v93 = vsel %vm79, %v45, 0
  %v96 = vsel %vm79, %v46, 0
  %v99 = vsel %vm79, %v47, 0
  %v102 = vsel %vm79, %v48, 0
  %v105 = vsel %vm79, %v49, 0
  %v108 = vsel %vm79, %v50, 0
  %v111 = vsel %vm79, %v51, 0
  %v114 = vsel %vm79, %v52, 0
  %v117 = vsel %vm79, %v53, 0
  %v120 = vsel %vm79, %v54, 0
  %v123 = vsel %vm79, %v55, 0
  %v126 = vsel %vm79, %v56, 0
  %v129 = vsel %vm79, %v57, 0
  %v132 = vsel %vm79, %v58, 0
  %v135 = vsel %vm79, %v59, 0
  %v138 = vsel %vm79, %v60, 0
  %v141 = vsel %vm79, %v61, 0
  %v144 = vsel %vm79, %v62, 0
  %v147 = vsel %vm79, %v63, 0
  %v150 = vsel %vm79, %v64, 0
  %v153 = vsel %vm79, %v65, 0
  %v156 = vsel %vm79, %v66, 0
  %v159 = vsel %vm79, %v67, 0
  %v162 = vsel %vm79, %v68, 0
  %v165 = vsel %vm79, %v69, 0
  %v168 = vsel %vm79, %v70, 0
  %v171 = vsel %vm79, %v71, 0
  %v174 = vsel %vm79, %v72, 0
  %176 = vmatprep.subr.mxu0 0.0
  %177 = vmatpush1.msra.mxu0 0.0
  %178 = vmatprep.subr.mxu0 0.0
  %179 = vmatpush1.msra.mxu0 0.0
  %180 = vmatprep.subr.mxu0 0.0
  %181 = vmatpush1.msra.mxu0 0.0
  %182 = vmatprep.subr.mxu0 0.0
  %183 = vmatpush1.msra.mxu0 0.0
  %184 = vmatprep.subr.mxu0 0.0
  %185 = vmatpush1.msra.mxu0 0.0
  %186 = vmatprep.subr.mxu0 0.0
  %187 = vmatpush1.msra.mxu0 0.0
  %188 = vmatprep.subr.mxu0 0.0
  %189 = vmatpush1.msra.mxu0 0.0
  %190 = vmatprep.subr.mxu0 0.0
  %191 = vmatpush1.msra.mxu0 0.0
  %192 = vmatprep.subr.mxu0 0.0
  %193 = vmatpush1.msra.mxu0 0.0
  %194 = vmatprep.subr.mxu0 0.0
  %195 = vmatpush1.msra.mxu0 0.0
  %196 = vmatprep.subr.mxu0 0.0
  %197 = vmatpush1.msra.mxu0 0.0
  %198 = vmatprep.subr.mxu0 0.0
  %199 = vmatpush1.msra.mxu0 0.0
  %200 = vmatprep.subr.mxu0 0.0
  %201 = vmatpush1.msra.mxu0 %v35
  %202 = vmatprep.subr.mxu0 0.0
  %203 = vmatpush1.msra.mxu0 %v34
  %204 = vmatprep.subr.mxu0 0.0
  %205 = vmatpush1.msra.mxu0 %v33
  %206 = vmatprep.subr.mxu0 0.0
  %207 = vmatpush1.msra.mxu0 %v32
  %208 = vmatprep.subr.mxu0 0.0
  %209 = vmatpush2.msra.mxu0 0.0
  %210 = vmatprep.subr.mxu0 0.0
  %211 = vmatpush2.msra.mxu0 0.0
  %212 = vmatprep.subr.mxu0 0.0
  %213 = vmatpush2.msra.mxu0 0.0
  %214 = vmatprep.subr.mxu0 0.0
  %215 = vmatpush2.msra.mxu0 0.0
  %216 = vmatprep.subr.mxu0 0.0
  %217 = vmatpush2.msra.mxu0 0.0
  %218 = vmatprep.subr.mxu0 0.0
  %219 = vmatpush2.msra.mxu0 0.0
  %220 = vmatprep.subr.mxu0 0.0
  %221 = vmatpush2.msra.mxu0 0.0
  %222 = vmatprep.subr.mxu0 0.0
  %223 = vmatpush2.msra.mxu0 0.0
  %224 = vmatprep.subr.mxu0 0.0
  %225 = vmatpush2.msra.mxu0 0.0
  %226 = vmatprep.subr.mxu0 0.0
  %227 = vmatpush2.msra.mxu0 0.0
  %228 = vmatprep.subr.mxu0 0.0
  %229 = vmatpush2.msra.mxu0 0.0
  %230 = vmatprep.subr.mxu0 0.0
  %231 = vmatpush2.msra.mxu0 0.0
  %232 = vmatprep.subr.mxu0 0.0
  %233 = vmatpush2.msra.mxu0 0.0
  %234 = vmatprep.subr.mxu0 0.0
  %235 = vmatpush2.msra.mxu0 0.0
  %236 = vmatprep.subr.mxu0 0.0
  %237 = vmatpush2.msra.mxu0 0.0
  %238 = vmatprep.subr.mxu0 0.0
  %239 = vmatpush2.msra.mxu0 0.0
  %240 = vmatprep.mubr.f32.mxu0 0.0
  %241 = vmatmul.mubr.f32.gmra.mxu0 %v81
  %v242 = vpop.f32.mrf.mxu0
  %v243 = vadd.f32 %v77, %v242
  %v244 = vpop.f32.mrf.mxu0
  %245 = vmatprep.mubr.f32.mxu0 0.0
  %246 = vmatmul.mubr.f32.gmra.mxu0 %v84
  %v247 = vpop.f32.mrf.mxu0
  %v248 = vadd.f32 %v77, %v247
  %v249 = vpop.f32.mrf.mxu0
  %250 = vmatprep.mubr.f32.mxu0 0.0
  %251 = vmatmul.mubr.f32.gmra.mxu0 %v87
  %v252 = vpop.f32.mrf.mxu0
  %v253 = vadd.f32 %v77, %v252
  %v254 = vpop.f32.mrf.mxu0
  %255 = vmatprep.mubr.f32.mxu0 0.0
  %256 = vmatmul.mubr.f32.gmra.mxu0 %v90
  %v257 = vpop.f32.mrf.mxu0
  %v258 = vadd.f32 %v77, %v257
  %v259 = vpop.f32.mrf.mxu0
  %260 = vmatprep.mubr.f32.mxu0 0.0
  %261 = vmatmul.mubr.f32.gmra.mxu0 %v93
  %v262 = vpop.f32.mrf.mxu0
  %v263 = vadd.f32 %v77, %v262
  %v264 = vpop.f32.mrf.mxu0
  %265 = vmatprep.mubr.f32.mxu0 0.0
  %266 = vmatmul.mubr.f32.gmra.mxu0 %v96
  %v267 = vpop.f32.mrf.mxu0
  %v268 = vadd.f32 %v77, %v267
  %v269 = vpop.f32.mrf.mxu0
  %270 = vmatprep.mubr.f32.mxu0 0.0
  %271 = vmatmul.mubr.f32.gmra.mxu0 %v99
  %v272 = vpop.f32.mrf.mxu0
  %v273 = vadd.f32 %v77, %v272
  %v274 = vpop.f32.mrf.mxu0
  %275 = vmatprep.mubr.f32.mxu0 0.0
  %276 = vmatmul.mubr.f32.gmra.mxu0 %v102
  %v277 = vpop.f32.mrf.mxu0
  %v278 = vadd.f32 %v77, %v277
  %v279 = vpop.f32.mrf.mxu0
  %280 = vmatprep.mubr.f32.mxu0 0.0
  %281 = vmatmul.mubr.f32.gmra.mxu0 %v105
  %v282 = vpop.f32.mrf.mxu0
  %v283 = vadd.f32 %v77, %v282
  %v284 = vpop.f32.mrf.mxu0
  %285 = vmatprep.mubr.f32.mxu0 0.0
  %286 = vmatmul.mubr.f32.gmra.mxu0 %v108
  %v287 = vpop.f32.mrf.mxu0
  %v288 = vadd.f32 %v77, %v287
  %v289 = vpop.f32.mrf.mxu0
  %290 = vmatprep.mubr.f32.mxu0 0.0
  %291 = vmatmul.mubr.f32.gmra.mxu0 %v111
  %v292 = vpop.f32.mrf.mxu0
  %v293 = vadd.f32 %v77, %v292
  %v294 = vpop.f32.mrf.mxu0
  %295 = vmatprep.mubr.f32.mxu0 0.0
  %296 = vmatmul.mubr.f32.gmra.mxu0 %v114
  %v297 = vpop.f32.mrf.mxu0
  %v298 = vadd.f32 %v77, %v297
  %v299 = vpop.f32.mrf.mxu0
  %300 = vmatprep.mubr.f32.mxu0 0.0
  %301 = vmatmul.mubr.f32.gmra.mxu0 %v117
  %v302 = vpop.f32.mrf.mxu0
  %v303 = vadd.f32 %v77, %v302
  %v304 = vpop.f32.mrf.mxu0
  %305 = vmatprep.mubr.f32.mxu0 0.0
  %306 = vmatmul.mubr.f32.gmra.mxu0 %v120
  %v307 = vpop.f32.mrf.mxu0
  %v308 = vadd.f32 %v77, %v307
  %v309 = vpop.f32.mrf.mxu0
  %310 = vmatprep.mubr.f32.mxu0 0.0
  %311 = vmatmul.mubr.f32.gmra.mxu0 %v123
  %v312 = vpop.f32.mrf.mxu0
  %v313 = vadd.f32 %v77, %v312
  %v314 = vpop.f32.mrf.mxu0
  %315 = vmatprep.mubr.f32.mxu0 0.0
  %316 = vmatmul.mubr.f32.gmra.mxu0 %v126
  %v317 = vpop.f32.mrf.mxu0
  %v318 = vadd.f32 %v77, %v317
  %v319 = vpop.f32.mrf.mxu0
  %320 = vmatprep.mubr.f32.mxu0 0.0
  %321 = vmatmul.mubr.f32.gmra.mxu0 %v129
  %v322 = vpop.f32.mrf.mxu0
  %v323 = vadd.f32 %v77, %v322
  %v324 = vpop.f32.mrf.mxu0
  %325 = vmatprep.mubr.f32.mxu0 0.0
  %326 = vmatmul.mubr.f32.gmra.mxu0 %v132
  %v327 = vpop.f32.mrf.mxu0
  %v328 = vadd.f32 %v77, %v327
  %v329 = vpop.f32.mrf.mxu0
  %330 = vmatprep.mubr.f32.mxu0 0.0
  %331 = vmatmul.mubr.f32.gmra.mxu0 %v135
  %v332 = vpop.f32.mrf.mxu0
  %v333 = vadd.f32 %v77, %v332
  %v334 = vpop.f32.mrf.mxu0
  %335 = vmatprep.mubr.f32.mxu0 0.0
  %336 = vmatmul.mubr.f32.gmra.mxu0 %v138
  %v337 = vpop.f32.mrf.mxu0
  %v338 = vadd.f32 %v77, %v337
  %v339 = vpop.f32.mrf.mxu0
  %340 = vmatprep.mubr.f32.mxu0 0.0
  %341 = vmatmul.mubr.f32.gmra.mxu0 %v141
  %v342 = vpop.f32.mrf.mxu0
  %v343 = vadd.f32 %v77, %v342
  %v344 = vpop.f32.mrf.mxu0
  %345 = vmatprep.mubr.f32.mxu0 0.0
  %346 = vmatmul.mubr.f32.gmra.mxu0 %v144
  %v347 = vpop.f32.mrf.mxu0
  %v348 = vadd.f32 %v77, %v347
  %v349 = vpop.f32.mrf.mxu0
  %350 = vmatprep.mubr.f32.mxu0 0.0
  %351 = vmatmul.mubr.f32.gmra.mxu0 %v147
  %v352 = vpop.f32.mrf.mxu0
  %v353 = vadd.f32 %v77, %v352
  %v354 = vpop.f32.mrf.mxu0
  %355 = vmatprep.mubr.f32.mxu0 0.0
  %356 = vmatmul.mubr.f32.gmra.mxu0 %v150
  %v357 = vpop.f32.mrf.mxu0
  %v358 = vadd.f32 %v77, %v357
  %v359 = vpop.f32.mrf.mxu0
  %360 = vmatprep.mubr.f32.mxu0 0.0
  %361 = vmatmul.mubr.f32.gmra.mxu0 %v153
  %v362 = vpop.f32.mrf.mxu0
  %v363 = vadd.f32 %v77, %v362
  %v364 = vpop.f32.mrf.mxu0
  %365 = vmatprep.mubr.f32.mxu0 0.0
  %366 = vmatmul.mubr.f32.gmra.mxu0 %v156
  %v367 = vpop.f32.mrf.mxu0
  %v368 = vadd.f32 %v77, %v367
  %v369 = vpop.f32.mrf.mxu0
  %370 = vmatprep.mubr.f32.mxu0 0.0
  %371 = vmatmul.mubr.f32.gmra.mxu0 %v159
  %v372 = vpop.f32.mrf.mxu0
  %v373 = vadd.f32 %v77, %v372
  %v374 = vpop.f32.mrf.mxu0
  %375 = vmatprep.mubr.f32.mxu0 0.0
  %376 = vmatmul.mubr.f32.gmra.mxu0 %v162
  %v377 = vpop.f32.mrf.mxu0
  %v378 = vadd.f32 %v77, %v377
  %v379 = vpop.f32.mrf.mxu0
  %380 = vmatprep.mubr.f32.mxu0 0.0
  %381 = vmatmul.mubr.f32.gmra.mxu0 %v165
  %v382 = vpop.f32.mrf.mxu0
  %v383 = vadd.f32 %v77, %v382
  %v384 = vpop.f32.mrf.mxu0
  %385 = vmatprep.mubr.f32.mxu0 0.0
  %386 = vmatmul.mubr.f32.gmra.mxu0 %v168
  %v387 = vpop.f32.mrf.mxu0
  %v388 = vadd.f32 %v77, %v387
  %v389 = vpop.f32.mrf.mxu0
  %390 = vmatprep.mubr.f32.mxu0 0.0
  %391 = vmatmul.mubr.f32.gmra.mxu0 %v171
  %v392 = vpop.f32.mrf.mxu0
  %v393 = vadd.f32 %v77, %v392
  %v394 = vpop.f32.mrf.mxu0
  %395 = vmatprep.mubr.f32.mxu0 0.0
  %396 = vmatmul.mubr.f32.gmra.mxu0 %v174
  %v397 = vpop.f32.mrf.mxu0
  %v398 = vadd.f32 %v77, %v397
  %v399 = vpop.f32.mrf.mxu0
  %400 = vdwg.mxu0
  %401 = vst [vmem:[#allocation2] sm:$0xff] %v243
  %402 = vst [vmem:[#allocation2 + $0x8] sm:$0xff] %v248
  %403 = vst [vmem:[#allocation2 + $0x10] sm:$0xff] %v253
  %404 = vst [vmem:[#allocation2 + $0x18] sm:$0xff] %v258
  %405 = vst [vmem:[#allocation2 + $0x20] sm:$0xff] %v263
  %406 = vst [vmem:[#allocation2 + $0x28] sm:$0xff] %v268
  %407 = vst [vmem:[#allocation2 + $0x30] sm:$0xff] %v273
  %408 = vst [vmem:[#allocation2 + $0x38] sm:$0xff] %v278
  %409 = vst [vmem:[#allocation2 + $0x40] sm:$0xff] %v283
  %410 = vst [vmem:[#allocation2 + $0x48] sm:$0xff] %v288
  %411 = vst [vmem:[#allocation2 + $0x50] sm:$0xff] %v293
  %412 = vst [vmem:[#allocation2 + $0x58] sm:$0xff] %v298
  %413 = vst [vmem:[#allocation2 + $0x60] sm:$0xff] %v303
  %414 = vst [vmem:[#allocation2 + $0x68] sm:$0xff] %v308
  %415 = vst [vmem:[#allocation2 + $0x70] sm:$0xff] %v313
  %416 = vst [vmem:[#allocation2 + $0x78] sm:$0xff] %v318
  %417 = vst [vmem:[#allocation2 + $0x80] sm:$0xff] %v323
  %418 = vst [vmem:[#allocation2 + $0x88] sm:$0xff] %v328
  %419 = vst [vmem:[#allocation2 + $0x90] sm:$0xff] %v333
  %420 = vst [vmem:[#allocation2 + $0x98] sm:$0xff] %v338
  %421 = vst [vmem:[#allocation2 + $0xa0] sm:$0xff] %v343
  %422 = vst [vmem:[#allocation2 + $0xa8] sm:$0xff] %v348
  %423 = vst [vmem:[#allocation2 + $0xb0] sm:$0xff] %v353
  %424 = vst [vmem:[#allocation2 + $0xb8] sm:$0xff] %v358
  %425 = vst [vmem:[#allocation2 + $0xc0] sm:$0xff] %v363
  %426 = vst [vmem:[#allocation2 + $0xc8] sm:$0xff] %v368
  %427 = vst [vmem:[#allocation2 + $0xd0] sm:$0xff] %v373
  %428 = vst [vmem:[#allocation2 + $0xd8] sm:$0xff] %v378
  %429 = vst [vmem:[#allocation2 + $0xe0] sm:$0xff] %v383
  %430 = vst [vmem:[#allocation2 + $0xe8] sm:$0xff] %v388
  %431 = vst [vmem:[#allocation2 + $0xf0] sm:$0xff] %v393
  %432 = vst [vmem:[#allocation2 + $0xf8] sm:$0xff] %v398
  loop: start=0, step=1, limit=4
  $region38: #{tpu_custom_call.1} parent=0 // loop_pre_header
    _
  $region39: #{tpu_custom_call.1} parent=0 // loop_header
    %s434 = sphi 0, %s438
    %p435 = scmp.ge.s32.totalorder %s434, 4
    %v439 = vphi 0.0, %v984
    %v440 = vphi 0.0, %v978
    %v441 = vphi 0.0, %v1090
    %v442 = vphi 0.0, %v1084
    %v443 = vphi 0.0, %v1196
    %v444 = vphi 0.0, %v1190
    %v445 = vphi 0.0, %v1302
    %v446 = vphi 0.0, %v1296
  $region40: #{tpu_custom_call.1} parent=0 // loop_header_branch
    %437 = sbr.rel (%p435) target = $region44
  $region41: #{tpu_custom_call.1} parent=0 // loop_body
    %s447 = smul.u32 %s434, 64
    %s448 = scalar_lea.vmem [#allocation2], %s447
    %v449 = vld [vmem:[%s448] sm:$0xff]
    %451 = vrot.lane.b32.xlu0 %v439, 32
    %v452 = vpop.permute.xlu0 %451
    %v453 = vsel %vm79, %v452, 0
    %455 = vmatprep.subr.mxu0 0.0
    %456 = vmatpush1.msra.mxu0 0.0
    %457 = vmatprep.subr.mxu0 0.0
    %458 = vmatpush1.msra.mxu0 0.0
    %459 = vmatprep.subr.mxu0 0.0
    %460 = vmatpush1.msra.mxu0 0.0
    %461 = vmatprep.subr.mxu0 0.0
    %462 = vmatpush1.msra.mxu0 0.0
    %463 = vmatprep.subr.mxu0 0.0
    %464 = vmatpush1.msra.mxu0 0.0
    %465 = vmatprep.subr.mxu0 0.0
    %466 = vmatpush1.msra.mxu0 0.0
    %467 = vmatprep.subr.mxu0 0.0
    %468 = vmatpush1.msra.mxu0 0.0
    %469 = vmatprep.subr.mxu0 0.0
    %470 = vmatpush1.msra.mxu0 0.0
    %471 = vmatprep.subr.mxu0 0.0
    %472 = vmatpush1.msra.mxu0 0.0
    %473 = vmatprep.subr.mxu0 0.0
    %474 = vmatpush1.msra.mxu0 0.0
    %475 = vmatprep.subr.mxu0 0.0
    %476 = vmatpush1.msra.mxu0 0.0
    %477 = vmatprep.subr.mxu0 0.0
    %478 = vmatpush1.msra.mxu0 0.0
    %479 = vmatprep.subr.mxu0 0.0
    %480 = vmatpush1.msra.mxu0 %v39
    %481 = vmatprep.subr.mxu0 0.0
    %482 = vmatpush1.msra.mxu0 %v38
    %483 = vmatprep.subr.mxu0 0.0
    %484 = vmatpush1.msra.mxu0 %v37
    %485 = vmatprep.subr.mxu0 0.0
    %486 = vmatpush1.msra.mxu0 %v36
    %487 = vmatprep.subr.mxu0 0.0
    %488 = vmatpush2.msra.mxu0 0.0
    %489 = vmatprep.subr.mxu0 0.0
    %490 = vmatpush2.msra.mxu0 0.0
    %491 = vmatprep.subr.mxu0 0.0
    %492 = vmatpush2.msra.mxu0 0.0
    %493 = vmatprep.subr.mxu0 0.0
    %494 = vmatpush2.msra.mxu0 0.0
    %495 = vmatprep.subr.mxu0 0.0
    %496 = vmatpush2.msra.mxu0 0.0
    %497 = vmatprep.subr.mxu0 0.0
    %498 = vmatpush2.msra.mxu0 0.0
    %499 = vmatprep.subr.mxu0 0.0
    %500 = vmatpush2.msra.mxu0 0.0
    %501 = vmatprep.subr.mxu0 0.0
    %502 = vmatpush2.msra.mxu0 0.0
    %503 = vmatprep.subr.mxu0 0.0
    %504 = vmatpush2.msra.mxu0 0.0
    %505 = vmatprep.subr.mxu0 0.0
    %506 = vmatpush2.msra.mxu0 0.0
    %507 = vmatprep.subr.mxu0 0.0
    %508 = vmatpush2.msra.mxu0 0.0
    %509 = vmatprep.subr.mxu0 0.0
    %510 = vmatpush2.msra.mxu0 0.0
    %511 = vmatprep.subr.mxu0 0.0
    %512 = vmatpush2.msra.mxu0 0.0
    %513 = vmatprep.subr.mxu0 0.0
    %514 = vmatpush2.msra.mxu0 0.0
    %515 = vmatprep.subr.mxu0 0.0
    %516 = vmatpush2.msra.mxu0 0.0
    %517 = vmatprep.subr.mxu0 0.0
    %518 = vmatpush2.msra.mxu0 0.0
    %519 = vmatprep.mubr.f32.mxu0 0.0
    %520 = vmatmul.mubr.f32.gmra.mxu0 %v453
    %v521 = vpop.f32.mrf.mxu0
    %v522 = vadd.f32 0.0, %v521
    %v523 = vpop.f32.mrf.mxu0
    %524 = vdwg.mxu0
    %v525 = vadd.f32 %v449, %v522
    %v526 = vsub.f32 0.0, %v525
    %v527 = vmul.f32 %v526, 1.442695
    %v528 = vpow.pop %v527
    %v529 = vadd.f32 %v528, 1.0
    %v530 = vrcp.pop %v529
    %v531 = vmul.f32 1.0, %v530
    %v532 = vtanh.pop %v525
    %v533 = vmul.f32 %v531, %v440
    %535 = vrot.lane.b32.xlu0 %v532, 64
    %v536 = vpop.permute.xlu0 %535
    %v538 = vmul.f32 %v531, %v536
    %540 = vrot.lane.b32.xlu0 %v538, 32
    %v541 = vpop.permute.xlu0 %540
    %v543 = vadd.f32 %v533, %v541
    %v544 = vtanh.pop %v543
    %546 = vrot.lane.b32.xlu0 %v544, 64
    %v547 = vpop.permute.xlu0 %546
    %v549 = vmul.f32 %v531, %v547
    %551 = vrot.lane.b32.xlu0 %v549, 32
    %v552 = vpop.permute.xlu0 %551
    %s554 = scalar_lea.vmem [#allocation3], %s447
    %555 = vst.msk [vmem:[%s554] sm:$0xff] %vm79, %v552
    %s556 = sadd.s32 %s447, 8
    %s557 = scalar_lea.vmem [#allocation2], %s556
    %v558 = vld [vmem:[%s557] sm:$0xff]
    %560 = vrot.lane.b32.xlu0 %v441, 32
    %v561 = vpop.permute.xlu0 %560
    %v562 = vsel %vm79, %v561, 0
    %564 = vmatprep.subr.mxu0 0.0
    %565 = vmatpush1.msra.mxu0 0.0
    %566 = vmatprep.subr.mxu0 0.0
    %567 = vmatpush1.msra.mxu0 0.0
    %568 = vmatprep.subr.mxu0 0.0
    %569 = vmatpush1.msra.mxu0 0.0
    %570 = vmatprep.subr.mxu0 0.0
    %571 = vmatpush1.msra.mxu0 0.0
    %572 = vmatprep.subr.mxu0 0.0
    %573 = vmatpush1.msra.mxu0 0.0
    %574 = vmatprep.subr.mxu0 0.0
    %575 = vmatpush1.msra.mxu0 0.0
    %576 = vmatprep.subr.mxu0 0.0
    %577 = vmatpush1.msra.mxu0 0.0
    %578 = vmatprep.subr.mxu0 0.0
    %579 = vmatpush1.msra.mxu0 0.0
    %580 = vmatprep.subr.mxu0 0.0
    %581 = vmatpush1.msra.mxu0 0.0
    %582 = vmatprep.subr.mxu0 0.0
    %583 = vmatpush1.msra.mxu0 0.0
    %584 = vmatprep.subr.mxu0 0.0
    %585 = vmatpush1.msra.mxu0 0.0
    %586 = vmatprep.subr.mxu0 0.0
    %587 = vmatpush1.msra.mxu0 0.0
    %588 = vmatprep.subr.mxu0 0.0
    %589 = vmatpush1.msra.mxu0 %v39
    %590 = vmatprep.subr.mxu0 0.0
    %591 = vmatpush1.msra.mxu0 %v38
    %592 = vmatprep.subr.mxu0 0.0
    %593 = vmatpush1.msra.mxu0 %v37
    %594 = vmatprep.subr.mxu0 0.0
    %595 = vmatpush1.msra.mxu0 %v36
    %596 = vmatprep.subr.mxu0 0.0
    %597 = vmatpush2.msra.mxu0 0.0
    %598 = vmatprep.subr.mxu0 0.0
    %599 = vmatpush2.msra.mxu0 0.0
    %600 = vmatprep.subr.mxu0 0.0
    %601 = vmatpush2.msra.mxu0 0.0
    %602 = vmatprep.subr.mxu0 0.0
    %603 = vmatpush2.msra.mxu0 0.0
    %604 = vmatprep.subr.mxu0 0.0
    %605 = vmatpush2.msra.mxu0 0.0
    %606 = vmatprep.subr.mxu0 0.0
    %607 = vmatpush2.msra.mxu0 0.0
    %608 = vmatprep.subr.mxu0 0.0
    %609 = vmatpush2.msra.mxu0 0.0
    %610 = vmatprep.subr.mxu0 0.0
    %611 = vmatpush2.msra.mxu0 0.0
    %612 = vmatprep.subr.mxu0 0.0
    %613 = vmatpush2.msra.mxu0 0.0
    %614 = vmatprep.subr.mxu0 0.0
    %615 = vmatpush2.msra.mxu0 0.0
    %616 = vmatprep.subr.mxu0 0.0
    %617 = vmatpush2.msra.mxu0 0.0
    %618 = vmatprep.subr.mxu0 0.0
    %619 = vmatpush2.msra.mxu0 0.0
    %620 = vmatprep.subr.mxu0 0.0
    %621 = vmatpush2.msra.mxu0 0.0
    %622 = vmatprep.subr.mxu0 0.0
    %623 = vmatpush2.msra.mxu0 0.0
    %624 = vmatprep.subr.mxu0 0.0
    %625 = vmatpush2.msra.mxu0 0.0
    %626 = vmatprep.subr.mxu0 0.0
    %627 = vmatpush2.msra.mxu0 0.0
    %628 = vmatprep.mubr.f32.mxu0 0.0
    %629 = vmatmul.mubr.f32.gmra.mxu0 %v562
    %v630 = vpop.f32.mrf.mxu0
    %v631 = vadd.f32 0.0, %v630
    %v632 = vpop.f32.mrf.mxu0
    %633 = vdwg.mxu0
    %v634 = vadd.f32 %v558, %v631
    %v635 = vsub.f32 0.0, %v634
    %v636 = vmul.f32 %v635, 1.442695
    %v637 = vpow.pop %v636
    %v638 = vadd.f32 %v637, 1.0
    %v639 = vrcp.pop %v638
    %v640 = vmul.f32 1.0, %v639
    %v641 = vtanh.pop %v634
    %v642 = vmul.f32 %v640, %v442
    %644 = vrot.lane.b32.xlu0 %v641, 64
    %v645 = vpop.permute.xlu0 %644
    %v647 = vmul.f32 %v640, %v645
    %649 = vrot.lane.b32.xlu0 %v647, 32
    %v650 = vpop.permute.xlu0 %649
    %v652 = vadd.f32 %v642, %v650
    %v653 = vtanh.pop %v652
    %655 = vrot.lane.b32.xlu0 %v653, 64
    %v656 = vpop.permute.xlu0 %655
    %v658 = vmul.f32 %v640, %v656
    %660 = vrot.lane.b32.xlu0 %v658, 32
    %v661 = vpop.permute.xlu0 %660
    %s663 = scalar_lea.vmem [#allocation3], %s556
    %664 = vst.msk [vmem:[%s663] sm:$0xff] %vm79, %v661
    %s665 = sadd.s32 %s447, 16
    %s666 = scalar_lea.vmem [#allocation2], %s665
    %v667 = vld [vmem:[%s666] sm:$0xff]
    %669 = vrot.lane.b32.xlu0 %v443, 32
    %v670 = vpop.permute.xlu0 %669
    %v671 = vsel %vm79, %v670, 0
    %673 = vmatprep.subr.mxu0 0.0
    %674 = vmatpush1.msra.mxu0 0.0
    %675 = vmatprep.subr.mxu0 0.0
    %676 = vmatpush1.msra.mxu0 0.0
    %677 = vmatprep.subr.mxu0 0.0
    %678 = vmatpush1.msra.mxu0 0.0
    %679 = vmatprep.subr.mxu0 0.0
    %680 = vmatpush1.msra.mxu0 0.0
    %681 = vmatprep.subr.mxu0 0.0
    %682 = vmatpush1.msra.mxu0 0.0
    %683 = vmatprep.subr.mxu0 0.0
    %684 = vmatpush1.msra.mxu0 0.0
    %685 = vmatprep.subr.mxu0 0.0
    %686 = vmatpush1.msra.mxu0 0.0
    %687 = vmatprep.subr.mxu0 0.0
    %688 = vmatpush1.msra.mxu0 0.0
    %689 = vmatprep.subr.mxu0 0.0
    %690 = vmatpush1.msra.mxu0 0.0
    %691 = vmatprep.subr.mxu0 0.0
    %692 = vmatpush1.msra.mxu0 0.0
    %693 = vmatprep.subr.mxu0 0.0
    %694 = vmatpush1.msra.mxu0 0.0
    %695 = vmatprep.subr.mxu0 0.0
    %696 = vmatpush1.msra.mxu0 0.0
    %697 = vmatprep.subr.mxu0 0.0
    %698 = vmatpush1.msra.mxu0 %v39
    %699 = vmatprep.subr.mxu0 0.0
    %700 = vmatpush1.msra.mxu0 %v38
    %701 = vmatprep.subr.mxu0 0.0
    %702 = vmatpush1.msra.mxu0 %v37
    %703 = vmatprep.subr.mxu0 0.0
    %704 = vmatpush1.msra.mxu0 %v36
    %705 = vmatprep.subr.mxu0 0.0
    %706 = vmatpush2.msra.mxu0 0.0
    %707 = vmatprep.subr.mxu0 0.0
    %708 = vmatpush2.msra.mxu0 0.0
    %709 = vmatprep.subr.mxu0 0.0
    %710 = vmatpush2.msra.mxu0 0.0
    %711 = vmatprep.subr.mxu0 0.0
    %712 = vmatpush2.msra.mxu0 0.0
    %713 = vmatprep.subr.mxu0 0.0
    %714 = vmatpush2.msra.mxu0 0.0
    %715 = vmatprep.subr.mxu0 0.0
    %716 = vmatpush2.msra.mxu0 0.0
    %717 = vmatprep.subr.mxu0 0.0
    %718 = vmatpush2.msra.mxu0 0.0
    %719 = vmatprep.subr.mxu0 0.0
    %720 = vmatpush2.msra.mxu0 0.0
    %721 = vmatprep.subr.mxu0 0.0
    %722 = vmatpush2.msra.mxu0 0.0
    %723 = vmatprep.subr.mxu0 0.0
    %724 = vmatpush2.msra.mxu0 0.0
    %725 = vmatprep.subr.mxu0 0.0
    %726 = vmatpush2.msra.mxu0 0.0
    %727 = vmatprep.subr.mxu0 0.0
    %728 = vmatpush2.msra.mxu0 0.0
    %729 = vmatprep.subr.mxu0 0.0
    %730 = vmatpush2.msra.mxu0 0.0
    %731 = vmatprep.subr.mxu0 0.0
    %732 = vmatpush2.msra.mxu0 0.0
    %733 = vmatprep.subr.mxu0 0.0
    %734 = vmatpush2.msra.mxu0 0.0
    %735 = vmatprep.subr.mxu0 0.0
    %736 = vmatpush2.msra.mxu0 0.0
    %737 = vmatprep.mubr.f32.mxu0 0.0
    %738 = vmatmul.mubr.f32.gmra.mxu0 %v671
    %v739 = vpop.f32.mrf.mxu0
    %v740 = vadd.f32 0.0, %v739
    %v741 = vpop.f32.mrf.mxu0
    %742 = vdwg.mxu0
    %v743 = vadd.f32 %v667, %v740
    %v744 = vsub.f32 0.0, %v743
    %v745 = vmul.f32 %v744, 1.442695
    %v746 = vpow.pop %v745
    %v747 = vadd.f32 %v746, 1.0
    %v748 = vrcp.pop %v747
    %v749 = vmul.f32 1.0, %v748
    %v750 = vtanh.pop %v743
    %v751 = vmul.f32 %v749, %v444
    %753 = vrot.lane.b32.xlu0 %v750, 64
    %v754 = vpop.permute.xlu0 %753
    %v756 = vmul.f32 %v749, %v754
    %758 = vrot.lane.b32.xlu0 %v756, 32
    %v759 = vpop.permute.xlu0 %758
    %v761 = vadd.f32 %v751, %v759
    %v762 = vtanh.pop %v761
    %764 = vrot.lane.b32.xlu0 %v762, 64
    %v765 = vpop.permute.xlu0 %764
    %v767 = vmul.f32 %v749, %v765
    %769 = vrot.lane.b32.xlu0 %v767, 32
    %v770 = vpop.permute.xlu0 %769
    %s772 = scalar_lea.vmem [#allocation3], %s665
    %773 = vst.msk [vmem:[%s772] sm:$0xff] %vm79, %v770
    %s774 = sadd.s32 %s447, 24
    %s775 = scalar_lea.vmem [#allocation2], %s774
    %v776 = vld [vmem:[%s775] sm:$0xff]
    %778 = vrot.lane.b32.xlu0 %v445, 32
    %v779 = vpop.permute.xlu0 %778
    %v780 = vsel %vm79, %v779, 0
    %782 = vmatprep.subr.mxu0 0.0
    %783 = vmatpush1.msra.mxu0 0.0
    %784 = vmatprep.subr.mxu0 0.0
    %785 = vmatpush1.msra.mxu0 0.0
    %786 = vmatprep.subr.mxu0 0.0
    %787 = vmatpush1.msra.mxu0 0.0
    %788 = vmatprep.subr.mxu0 0.0
    %789 = vmatpush1.msra.mxu0 0.0
    %790 = vmatprep.subr.mxu0 0.0
    %791 = vmatpush1.msra.mxu0 0.0
    %792 = vmatprep.subr.mxu0 0.0
    %793 = vmatpush1.msra.mxu0 0.0
    %794 = vmatprep.subr.mxu0 0.0
    %795 = vmatpush1.msra.mxu0 0.0
    %796 = vmatprep.subr.mxu0 0.0
    %797 = vmatpush1.msra.mxu0 0.0
    %798 = vmatprep.subr.mxu0 0.0
    %799 = vmatpush1.msra.mxu0 0.0
    %800 = vmatprep.subr.mxu0 0.0
    %801 = vmatpush1.msra.mxu0 0.0
    %802 = vmatprep.subr.mxu0 0.0
    %803 = vmatpush1.msra.mxu0 0.0
    %804 = vmatprep.subr.mxu0 0.0
    %805 = vmatpush1.msra.mxu0 0.0
    %806 = vmatprep.subr.mxu0 0.0
    %807 = vmatpush1.msra.mxu0 %v39
    %808 = vmatprep.subr.mxu0 0.0
    %809 = vmatpush1.msra.mxu0 %v38
    %810 = vmatprep.subr.mxu0 0.0
    %811 = vmatpush1.msra.mxu0 %v37
    %812 = vmatprep.subr.mxu0 0.0
    %813 = vmatpush1.msra.mxu0 %v36
    %814 = vmatprep.subr.mxu0 0.0
    %815 = vmatpush2.msra.mxu0 0.0
    %816 = vmatprep.subr.mxu0 0.0
    %817 = vmatpush2.msra.mxu0 0.0
    %818 = vmatprep.subr.mxu0 0.0
    %819 = vmatpush2.msra.mxu0 0.0
    %820 = vmatprep.subr.mxu0 0.0
    %821 = vmatpush2.msra.mxu0 0.0
    %822 = vmatprep.subr.mxu0 0.0
    %823 = vmatpush2.msra.mxu0 0.0
    %824 = vmatprep.subr.mxu0 0.0
    %825 = vmatpush2.msra.mxu0 0.0
    %826 = vmatprep.subr.mxu0 0.0
    %827 = vmatpush2.msra.mxu0 0.0
    %828 = vmatprep.subr.mxu0 0.0
    %829 = vmatpush2.msra.mxu0 0.0
    %830 = vmatprep.subr.mxu0 0.0
    %831 = vmatpush2.msra.mxu0 0.0
    %832 = vmatprep.subr.mxu0 0.0
    %833 = vmatpush2.msra.mxu0 0.0
    %834 = vmatprep.subr.mxu0 0.0
    %835 = vmatpush2.msra.mxu0 0.0
    %836 = vmatprep.subr.mxu0 0.0
    %837 = vmatpush2.msra.mxu0 0.0
    %838 = vmatprep.subr.mxu0 0.0
    %839 = vmatpush2.msra.mxu0 0.0
    %840 = vmatprep.subr.mxu0 0.0
    %841 = vmatpush2.msra.mxu0 0.0
    %842 = vmatprep.subr.mxu0 0.0
    %843 = vmatpush2.msra.mxu0 0.0
    %844 = vmatprep.subr.mxu0 0.0
    %845 = vmatpush2.msra.mxu0 0.0
    %846 = vmatprep.mubr.f32.mxu0 0.0
    %847 = vmatmul.mubr.f32.gmra.mxu0 %v780
    %v848 = vpop.f32.mrf.mxu0
    %v849 = vadd.f32 0.0, %v848
    %v850 = vpop.f32.mrf.mxu0
    %851 = vdwg.mxu0
    %v852 = vadd.f32 %v776, %v849
    %v853 = vsub.f32 0.0, %v852
    %v854 = vmul.f32 %v853, 1.442695
    %v855 = vpow.pop %v854
    %v856 = vadd.f32 %v855, 1.0
    %v857 = vrcp.pop %v856
    %v858 = vmul.f32 1.0, %v857
    %v859 = vtanh.pop %v852
    %v860 = vmul.f32 %v858, %v446
    %862 = vrot.lane.b32.xlu0 %v859, 64
    %v863 = vpop.permute.xlu0 %862
    %v865 = vmul.f32 %v858, %v863
    %867 = vrot.lane.b32.xlu0 %v865, 32
    %v868 = vpop.permute.xlu0 %867
    %v870 = vadd.f32 %v860, %v868
    %v871 = vtanh.pop %v870
    %873 = vrot.lane.b32.xlu0 %v871, 64
    %v874 = vpop.permute.xlu0 %873
    %v876 = vmul.f32 %v858, %v874
    %878 = vrot.lane.b32.xlu0 %v876, 32
    %v879 = vpop.permute.xlu0 %878
    %s881 = scalar_lea.vmem [#allocation3], %s774
    %882 = vst.msk [vmem:[%s881] sm:$0xff] %vm79, %v879
    %s883 = smul.u32 %s434, 2
    %s884 = sadd.s32 %s883, 1
    %s885 = smul.u32 %s884, 32
    %s886 = scalar_lea.vmem [#allocation2], %s885
    %v887 = vld [vmem:[%s886] sm:$0xff]
    %v888 = vsel %vm79, %v552, 0
    %890 = vmatprep.subr.mxu0 0.0
    %891 = vmatpush1.msra.mxu0 0.0
    %892 = vmatprep.subr.mxu0 0.0
    %893 = vmatpush1.msra.mxu0 0.0
    %894 = vmatprep.subr.mxu0 0.0
    %895 = vmatpush1.msra.mxu0 0.0
    %896 = vmatprep.subr.mxu0 0.0
    %897 = vmatpush1.msra.mxu0 0.0
    %898 = vmatprep.subr.mxu0 0.0
    %899 = vmatpush1.msra.mxu0 0.0
    %900 = vmatprep.subr.mxu0 0.0
    %901 = vmatpush1.msra.mxu0 0.0
    %902 = vmatprep.subr.mxu0 0.0
    %903 = vmatpush1.msra.mxu0 0.0
    %904 = vmatprep.subr.mxu0 0.0
    %905 = vmatpush1.msra.mxu0 0.0
    %906 = vmatprep.subr.mxu0 0.0
    %907 = vmatpush1.msra.mxu0 0.0
    %908 = vmatprep.subr.mxu0 0.0
    %909 = vmatpush1.msra.mxu0 0.0
    %910 = vmatprep.subr.mxu0 0.0
    %911 = vmatpush1.msra.mxu0 0.0
    %912 = vmatprep.subr.mxu0 0.0
    %913 = vmatpush1.msra.mxu0 0.0
    %914 = vmatprep.subr.mxu0 0.0
    %915 = vmatpush1.msra.mxu0 %v39
    %916 = vmatprep.subr.mxu0 0.0
    %917 = vmatpush1.msra.mxu0 %v38
    %918 = vmatprep.subr.mxu0 0.0
    %919 = vmatpush1.msra.mxu0 %v37
    %920 = vmatprep.subr.mxu0 0.0
    %921 = vmatpush1.msra.mxu0 %v36
    %922 = vmatprep.subr.mxu0 0.0
    %923 = vmatpush2.msra.mxu0 0.0
    %924 = vmatprep.subr.mxu0 0.0
    %925 = vmatpush2.msra.mxu0 0.0
    %926 = vmatprep.subr.mxu0 0.0
    %927 = vmatpush2.msra.mxu0 0.0
    %928 = vmatprep.subr.mxu0 0.0
    %929 = vmatpush2.msra.mxu0 0.0
    %930 = vmatprep.subr.mxu0 0.0
    %931 = vmatpush2.msra.mxu0 0.0
    %932 = vmatprep.subr.mxu0 0.0
    %933 = vmatpush2.msra.mxu0 0.0
    %934 = vmatprep.subr.mxu0 0.0
    %935 = vmatpush2.msra.mxu0 0.0
    %936 = vmatprep.subr.mxu0 0.0
    %937 = vmatpush2.msra.mxu0 0.0
    %938 = vmatprep.subr.mxu0 0.0
    %939 = vmatpush2.msra.mxu0 0.0
    %940 = vmatprep.subr.mxu0 0.0
    %941 = vmatpush2.msra.mxu0 0.0
    %942 = vmatprep.subr.mxu0 0.0
    %943 = vmatpush2.msra.mxu0 0.0
    %944 = vmatprep.subr.mxu0 0.0
    %945 = vmatpush2.msra.mxu0 0.0
    %946 = vmatprep.subr.mxu0 0.0
    %947 = vmatpush2.msra.mxu0 0.0
    %948 = vmatprep.subr.mxu0 0.0
    %949 = vmatpush2.msra.mxu0 0.0
    %950 = vmatprep.subr.mxu0 0.0
    %951 = vmatpush2.msra.mxu0 0.0
    %952 = vmatprep.subr.mxu0 0.0
    %953 = vmatpush2.msra.mxu0 0.0
    %954 = vmatprep.mubr.f32.mxu0 0.0
    %955 = vmatmul.mubr.f32.gmra.mxu0 %v888
    %v956 = vpop.f32.mrf.mxu0
    %v957 = vadd.f32 0.0, %v956
    %v958 = vpop.f32.mrf.mxu0
    %959 = vdwg.mxu0
    %v960 = vadd.f32 %v887, %v957
    %v961 = vsub.f32 0.0, %v960
    %v962 = vmul.f32 %v961, 1.442695
    %v963 = vpow.pop %v962
    %v964 = vadd.f32 %v963, 1.0
    %v965 = vrcp.pop %v964
    %v966 = vmul.f32 1.0, %v965
    %v967 = vtanh.pop %v960
    %v968 = vmul.f32 %v966, %v543
    %970 = vrot.lane.b32.xlu0 %v967, 64
    %v971 = vpop.permute.xlu0 %970
    %v973 = vmul.f32 %v966, %v971
    %975 = vrot.lane.b32.xlu0 %v973, 32
    %v976 = vpop.permute.xlu0 %975
    %v978 = vadd.f32 %v968, %v976
    %v979 = vtanh.pop %v978
    %981 = vrot.lane.b32.xlu0 %v979, 64
    %v982 = vpop.permute.xlu0 %981
    %v984 = vmul.f32 %v966, %v982
    %986 = vrot.lane.b32.xlu0 %v984, 32
    %v987 = vpop.permute.xlu0 %986
    %s989 = scalar_lea.vmem [#allocation3], %s885
    %990 = vst.msk [vmem:[%s989] sm:$0xff] %vm79, %v987
    %s991 = sadd.s32 %s885, 8
    %s992 = scalar_lea.vmem [#allocation2], %s991
    %v993 = vld [vmem:[%s992] sm:$0xff]
    %v994 = vsel %vm79, %v661, 0
    %996 = vmatprep.subr.mxu0 0.0
    %997 = vmatpush1.msra.mxu0 0.0
    %998 = vmatprep.subr.mxu0 0.0
    %999 = vmatpush1.msra.mxu0 0.0
    %1000 = vmatprep.subr.mxu0 0.0
    %1001 = vmatpush1.msra.mxu0 0.0
    %1002 = vmatprep.subr.mxu0 0.0
    %1003 = vmatpush1.msra.mxu0 0.0
    %1004 = vmatprep.subr.mxu0 0.0
    %1005 = vmatpush1.msra.mxu0 0.0
    %1006 = vmatprep.subr.mxu0 0.0
    %1007 = vmatpush1.msra.mxu0 0.0
    %1008 = vmatprep.subr.mxu0 0.0
    %1009 = vmatpush1.msra.mxu0 0.0
    %1010 = vmatprep.subr.mxu0 0.0
    %1011 = vmatpush1.msra.mxu0 0.0
    %1012 = vmatprep.subr.mxu0 0.0
    %1013 = vmatpush1.msra.mxu0 0.0
    %1014 = vmatprep.subr.mxu0 0.0
    %1015 = vmatpush1.msra.mxu0 0.0
    %1016 = vmatprep.subr.mxu0 0.0
    %1017 = vmatpush1.msra.mxu0 0.0
    %1018 = vmatprep.subr.mxu0 0.0
    %1019 = vmatpush1.msra.mxu0 0.0
    %1020 = vmatprep.subr.mxu0 0.0
    %1021 = vmatpush1.msra.mxu0 %v39
    %1022 = vmatprep.subr.mxu0 0.0
    %1023 = vmatpush1.msra.mxu0 %v38
    %1024 = vmatprep.subr.mxu0 0.0
    %1025 = vmatpush1.msra.mxu0 %v37
    %1026 = vmatprep.subr.mxu0 0.0
    %1027 = vmatpush1.msra.mxu0 %v36
    %1028 = vmatprep.subr.mxu0 0.0
    %1029 = vmatpush2.msra.mxu0 0.0
    %1030 = vmatprep.subr.mxu0 0.0
    %1031 = vmatpush2.msra.mxu0 0.0
    %1032 = vmatprep.subr.mxu0 0.0
    %1033 = vmatpush2.msra.mxu0 0.0
    %1034 = vmatprep.subr.mxu0 0.0
    %1035 = vmatpush2.msra.mxu0 0.0
    %1036 = vmatprep.subr.mxu0 0.0
    %1037 = vmatpush2.msra.mxu0 0.0
    %1038 = vmatprep.subr.mxu0 0.0
    %1039 = vmatpush2.msra.mxu0 0.0
    %1040 = vmatprep.subr.mxu0 0.0
    %1041 = vmatpush2.msra.mxu0 0.0
    %1042 = vmatprep.subr.mxu0 0.0
    %1043 = vmatpush2.msra.mxu0 0.0
    %1044 = vmatprep.subr.mxu0 0.0
    %1045 = vmatpush2.msra.mxu0 0.0
    %1046 = vmatprep.subr.mxu0 0.0
    %1047 = vmatpush2.msra.mxu0 0.0
    %1048 = vmatprep.subr.mxu0 0.0
    %1049 = vmatpush2.msra.mxu0 0.0
    %1050 = vmatprep.subr.mxu0 0.0
    %1051 = vmatpush2.msra.mxu0 0.0
    %1052 = vmatprep.subr.mxu0 0.0
    %1053 = vmatpush2.msra.mxu0 0.0
    %1054 = vmatprep.subr.mxu0 0.0
    %1055 = vmatpush2.msra.mxu0 0.0
    %1056 = vmatprep.subr.mxu0 0.0
    %1057 = vmatpush2.msra.mxu0 0.0
    %1058 = vmatprep.subr.mxu0 0.0
    %1059 = vmatpush2.msra.mxu0 0.0
    %1060 = vmatprep.mubr.f32.mxu0 0.0
    %1061 = vmatmul.mubr.f32.gmra.mxu0 %v994
    %v1062 = vpop.f32.mrf.mxu0
    %v1063 = vadd.f32 0.0, %v1062
    %v1064 = vpop.f32.mrf.mxu0
    %1065 = vdwg.mxu0
    %v1066 = vadd.f32 %v993, %v1063
    %v1067 = vsub.f32 0.0, %v1066
    %v1068 = vmul.f32 %v1067, 1.442695
    %v1069 = vpow.pop %v1068
    %v1070 = vadd.f32 %v1069, 1.0
    %v1071 = vrcp.pop %v1070
    %v1072 = vmul.f32 1.0, %v1071
    %v1073 = vtanh.pop %v1066
    %v1074 = vmul.f32 %v1072, %v652
    %1076 = vrot.lane.b32.xlu0 %v1073, 64
    %v1077 = vpop.permute.xlu0 %1076
    %v1079 = vmul.f32 %v1072, %v1077
    %1081 = vrot.lane.b32.xlu0 %v1079, 32
    %v1082 = vpop.permute.xlu0 %1081
    %v1084 = vadd.f32 %v1074, %v1082
    %v1085 = vtanh.pop %v1084
    %1087 = vrot.lane.b32.xlu0 %v1085, 64
    %v1088 = vpop.permute.xlu0 %1087
    %v1090 = vmul.f32 %v1072, %v1088
    %1092 = vrot.lane.b32.xlu0 %v1090, 32
    %v1093 = vpop.permute.xlu0 %1092
    %s1095 = scalar_lea.vmem [#allocation3], %s991
    %1096 = vst.msk [vmem:[%s1095] sm:$0xff] %vm79, %v1093
    %s1097 = sadd.s32 %s885, 16
    %s1098 = scalar_lea.vmem [#allocation2], %s1097
    %v1099 = vld [vmem:[%s1098] sm:$0xff]
    %v1100 = vsel %vm79, %v770, 0
    %1102 = vmatprep.subr.mxu0 0.0
    %1103 = vmatpush1.msra.mxu0 0.0
    %1104 = vmatprep.subr.mxu0 0.0
    %1105 = vmatpush1.msra.mxu0 0.0
    %1106 = vmatprep.subr.mxu0 0.0
    %1107 = vmatpush1.msra.mxu0 0.0
    %1108 = vmatprep.subr.mxu0 0.0
    %1109 = vmatpush1.msra.mxu0 0.0
    %1110 = vmatprep.subr.mxu0 0.0
    %1111 = vmatpush1.msra.mxu0 0.0
    %1112 = vmatprep.subr.mxu0 0.0
    %1113 = vmatpush1.msra.mxu0 0.0
    %1114 = vmatprep.subr.mxu0 0.0
    %1115 = vmatpush1.msra.mxu0 0.0
    %1116 = vmatprep.subr.mxu0 0.0
    %1117 = vmatpush1.msra.mxu0 0.0
    %1118 = vmatprep.subr.mxu0 0.0
    %1119 = vmatpush1.msra.mxu0 0.0
    %1120 = vmatprep.subr.mxu0 0.0
    %1121 = vmatpush1.msra.mxu0 0.0
    %1122 = vmatprep.subr.mxu0 0.0
    %1123 = vmatpush1.msra.mxu0 0.0
    %1124 = vmatprep.subr.mxu0 0.0
    %1125 = vmatpush1.msra.mxu0 0.0
    %1126 = vmatprep.subr.mxu0 0.0
    %1127 = vmatpush1.msra.mxu0 %v39
    %1128 = vmatprep.subr.mxu0 0.0
    %1129 = vmatpush1.msra.mxu0 %v38
    %1130 = vmatprep.subr.mxu0 0.0
    %1131 = vmatpush1.msra.mxu0 %v37
    %1132 = vmatprep.subr.mxu0 0.0
    %1133 = vmatpush1.msra.mxu0 %v36
    %1134 = vmatprep.subr.mxu0 0.0
    %1135 = vmatpush2.msra.mxu0 0.0
    %1136 = vmatprep.subr.mxu0 0.0
    %1137 = vmatpush2.msra.mxu0 0.0
    %1138 = vmatprep.subr.mxu0 0.0
    %1139 = vmatpush2.msra.mxu0 0.0
    %1140 = vmatprep.subr.mxu0 0.0
    %1141 = vmatpush2.msra.mxu0 0.0
    %1142 = vmatprep.subr.mxu0 0.0
    %1143 = vmatpush2.msra.mxu0 0.0
    %1144 = vmatprep.subr.mxu0 0.0
    %1145 = vmatpush2.msra.mxu0 0.0
    %1146 = vmatprep.subr.mxu0 0.0
    %1147 = vmatpush2.msra.mxu0 0.0
    %1148 = vmatprep.subr.mxu0 0.0
    %1149 = vmatpush2.msra.mxu0 0.0
    %1150 = vmatprep.subr.mxu0 0.0
    %1151 = vmatpush2.msra.mxu0 0.0
    %1152 = vmatprep.subr.mxu0 0.0
    %1153 = vmatpush2.msra.mxu0 0.0
    %1154 = vmatprep.subr.mxu0 0.0
    %1155 = vmatpush2.msra.mxu0 0.0
    %1156 = vmatprep.subr.mxu0 0.0
    %1157 = vmatpush2.msra.mxu0 0.0
    %1158 = vmatprep.subr.mxu0 0.0
    %1159 = vmatpush2.msra.mxu0 0.0
    %1160 = vmatprep.subr.mxu0 0.0
    %1161 = vmatpush2.msra.mxu0 0.0
    %1162 = vmatprep.subr.mxu0 0.0
    %1163 = vmatpush2.msra.mxu0 0.0
    %1164 = vmatprep.subr.mxu0 0.0
    %1165 = vmatpush2.msra.mxu0 0.0
    %1166 = vmatprep.mubr.f32.mxu0 0.0
    %1167 = vmatmul.mubr.f32.gmra.mxu0 %v1100
    %v1168 = vpop.f32.mrf.mxu0
    %v1169 = vadd.f32 0.0, %v1168
    %v1170 = vpop.f32.mrf.mxu0
    %1171 = vdwg.mxu0
    %v1172 = vadd.f32 %v1099, %v1169
    %v1173 = vsub.f32 0.0, %v1172
    %v1174 = vmul.f32 %v1173, 1.442695
    %v1175 = vpow.pop %v1174
    %v1176 = vadd.f32 %v1175, 1.0
    %v1177 = vrcp.pop %v1176
    %v1178 = vmul.f32 1.0, %v1177
    %v1179 = vtanh.pop %v1172
    %v1180 = vmul.f32 %v1178, %v761
    %1182 = vrot.lane.b32.xlu0 %v1179, 64
    %v1183 = vpop.permute.xlu0 %1182
    %v1185 = vmul.f32 %v1178, %v1183
    %1187 = vrot.lane.b32.xlu0 %v1185, 32
    %v1188 = vpop.permute.xlu0 %1187
    %v1190 = vadd.f32 %v1180, %v1188
    %v1191 = vtanh.pop %v1190
    %1193 = vrot.lane.b32.xlu0 %v1191, 64
    %v1194 = vpop.permute.xlu0 %1193
    %v1196 = vmul.f32 %v1178, %v1194
    %1198 = vrot.lane.b32.xlu0 %v1196, 32
    %v1199 = vpop.permute.xlu0 %1198
    %s1201 = scalar_lea.vmem [#allocation3], %s1097
    %1202 = vst.msk [vmem:[%s1201] sm:$0xff] %vm79, %v1199
    %s1203 = sadd.s32 %s885, 24
    %s1204 = scalar_lea.vmem [#allocation2], %s1203
    %v1205 = vld [vmem:[%s1204] sm:$0xff]
    %v1206 = vsel %vm79, %v879, 0
    %1208 = vmatprep.subr.mxu0 0.0
    %1209 = vmatpush1.msra.mxu0 0.0
    %1210 = vmatprep.subr.mxu0 0.0
    %1211 = vmatpush1.msra.mxu0 0.0
    %1212 = vmatprep.subr.mxu0 0.0
    %1213 = vmatpush1.msra.mxu0 0.0
    %1214 = vmatprep.subr.mxu0 0.0
    %1215 = vmatpush1.msra.mxu0 0.0
    %1216 = vmatprep.subr.mxu0 0.0
    %1217 = vmatpush1.msra.mxu0 0.0
    %1218 = vmatprep.subr.mxu0 0.0
    %1219 = vmatpush1.msra.mxu0 0.0
    %1220 = vmatprep.subr.mxu0 0.0
    %1221 = vmatpush1.msra.mxu0 0.0
    %1222 = vmatprep.subr.mxu0 0.0
    %1223 = vmatpush1.msra.mxu0 0.0
    %1224 = vmatprep.subr.mxu0 0.0
    %1225 = vmatpush1.msra.mxu0 0.0
    %1226 = vmatprep.subr.mxu0 0.0
    %1227 = vmatpush1.msra.mxu0 0.0
    %1228 = vmatprep.subr.mxu0 0.0
    %1229 = vmatpush1.msra.mxu0 0.0
    %1230 = vmatprep.subr.mxu0 0.0
    %1231 = vmatpush1.msra.mxu0 0.0
    %1232 = vmatprep.subr.mxu0 0.0
    %1233 = vmatpush1.msra.mxu0 %v39
    %1234 = vmatprep.subr.mxu0 0.0
    %1235 = vmatpush1.msra.mxu0 %v38
    %1236 = vmatprep.subr.mxu0 0.0
    %1237 = vmatpush1.msra.mxu0 %v37
    %1238 = vmatprep.subr.mxu0 0.0
    %1239 = vmatpush1.msra.mxu0 %v36
    %1240 = vmatprep.subr.mxu0 0.0
    %1241 = vmatpush2.msra.mxu0 0.0
    %1242 = vmatprep.subr.mxu0 0.0
    %1243 = vmatpush2.msra.mxu0 0.0
    %1244 = vmatprep.subr.mxu0 0.0
    %1245 = vmatpush2.msra.mxu0 0.0
    %1246 = vmatprep.subr.mxu0 0.0
    %1247 = vmatpush2.msra.mxu0 0.0
    %1248 = vmatprep.subr.mxu0 0.0
    %1249 = vmatpush2.msra.mxu0 0.0
    %1250 = vmatprep.subr.mxu0 0.0
    %1251 = vmatpush2.msra.mxu0 0.0
    %1252 = vmatprep.subr.mxu0 0.0
    %1253 = vmatpush2.msra.mxu0 0.0
    %1254 = vmatprep.subr.mxu0 0.0
    %1255 = vmatpush2.msra.mxu0 0.0
    %1256 = vmatprep.subr.mxu0 0.0
    %1257 = vmatpush2.msra.mxu0 0.0
    %1258 = vmatprep.subr.mxu0 0.0
    %1259 = vmatpush2.msra.mxu0 0.0
    %1260 = vmatprep.subr.mxu0 0.0
    %1261 = vmatpush2.msra.mxu0 0.0
    %1262 = vmatprep.subr.mxu0 0.0
    %1263 = vmatpush2.msra.mxu0 0.0
    %1264 = vmatprep.subr.mxu0 0.0
    %1265 = vmatpush2.msra.mxu0 0.0
    %1266 = vmatprep.subr.mxu0 0.0
    %1267 = vmatpush2.msra.mxu0 0.0
    %1268 = vmatprep.subr.mxu0 0.0
    %1269 = vmatpush2.msra.mxu0 0.0
    %1270 = vmatprep.subr.mxu0 0.0
    %1271 = vmatpush2.msra.mxu0 0.0
    %1272 = vmatprep.mubr.f32.mxu0 0.0
    %1273 = vmatmul.mubr.f32.gmra.mxu0 %v1206
    %v1274 = vpop.f32.mrf.mxu0
    %v1275 = vadd.f32 0.0, %v1274
    %v1276 = vpop.f32.mrf.mxu0
    %1277 = vdwg.mxu0
    %v1278 = vadd.f32 %v1205, %v1275
    %v1279 = vsub.f32 0.0, %v1278
    %v1280 = vmul.f32 %v1279, 1.442695
    %v1281 = vpow.pop %v1280
    %v1282 = vadd.f32 %v1281, 1.0
    %v1283 = vrcp.pop %v1282
    %v1284 = vmul.f32 1.0, %v1283
    %v1285 = vtanh.pop %v1278
    %v1286 = vmul.f32 %v1284, %v870
    %1288 = vrot.lane.b32.xlu0 %v1285, 64
    %v1289 = vpop.permute.xlu0 %1288
    %v1291 = vmul.f32 %v1284, %v1289
    %1293 = vrot.lane.b32.xlu0 %v1291, 32
    %v1294 = vpop.permute.xlu0 %1293
    %v1296 = vadd.f32 %v1286, %v1294
    %v1297 = vtanh.pop %v1296
    %1299 = vrot.lane.b32.xlu0 %v1297, 64
    %v1300 = vpop.permute.xlu0 %1299
    %v1302 = vmul.f32 %v1284, %v1300
    %1304 = vrot.lane.b32.xlu0 %v1302, 32
    %v1305 = vpop.permute.xlu0 %1304
    %s1307 = scalar_lea.vmem [#allocation3], %s1203
    %1308 = vst.msk [vmem:[%s1307] sm:$0xff] %vm79, %v1305
  $region42: #{tpu_custom_call.1} parent=0 // loop_footer
    %s438 = sadd.s32 1, %s434
  $region43: #{tpu_custom_call.1} parent=0 // loop_footer_branch
    %433 = sbr.rel target = $region39
  $region44: #{tpu_custom_call.1} parent=0 // loop_exit
    _
  %v1309 = vld [vmem:[%s4] sm:$0xff]
  %v1310 = vld [vmem:[%s4 + $0x8] sm:$0xff]
  %v1311 = vld [vmem:[%s4 + $0x10] sm:$0xff]
  %v1312 = vld [vmem:[%s4 + $0x18] sm:$0xff]
  %v1313 = vld [vmem:[%s5] sm:$0xff]
  %v1314 = vld [vmem:[%s5 + $0x8] sm:$0xff]
  %v1315 = vld [vmem:[%s5 + $0x10] sm:$0xff]
  %v1316 = vld [vmem:[%s5 + $0x18] sm:$0xff]
  %v1317 = vld [vmem:[%s6] sm:$0x1]
  %v1318 = vld [vmem:[#allocation3] sm:$0xff]
  %v1319 = vld [vmem:[#allocation3 + $0x8] sm:$0xff]
  %v1320 = vld [vmem:[#allocation3 + $0x10] sm:$0xff]
  %v1321 = vld [vmem:[#allocation3 + $0x18] sm:$0xff]
  %v1322 = vld [vmem:[#allocation3 + $0x20] sm:$0xff]
  %v1323 = vld [vmem:[#allocation3 + $0x28] sm:$0xff]
  %v1324 = vld [vmem:[#allocation3 + $0x30] sm:$0xff]
  %v1325 = vld [vmem:[#allocation3 + $0x38] sm:$0xff]
  %v1326 = vld [vmem:[#allocation3 + $0x40] sm:$0xff]
  %v1327 = vld [vmem:[#allocation3 + $0x48] sm:$0xff]
  %v1328 = vld [vmem:[#allocation3 + $0x50] sm:$0xff]
  %v1329 = vld [vmem:[#allocation3 + $0x58] sm:$0xff]
  %v1330 = vld [vmem:[#allocation3 + $0x60] sm:$0xff]
  %v1331 = vld [vmem:[#allocation3 + $0x68] sm:$0xff]
  %v1332 = vld [vmem:[#allocation3 + $0x70] sm:$0xff]
  %v1333 = vld [vmem:[#allocation3 + $0x78] sm:$0xff]
  %v1334 = vld [vmem:[#allocation3 + $0x80] sm:$0xff]
  %v1335 = vld [vmem:[#allocation3 + $0x88] sm:$0xff]
  %v1336 = vld [vmem:[#allocation3 + $0x90] sm:$0xff]
  %v1337 = vld [vmem:[#allocation3 + $0x98] sm:$0xff]
  %v1338 = vld [vmem:[#allocation3 + $0xa0] sm:$0xff]
  %v1339 = vld [vmem:[#allocation3 + $0xa8] sm:$0xff]
  %v1340 = vld [vmem:[#allocation3 + $0xb0] sm:$0xff]
  %v1341 = vld [vmem:[#allocation3 + $0xb8] sm:$0xff]
  %v1342 = vld [vmem:[#allocation3 + $0xc0] sm:$0xff]
  %v1343 = vld [vmem:[#allocation3 + $0xc8] sm:$0xff]
  %v1344 = vld [vmem:[#allocation3 + $0xd0] sm:$0xff]
  %v1345 = vld [vmem:[#allocation3 + $0xd8] sm:$0xff]
  %v1346 = vld [vmem:[#allocation3 + $0xe0] sm:$0xff]
  %v1347 = vld [vmem:[#allocation3 + $0xe8] sm:$0xff]
  %v1348 = vld [vmem:[#allocation3 + $0xf0] sm:$0xff]
  %v1349 = vld [vmem:[#allocation3 + $0xf8] sm:$0xff]
  %v1351 = vlaneseq
  %v1352 = vshrl.u32 %v1351, 7
  %v1353 = vsub.s32 0, %v1352
  %v1354 = vrot.slane %v1317, %v1353
  %v1357 = vsel %vm79, %v1318, 0
  %v1360 = vsel %vm79, %v1319, 0
  %v1363 = vsel %vm79, %v1320, 0
  %v1366 = vsel %vm79, %v1321, 0
  %v1369 = vsel %vm79, %v1322, 0
  %v1372 = vsel %vm79, %v1323, 0
  %v1375 = vsel %vm79, %v1324, 0
  %v1378 = vsel %vm79, %v1325, 0
  %v1381 = vsel %vm79, %v1326, 0
  %v1384 = vsel %vm79, %v1327, 0
  %v1387 = vsel %vm79, %v1328, 0
  %v1390 = vsel %vm79, %v1329, 0
  %v1393 = vsel %vm79, %v1330, 0
  %v1396 = vsel %vm79, %v1331, 0
  %v1399 = vsel %vm79, %v1332, 0
  %v1402 = vsel %vm79, %v1333, 0
  %v1405 = vsel %vm79, %v1334, 0
  %v1408 = vsel %vm79, %v1335, 0
  %v1411 = vsel %vm79, %v1336, 0
  %v1414 = vsel %vm79, %v1337, 0
  %v1417 = vsel %vm79, %v1338, 0
  %v1420 = vsel %vm79, %v1339, 0
  %v1423 = vsel %vm79, %v1340, 0
  %v1426 = vsel %vm79, %v1341, 0
  %v1429 = vsel %vm79, %v1342, 0
  %v1432 = vsel %vm79, %v1343, 0
  %v1435 = vsel %vm79, %v1344, 0
  %v1438 = vsel %vm79, %v1345, 0
  %v1441 = vsel %vm79, %v1346, 0
  %v1444 = vsel %vm79, %v1347, 0
  %v1447 = vsel %vm79, %v1348, 0
  %v1450 = vsel %vm79, %v1349, 0
  %1452 = vmatprep.subr.mxu0 0.0
  %1453 = vmatpush1.msra.mxu0 0.0
  %1454 = vmatprep.subr.mxu0 0.0
  %1455 = vmatpush1.msra.mxu0 0.0
  %1456 = vmatprep.subr.mxu0 0.0
  %1457 = vmatpush1.msra.mxu0 0.0
  %1458 = vmatprep.subr.mxu0 0.0
  %1459 = vmatpush1.msra.mxu0 0.0
  %1460 = vmatprep.subr.mxu0 0.0
  %1461 = vmatpush1.msra.mxu0 0.0
  %1462 = vmatprep.subr.mxu0 0.0
  %1463 = vmatpush1.msra.mxu0 0.0
  %1464 = vmatprep.subr.mxu0 0.0
  %1465 = vmatpush1.msra.mxu0 0.0
  %1466 = vmatprep.subr.mxu0 0.0
  %1467 = vmatpush1.msra.mxu0 0.0
  %1468 = vmatprep.subr.mxu0 0.0
  %1469 = vmatpush1.msra.mxu0 0.0
  %1470 = vmatprep.subr.mxu0 0.0
  %1471 = vmatpush1.msra.mxu0 0.0
  %1472 = vmatprep.subr.mxu0 0.0
  %1473 = vmatpush1.msra.mxu0 0.0
  %1474 = vmatprep.subr.mxu0 0.0
  %1475 = vmatpush1.msra.mxu0 0.0
  %1476 = vmatprep.subr.mxu0 0.0
  %1477 = vmatpush1.msra.mxu0 %v1312
  %1478 = vmatprep.subr.mxu0 0.0
  %1479 = vmatpush1.msra.mxu0 %v1311
  %1480 = vmatprep.subr.mxu0 0.0
  %1481 = vmatpush1.msra.mxu0 %v1310
  %1482 = vmatprep.subr.mxu0 0.0
  %1483 = vmatpush1.msra.mxu0 %v1309
  %1484 = vmatprep.subr.mxu0 0.0
  %1485 = vmatpush2.msra.mxu0 0.0
  %1486 = vmatprep.subr.mxu0 0.0
  %1487 = vmatpush2.msra.mxu0 0.0
  %1488 = vmatprep.subr.mxu0 0.0
  %1489 = vmatpush2.msra.mxu0 0.0
  %1490 = vmatprep.subr.mxu0 0.0
  %1491 = vmatpush2.msra.mxu0 0.0
  %1492 = vmatprep.subr.mxu0 0.0
  %1493 = vmatpush2.msra.mxu0 0.0
  %1494 = vmatprep.subr.mxu0 0.0
  %1495 = vmatpush2.msra.mxu0 0.0
  %1496 = vmatprep.subr.mxu0 0.0
  %1497 = vmatpush2.msra.mxu0 0.0
  %1498 = vmatprep.subr.mxu0 0.0
  %1499 = vmatpush2.msra.mxu0 0.0
  %1500 = vmatprep.subr.mxu0 0.0
  %1501 = vmatpush2.msra.mxu0 0.0
  %1502 = vmatprep.subr.mxu0 0.0
  %1503 = vmatpush2.msra.mxu0 0.0
  %1504 = vmatprep.subr.mxu0 0.0
  %1505 = vmatpush2.msra.mxu0 0.0
  %1506 = vmatprep.subr.mxu0 0.0
  %1507 = vmatpush2.msra.mxu0 0.0
  %1508 = vmatprep.subr.mxu0 0.0
  %1509 = vmatpush2.msra.mxu0 0.0
  %1510 = vmatprep.subr.mxu0 0.0
  %1511 = vmatpush2.msra.mxu0 0.0
  %1512 = vmatprep.subr.mxu0 0.0
  %1513 = vmatpush2.msra.mxu0 0.0
  %1514 = vmatprep.subr.mxu0 0.0
  %1515 = vmatpush2.msra.mxu0 0.0
  %1516 = vmatprep.mubr.f32.mxu0 0.0
  %1517 = vmatmul.mubr.f32.gmra.mxu0 %v1357
  %v1518 = vpop.f32.mrf.mxu0
  %v1519 = vadd.f32 %v1354, %v1518
  %v1520 = vpop.f32.mrf.mxu0
  %1521 = vmatprep.mubr.f32.mxu0 0.0
  %1522 = vmatmul.mubr.f32.gmra.mxu0 %v1360
  %v1523 = vpop.f32.mrf.mxu0
  %v1524 = vadd.f32 %v1354, %v1523
  %v1525 = vpop.f32.mrf.mxu0
  %1526 = vmatprep.mubr.f32.mxu0 0.0
  %1527 = vmatmul.mubr.f32.gmra.mxu0 %v1363
  %v1528 = vpop.f32.mrf.mxu0
  %v1529 = vadd.f32 %v1354, %v1528
  %v1530 = vpop.f32.mrf.mxu0
  %1531 = vmatprep.mubr.f32.mxu0 0.0
  %1532 = vmatmul.mubr.f32.gmra.mxu0 %v1366
  %v1533 = vpop.f32.mrf.mxu0
  %v1534 = vadd.f32 %v1354, %v1533
  %v1535 = vpop.f32.mrf.mxu0
  %1536 = vmatprep.mubr.f32.mxu0 0.0
  %1537 = vmatmul.mubr.f32.gmra.mxu0 %v1369
  %v1538 = vpop.f32.mrf.mxu0
  %v1539 = vadd.f32 %v1354, %v1538
  %v1540 = vpop.f32.mrf.mxu0
  %1541 = vmatprep.mubr.f32.mxu0 0.0
  %1542 = vmatmul.mubr.f32.gmra.mxu0 %v1372
  %v1543 = vpop.f32.mrf.mxu0
  %v1544 = vadd.f32 %v1354, %v1543
  %v1545 = vpop.f32.mrf.mxu0
  %1546 = vmatprep.mubr.f32.mxu0 0.0
  %1547 = vmatmul.mubr.f32.gmra.mxu0 %v1375
  %v1548 = vpop.f32.mrf.mxu0
  %v1549 = vadd.f32 %v1354, %v1548
  %v1550 = vpop.f32.mrf.mxu0
  %1551 = vmatprep.mubr.f32.mxu0 0.0
  %1552 = vmatmul.mubr.f32.gmra.mxu0 %v1378
  %v1553 = vpop.f32.mrf.mxu0
  %v1554 = vadd.f32 %v1354, %v1553
  %v1555 = vpop.f32.mrf.mxu0
  %1556 = vmatprep.mubr.f32.mxu0 0.0
  %1557 = vmatmul.mubr.f32.gmra.mxu0 %v1381
  %v1558 = vpop.f32.mrf.mxu0
  %v1559 = vadd.f32 %v1354, %v1558
  %v1560 = vpop.f32.mrf.mxu0
  %1561 = vmatprep.mubr.f32.mxu0 0.0
  %1562 = vmatmul.mubr.f32.gmra.mxu0 %v1384
  %v1563 = vpop.f32.mrf.mxu0
  %v1564 = vadd.f32 %v1354, %v1563
  %v1565 = vpop.f32.mrf.mxu0
  %1566 = vmatprep.mubr.f32.mxu0 0.0
  %1567 = vmatmul.mubr.f32.gmra.mxu0 %v1387
  %v1568 = vpop.f32.mrf.mxu0
  %v1569 = vadd.f32 %v1354, %v1568
  %v1570 = vpop.f32.mrf.mxu0
  %1571 = vmatprep.mubr.f32.mxu0 0.0
  %1572 = vmatmul.mubr.f32.gmra.mxu0 %v1390
  %v1573 = vpop.f32.mrf.mxu0
  %v1574 = vadd.f32 %v1354, %v1573
  %v1575 = vpop.f32.mrf.mxu0
  %1576 = vmatprep.mubr.f32.mxu0 0.0
  %1577 = vmatmul.mubr.f32.gmra.mxu0 %v1393
  %v1578 = vpop.f32.mrf.mxu0
  %v1579 = vadd.f32 %v1354, %v1578
  %v1580 = vpop.f32.mrf.mxu0
  %1581 = vmatprep.mubr.f32.mxu0 0.0
  %1582 = vmatmul.mubr.f32.gmra.mxu0 %v1396
  %v1583 = vpop.f32.mrf.mxu0
  %v1584 = vadd.f32 %v1354, %v1583
  %v1585 = vpop.f32.mrf.mxu0
  %1586 = vmatprep.mubr.f32.mxu0 0.0
  %1587 = vmatmul.mubr.f32.gmra.mxu0 %v1399
  %v1588 = vpop.f32.mrf.mxu0
  %v1589 = vadd.f32 %v1354, %v1588
  %v1590 = vpop.f32.mrf.mxu0
  %1591 = vmatprep.mubr.f32.mxu0 0.0
  %1592 = vmatmul.mubr.f32.gmra.mxu0 %v1402
  %v1593 = vpop.f32.mrf.mxu0
  %v1594 = vadd.f32 %v1354, %v1593
  %v1595 = vpop.f32.mrf.mxu0
  %1596 = vmatprep.mubr.f32.mxu0 0.0
  %1597 = vmatmul.mubr.f32.gmra.mxu0 %v1405
  %v1598 = vpop.f32.mrf.mxu0
  %v1599 = vadd.f32 %v1354, %v1598
  %v1600 = vpop.f32.mrf.mxu0
  %1601 = vmatprep.mubr.f32.mxu0 0.0
  %1602 = vmatmul.mubr.f32.gmra.mxu0 %v1408
  %v1603 = vpop.f32.mrf.mxu0
  %v1604 = vadd.f32 %v1354, %v1603
  %v1605 = vpop.f32.mrf.mxu0
  %1606 = vmatprep.mubr.f32.mxu0 0.0
  %1607 = vmatmul.mubr.f32.gmra.mxu0 %v1411
  %v1608 = vpop.f32.mrf.mxu0
  %v1609 = vadd.f32 %v1354, %v1608
  %v1610 = vpop.f32.mrf.mxu0
  %1611 = vmatprep.mubr.f32.mxu0 0.0
  %1612 = vmatmul.mubr.f32.gmra.mxu0 %v1414
  %v1613 = vpop.f32.mrf.mxu0
  %v1614 = vadd.f32 %v1354, %v1613
  %v1615 = vpop.f32.mrf.mxu0
  %1616 = vmatprep.mubr.f32.mxu0 0.0
  %1617 = vmatmul.mubr.f32.gmra.mxu0 %v1417
  %v1618 = vpop.f32.mrf.mxu0
  %v1619 = vadd.f32 %v1354, %v1618
  %v1620 = vpop.f32.mrf.mxu0
  %1621 = vmatprep.mubr.f32.mxu0 0.0
  %1622 = vmatmul.mubr.f32.gmra.mxu0 %v1420
  %v1623 = vpop.f32.mrf.mxu0
  %v1624 = vadd.f32 %v1354, %v1623
  %v1625 = vpop.f32.mrf.mxu0
  %1626 = vmatprep.mubr.f32.mxu0 0.0
  %1627 = vmatmul.mubr.f32.gmra.mxu0 %v1423
  %v1628 = vpop.f32.mrf.mxu0
  %v1629 = vadd.f32 %v1354, %v1628
  %v1630 = vpop.f32.mrf.mxu0
  %1631 = vmatprep.mubr.f32.mxu0 0.0
  %1632 = vmatmul.mubr.f32.gmra.mxu0 %v1426
  %v1633 = vpop.f32.mrf.mxu0
  %v1634 = vadd.f32 %v1354, %v1633
  %v1635 = vpop.f32.mrf.mxu0
  %1636 = vmatprep.mubr.f32.mxu0 0.0
  %1637 = vmatmul.mubr.f32.gmra.mxu0 %v1429
  %v1638 = vpop.f32.mrf.mxu0
  %v1639 = vadd.f32 %v1354, %v1638
  %v1640 = vpop.f32.mrf.mxu0
  %1641 = vmatprep.mubr.f32.mxu0 0.0
  %1642 = vmatmul.mubr.f32.gmra.mxu0 %v1432
  %v1643 = vpop.f32.mrf.mxu0
  %v1644 = vadd.f32 %v1354, %v1643
  %v1645 = vpop.f32.mrf.mxu0
  %1646 = vmatprep.mubr.f32.mxu0 0.0
  %1647 = vmatmul.mubr.f32.gmra.mxu0 %v1435
  %v1648 = vpop.f32.mrf.mxu0
  %v1649 = vadd.f32 %v1354, %v1648
  %v1650 = vpop.f32.mrf.mxu0
  %1651 = vmatprep.mubr.f32.mxu0 0.0
  %1652 = vmatmul.mubr.f32.gmra.mxu0 %v1438
  %v1653 = vpop.f32.mrf.mxu0
  %v1654 = vadd.f32 %v1354, %v1653
  %v1655 = vpop.f32.mrf.mxu0
  %1656 = vmatprep.mubr.f32.mxu0 0.0
  %1657 = vmatmul.mubr.f32.gmra.mxu0 %v1441
  %v1658 = vpop.f32.mrf.mxu0
  %v1659 = vadd.f32 %v1354, %v1658
  %v1660 = vpop.f32.mrf.mxu0
  %1661 = vmatprep.mubr.f32.mxu0 0.0
  %1662 = vmatmul.mubr.f32.gmra.mxu0 %v1444
  %v1663 = vpop.f32.mrf.mxu0
  %v1664 = vadd.f32 %v1354, %v1663
  %v1665 = vpop.f32.mrf.mxu0
  %1666 = vmatprep.mubr.f32.mxu0 0.0
  %1667 = vmatmul.mubr.f32.gmra.mxu0 %v1447
  %v1668 = vpop.f32.mrf.mxu0
  %v1669 = vadd.f32 %v1354, %v1668
  %v1670 = vpop.f32.mrf.mxu0
  %1671 = vmatprep.mubr.f32.mxu0 0.0
  %1672 = vmatmul.mubr.f32.gmra.mxu0 %v1450
  %v1673 = vpop.f32.mrf.mxu0
  %v1674 = vadd.f32 %v1354, %v1673
  %v1675 = vpop.f32.mrf.mxu0
  %1676 = vdwg.mxu0
  %1677 = vst [vmem:[#allocation2] sm:$0xff] %v1519
  %1678 = vst [vmem:[#allocation2 + $0x8] sm:$0xff] %v1524
  %1679 = vst [vmem:[#allocation2 + $0x10] sm:$0xff] %v1529
  %1680 = vst [vmem:[#allocation2 + $0x18] sm:$0xff] %v1534
  %1681 = vst [vmem:[#allocation2 + $0x20] sm:$0xff] %v1539
  %1682 = vst [vmem:[#allocation2 + $0x28] sm:$0xff] %v1544
  %1683 = vst [vmem:[#allocation2 + $0x30] sm:$0xff] %v1549
  %1684 = vst [vmem:[#allocation2 + $0x38] sm:$0xff] %v1554
  %1685 = vst [vmem:[#allocation2 + $0x40] sm:$0xff] %v1559
  %1686 = vst [vmem:[#allocation2 + $0x48] sm:$0xff] %v1564
  %1687 = vst [vmem:[#allocation2 + $0x50] sm:$0xff] %v1569
  %1688 = vst [vmem:[#allocation2 + $0x58] sm:$0xff] %v1574
  %1689 = vst [vmem:[#allocation2 + $0x60] sm:$0xff] %v1579
  %1690 = vst [vmem:[#allocation2 + $0x68] sm:$0xff] %v1584
  %1691 = vst [vmem:[#allocation2 + $0x70] sm:$0xff] %v1589
  %1692 = vst [vmem:[#allocation2 + $0x78] sm:$0xff] %v1594
  %1693 = vst [vmem:[#allocation2 + $0x80] sm:$0xff] %v1599
  %1694 = vst [vmem:[#allocation2 + $0x88] sm:$0xff] %v1604
  %1695 = vst [vmem:[#allocation2 + $0x90] sm:$0xff] %v1609
  %1696 = vst [vmem:[#allocation2 + $0x98] sm:$0xff] %v1614
  %1697 = vst [vmem:[#allocation2 + $0xa0] sm:$0xff] %v1619
  %1698 = vst [vmem:[#allocation2 + $0xa8] sm:$0xff] %v1624
  %1699 = vst [vmem:[#allocation2 + $0xb0] sm:$0xff] %v1629
  %1700 = vst [vmem:[#allocation2 + $0xb8] sm:$0xff] %v1634
  %1701 = vst [vmem:[#allocation2 + $0xc0] sm:$0xff] %v1639
  %1702 = vst [vmem:[#allocation2 + $0xc8] sm:$0xff] %v1644
  %1703 = vst [vmem:[#allocation2 + $0xd0] sm:$0xff] %v1649
  %1704 = vst [vmem:[#allocation2 + $0xd8] sm:$0xff] %v1654
  %1705 = vst [vmem:[#allocation2 + $0xe0] sm:$0xff] %v1659
  %1706 = vst [vmem:[#allocation2 + $0xe8] sm:$0xff] %v1664
  %1707 = vst [vmem:[#allocation2 + $0xf0] sm:$0xff] %v1669
  %1708 = vst [vmem:[#allocation2 + $0xf8] sm:$0xff] %v1674
  loop: start=0, step=1, limit=4
  $region45: #{tpu_custom_call.1} parent=0 // loop_pre_header
    _
  $region46: #{tpu_custom_call.1} parent=0 // loop_header
    %s1710 = sphi 0, %s1714
    %p1711 = scmp.ge.s32.totalorder %s1710, 4
    %v1715 = vphi 0.0, %v2239
    %v1716 = vphi 0.0, %v2233
    %v1717 = vphi 0.0, %v2342
    %v1718 = vphi 0.0, %v2336
    %v1719 = vphi 0.0, %v2445
    %v1720 = vphi 0.0, %v2439
    %v1721 = vphi 0.0, %v2548
    %v1722 = vphi 0.0, %v2542
  $region47: #{tpu_custom_call.1} parent=0 // loop_header_branch
    %1713 = sbr.rel (%p1711) target = $region51
  $region48: #{tpu_custom_call.1} parent=0 // loop_body
    %s1723 = smul.u32 %s1710, 64
    %s1724 = scalar_lea.vmem [#allocation2], %s1723
    %v1725 = vld [vmem:[%s1724] sm:$0xff]
    %1727 = vrot.lane.b32.xlu0 %v1715, 32
    %v1728 = vpop.permute.xlu0 %1727
    %v1729 = vsel %vm79, %v1728, 0
    %1731 = vmatprep.subr.mxu0 0.0
    %1732 = vmatpush1.msra.mxu0 0.0
    %1733 = vmatprep.subr.mxu0 0.0
    %1734 = vmatpush1.msra.mxu0 0.0
    %1735 = vmatprep.subr.mxu0 0.0
    %1736 = vmatpush1.msra.mxu0 0.0
    %1737 = vmatprep.subr.mxu0 0.0
    %1738 = vmatpush1.msra.mxu0 0.0
    %1739 = vmatprep.subr.mxu0 0.0
    %1740 = vmatpush1.msra.mxu0 0.0
    %1741 = vmatprep.subr.mxu0 0.0
    %1742 = vmatpush1.msra.mxu0 0.0
    %1743 = vmatprep.subr.mxu0 0.0
    %1744 = vmatpush1.msra.mxu0 0.0
    %1745 = vmatprep.subr.mxu0 0.0
    %1746 = vmatpush1.msra.mxu0 0.0
    %1747 = vmatprep.subr.mxu0 0.0
    %1748 = vmatpush1.msra.mxu0 0.0
    %1749 = vmatprep.subr.mxu0 0.0
    %1750 = vmatpush1.msra.mxu0 0.0
    %1751 = vmatprep.subr.mxu0 0.0
    %1752 = vmatpush1.msra.mxu0 0.0
    %1753 = vmatprep.subr.mxu0 0.0
    %1754 = vmatpush1.msra.mxu0 0.0
    %1755 = vmatprep.subr.mxu0 0.0
    %1756 = vmatpush1.msra.mxu0 %v1316
    %1757 = vmatprep.subr.mxu0 0.0
    %1758 = vmatpush1.msra.mxu0 %v1315
    %1759 = vmatprep.subr.mxu0 0.0
    %1760 = vmatpush1.msra.mxu0 %v1314
    %1761 = vmatprep.subr.mxu0 0.0
    %1762 = vmatpush1.msra.mxu0 %v1313
    %1763 = vmatprep.subr.mxu0 0.0
    %1764 = vmatpush2.msra.mxu0 0.0
    %1765 = vmatprep.subr.mxu0 0.0
    %1766 = vmatpush2.msra.mxu0 0.0
    %1767 = vmatprep.subr.mxu0 0.0
    %1768 = vmatpush2.msra.mxu0 0.0
    %1769 = vmatprep.subr.mxu0 0.0
    %1770 = vmatpush2.msra.mxu0 0.0
    %1771 = vmatprep.subr.mxu0 0.0
    %1772 = vmatpush2.msra.mxu0 0.0
    %1773 = vmatprep.subr.mxu0 0.0
    %1774 = vmatpush2.msra.mxu0 0.0
    %1775 = vmatprep.subr.mxu0 0.0
    %1776 = vmatpush2.msra.mxu0 0.0
    %1777 = vmatprep.subr.mxu0 0.0
    %1778 = vmatpush2.msra.mxu0 0.0
    %1779 = vmatprep.subr.mxu0 0.0
    %1780 = vmatpush2.msra.mxu0 0.0
    %1781 = vmatprep.subr.mxu0 0.0
    %1782 = vmatpush2.msra.mxu0 0.0
    %1783 = vmatprep.subr.mxu0 0.0
    %1784 = vmatpush2.msra.mxu0 0.0
    %1785 = vmatprep.subr.mxu0 0.0
    %1786 = vmatpush2.msra.mxu0 0.0
    %1787 = vmatprep.subr.mxu0 0.0
    %1788 = vmatpush2.msra.mxu0 0.0
    %1789 = vmatprep.subr.mxu0 0.0
    %1790 = vmatpush2.msra.mxu0 0.0
    %1791 = vmatprep.subr.mxu0 0.0
    %1792 = vmatpush2.msra.mxu0 0.0
    %1793 = vmatprep.subr.mxu0 0.0
    %1794 = vmatpush2.msra.mxu0 0.0
    %1795 = vmatprep.mubr.f32.mxu0 0.0
    %1796 = vmatmul.mubr.f32.gmra.mxu0 %v1729
    %v1797 = vpop.f32.mrf.mxu0
    %v1798 = vadd.f32 0.0, %v1797
    %v1799 = vpop.f32.mrf.mxu0
    %1800 = vdwg.mxu0
    %v1801 = vadd.f32 %v1725, %v1798
    %v1802 = vsub.f32 0.0, %v1801
    %v1803 = vmul.f32 %v1802, 1.442695
    %v1804 = vpow.pop %v1803
    %v1805 = vadd.f32 %v1804, 1.0
    %v1806 = vrcp.pop %v1805
    %v1807 = vmul.f32 1.0, %v1806
    %v1808 = vtanh.pop %v1801
    %v1809 = vmul.f32 %v1807, %v1716
    %1811 = vrot.lane.b32.xlu0 %v1808, 64
    %v1812 = vpop.permute.xlu0 %1811
    %v1814 = vmul.f32 %v1807, %v1812
    %1816 = vrot.lane.b32.xlu0 %v1814, 32
    %v1817 = vpop.permute.xlu0 %1816
    %v1819 = vadd.f32 %v1809, %v1817
    %v1820 = vtanh.pop %v1819
    %1822 = vrot.lane.b32.xlu0 %v1820, 64
    %v1823 = vpop.permute.xlu0 %1822
    %v1825 = vmul.f32 %v1807, %v1823
    %s1826 = sadd.s32 %s1723, 8
    %s1827 = scalar_lea.vmem [#allocation2], %s1826
    %v1828 = vld [vmem:[%s1827] sm:$0xff]
    %1830 = vrot.lane.b32.xlu0 %v1717, 32
    %v1831 = vpop.permute.xlu0 %1830
    %v1832 = vsel %vm79, %v1831, 0
    %1834 = vmatprep.subr.mxu0 0.0
    %1835 = vmatpush1.msra.mxu0 0.0
    %1836 = vmatprep.subr.mxu0 0.0
    %1837 = vmatpush1.msra.mxu0 0.0
    %1838 = vmatprep.subr.mxu0 0.0
    %1839 = vmatpush1.msra.mxu0 0.0
    %1840 = vmatprep.subr.mxu0 0.0
    %1841 = vmatpush1.msra.mxu0 0.0
    %1842 = vmatprep.subr.mxu0 0.0
    %1843 = vmatpush1.msra.mxu0 0.0
    %1844 = vmatprep.subr.mxu0 0.0
    %1845 = vmatpush1.msra.mxu0 0.0
    %1846 = vmatprep.subr.mxu0 0.0
    %1847 = vmatpush1.msra.mxu0 0.0
    %1848 = vmatprep.subr.mxu0 0.0
    %1849 = vmatpush1.msra.mxu0 0.0
    %1850 = vmatprep.subr.mxu0 0.0
    %1851 = vmatpush1.msra.mxu0 0.0
    %1852 = vmatprep.subr.mxu0 0.0
    %1853 = vmatpush1.msra.mxu0 0.0
    %1854 = vmatprep.subr.mxu0 0.0
    %1855 = vmatpush1.msra.mxu0 0.0
    %1856 = vmatprep.subr.mxu0 0.0
    %1857 = vmatpush1.msra.mxu0 0.0
    %1858 = vmatprep.subr.mxu0 0.0
    %1859 = vmatpush1.msra.mxu0 %v1316
    %1860 = vmatprep.subr.mxu0 0.0
    %1861 = vmatpush1.msra.mxu0 %v1315
    %1862 = vmatprep.subr.mxu0 0.0
    %1863 = vmatpush1.msra.mxu0 %v1314
    %1864 = vmatprep.subr.mxu0 0.0
    %1865 = vmatpush1.msra.mxu0 %v1313
    %1866 = vmatprep.subr.mxu0 0.0
    %1867 = vmatpush2.msra.mxu0 0.0
    %1868 = vmatprep.subr.mxu0 0.0
    %1869 = vmatpush2.msra.mxu0 0.0
    %1870 = vmatprep.subr.mxu0 0.0
    %1871 = vmatpush2.msra.mxu0 0.0
    %1872 = vmatprep.subr.mxu0 0.0
    %1873 = vmatpush2.msra.mxu0 0.0
    %1874 = vmatprep.subr.mxu0 0.0
    %1875 = vmatpush2.msra.mxu0 0.0
    %1876 = vmatprep.subr.mxu0 0.0
    %1877 = vmatpush2.msra.mxu0 0.0
    %1878 = vmatprep.subr.mxu0 0.0
    %1879 = vmatpush2.msra.mxu0 0.0
    %1880 = vmatprep.subr.mxu0 0.0
    %1881 = vmatpush2.msra.mxu0 0.0
    %1882 = vmatprep.subr.mxu0 0.0
    %1883 = vmatpush2.msra.mxu0 0.0
    %1884 = vmatprep.subr.mxu0 0.0
    %1885 = vmatpush2.msra.mxu0 0.0
    %1886 = vmatprep.subr.mxu0 0.0
    %1887 = vmatpush2.msra.mxu0 0.0
    %1888 = vmatprep.subr.mxu0 0.0
    %1889 = vmatpush2.msra.mxu0 0.0
    %1890 = vmatprep.subr.mxu0 0.0
    %1891 = vmatpush2.msra.mxu0 0.0
    %1892 = vmatprep.subr.mxu0 0.0
    %1893 = vmatpush2.msra.mxu0 0.0
    %1894 = vmatprep.subr.mxu0 0.0
    %1895 = vmatpush2.msra.mxu0 0.0
    %1896 = vmatprep.subr.mxu0 0.0
    %1897 = vmatpush2.msra.mxu0 0.0
    %1898 = vmatprep.mubr.f32.mxu0 0.0
    %1899 = vmatmul.mubr.f32.gmra.mxu0 %v1832
    %v1900 = vpop.f32.mrf.mxu0
    %v1901 = vadd.f32 0.0, %v1900
    %v1902 = vpop.f32.mrf.mxu0
    %1903 = vdwg.mxu0
    %v1904 = vadd.f32 %v1828, %v1901
    %v1905 = vsub.f32 0.0, %v1904
    %v1906 = vmul.f32 %v1905, 1.442695
    %v1907 = vpow.pop %v1906
    %v1908 = vadd.f32 %v1907, 1.0
    %v1909 = vrcp.pop %v1908
    %v1910 = vmul.f32 1.0, %v1909
    %v1911 = vtanh.pop %v1904
    %v1912 = vmul.f32 %v1910, %v1718
    %1914 = vrot.lane.b32.xlu0 %v1911, 64
    %v1915 = vpop.permute.xlu0 %1914
    %v1917 = vmul.f32 %v1910, %v1915
    %1919 = vrot.lane.b32.xlu0 %v1917, 32
    %v1920 = vpop.permute.xlu0 %1919
    %v1922 = vadd.f32 %v1912, %v1920
    %v1923 = vtanh.pop %v1922
    %1925 = vrot.lane.b32.xlu0 %v1923, 64
    %v1926 = vpop.permute.xlu0 %1925
    %v1928 = vmul.f32 %v1910, %v1926
    %s1929 = sadd.s32 %s1723, 16
    %s1930 = scalar_lea.vmem [#allocation2], %s1929
    %v1931 = vld [vmem:[%s1930] sm:$0xff]
    %1933 = vrot.lane.b32.xlu0 %v1719, 32
    %v1934 = vpop.permute.xlu0 %1933
    %v1935 = vsel %vm79, %v1934, 0
    %1937 = vmatprep.subr.mxu0 0.0
    %1938 = vmatpush1.msra.mxu0 0.0
    %1939 = vmatprep.subr.mxu0 0.0
    %1940 = vmatpush1.msra.mxu0 0.0
    %1941 = vmatprep.subr.mxu0 0.0
    %1942 = vmatpush1.msra.mxu0 0.0
    %1943 = vmatprep.subr.mxu0 0.0
    %1944 = vmatpush1.msra.mxu0 0.0
    %1945 = vmatprep.subr.mxu0 0.0
    %1946 = vmatpush1.msra.mxu0 0.0
    %1947 = vmatprep.subr.mxu0 0.0
    %1948 = vmatpush1.msra.mxu0 0.0
    %1949 = vmatprep.subr.mxu0 0.0
    %1950 = vmatpush1.msra.mxu0 0.0
    %1951 = vmatprep.subr.mxu0 0.0
    %1952 = vmatpush1.msra.mxu0 0.0
    %1953 = vmatprep.subr.mxu0 0.0
    %1954 = vmatpush1.msra.mxu0 0.0
    %1955 = vmatprep.subr.mxu0 0.0
    %1956 = vmatpush1.msra.mxu0 0.0
    %1957 = vmatprep.subr.mxu0 0.0
    %1958 = vmatpush1.msra.mxu0 0.0
    %1959 = vmatprep.subr.mxu0 0.0
    %1960 = vmatpush1.msra.mxu0 0.0
    %1961 = vmatprep.subr.mxu0 0.0
    %1962 = vmatpush1.msra.mxu0 %v1316
    %1963 = vmatprep.subr.mxu0 0.0
    %1964 = vmatpush1.msra.mxu0 %v1315
    %1965 = vmatprep.subr.mxu0 0.0
    %1966 = vmatpush1.msra.mxu0 %v1314
    %1967 = vmatprep.subr.mxu0 0.0
    %1968 = vmatpush1.msra.mxu0 %v1313
    %1969 = vmatprep.subr.mxu0 0.0
    %1970 = vmatpush2.msra.mxu0 0.0
    %1971 = vmatprep.subr.mxu0 0.0
    %1972 = vmatpush2.msra.mxu0 0.0
    %1973 = vmatprep.subr.mxu0 0.0
    %1974 = vmatpush2.msra.mxu0 0.0
    %1975 = vmatprep.subr.mxu0 0.0
    %1976 = vmatpush2.msra.mxu0 0.0
    %1977 = vmatprep.subr.mxu0 0.0
    %1978 = vmatpush2.msra.mxu0 0.0
    %1979 = vmatprep.subr.mxu0 0.0
    %1980 = vmatpush2.msra.mxu0 0.0
    %1981 = vmatprep.subr.mxu0 0.0
    %1982 = vmatpush2.msra.mxu0 0.0
    %1983 = vmatprep.subr.mxu0 0.0
    %1984 = vmatpush2.msra.mxu0 0.0
    %1985 = vmatprep.subr.mxu0 0.0
    %1986 = vmatpush2.msra.mxu0 0.0
    %1987 = vmatprep.subr.mxu0 0.0
    %1988 = vmatpush2.msra.mxu0 0.0
    %1989 = vmatprep.subr.mxu0 0.0
    %1990 = vmatpush2.msra.mxu0 0.0
    %1991 = vmatprep.subr.mxu0 0.0
    %1992 = vmatpush2.msra.mxu0 0.0
    %1993 = vmatprep.subr.mxu0 0.0
    %1994 = vmatpush2.msra.mxu0 0.0
    %1995 = vmatprep.subr.mxu0 0.0
    %1996 = vmatpush2.msra.mxu0 0.0
    %1997 = vmatprep.subr.mxu0 0.0
    %1998 = vmatpush2.msra.mxu0 0.0
    %1999 = vmatprep.subr.mxu0 0.0
    %2000 = vmatpush2.msra.mxu0 0.0
    %2001 = vmatprep.mubr.f32.mxu0 0.0
    %2002 = vmatmul.mubr.f32.gmra.mxu0 %v1935
    %v2003 = vpop.f32.mrf.mxu0
    %v2004 = vadd.f32 0.0, %v2003
    %v2005 = vpop.f32.mrf.mxu0
    %2006 = vdwg.mxu0
    %v2007 = vadd.f32 %v1931, %v2004
    %v2008 = vsub.f32 0.0, %v2007
    %v2009 = vmul.f32 %v2008, 1.442695
    %v2010 = vpow.pop %v2009
    %v2011 = vadd.f32 %v2010, 1.0
    %v2012 = vrcp.pop %v2011
    %v2013 = vmul.f32 1.0, %v2012
    %v2014 = vtanh.pop %v2007
    %v2015 = vmul.f32 %v2013, %v1720
    %2017 = vrot.lane.b32.xlu0 %v2014, 64
    %v2018 = vpop.permute.xlu0 %2017
    %v2020 = vmul.f32 %v2013, %v2018
    %2022 = vrot.lane.b32.xlu0 %v2020, 32
    %v2023 = vpop.permute.xlu0 %2022
    %v2025 = vadd.f32 %v2015, %v2023
    %v2026 = vtanh.pop %v2025
    %2028 = vrot.lane.b32.xlu0 %v2026, 64
    %v2029 = vpop.permute.xlu0 %2028
    %v2031 = vmul.f32 %v2013, %v2029
    %s2032 = sadd.s32 %s1723, 24
    %s2033 = scalar_lea.vmem [#allocation2], %s2032
    %v2034 = vld [vmem:[%s2033] sm:$0xff]
    %2036 = vrot.lane.b32.xlu0 %v1721, 32
    %v2037 = vpop.permute.xlu0 %2036
    %v2038 = vsel %vm79, %v2037, 0
    %2040 = vmatprep.subr.mxu0 0.0
    %2041 = vmatpush1.msra.mxu0 0.0
    %2042 = vmatprep.subr.mxu0 0.0
    %2043 = vmatpush1.msra.mxu0 0.0
    %2044 = vmatprep.subr.mxu0 0.0
    %2045 = vmatpush1.msra.mxu0 0.0
    %2046 = vmatprep.subr.mxu0 0.0
    %2047 = vmatpush1.msra.mxu0 0.0
    %2048 = vmatprep.subr.mxu0 0.0
    %2049 = vmatpush1.msra.mxu0 0.0
    %2050 = vmatprep.subr.mxu0 0.0
    %2051 = vmatpush1.msra.mxu0 0.0
    %2052 = vmatprep.subr.mxu0 0.0
    %2053 = vmatpush1.msra.mxu0 0.0
    %2054 = vmatprep.subr.mxu0 0.0
    %2055 = vmatpush1.msra.mxu0 0.0
    %2056 = vmatprep.subr.mxu0 0.0
    %2057 = vmatpush1.msra.mxu0 0.0
    %2058 = vmatprep.subr.mxu0 0.0
    %2059 = vmatpush1.msra.mxu0 0.0
    %2060 = vmatprep.subr.mxu0 0.0
    %2061 = vmatpush1.msra.mxu0 0.0
    %2062 = vmatprep.subr.mxu0 0.0
    %2063 = vmatpush1.msra.mxu0 0.0
    %2064 = vmatprep.subr.mxu0 0.0
    %2065 = vmatpush1.msra.mxu0 %v1316
    %2066 = vmatprep.subr.mxu0 0.0
    %2067 = vmatpush1.msra.mxu0 %v1315
    %2068 = vmatprep.subr.mxu0 0.0
    %2069 = vmatpush1.msra.mxu0 %v1314
    %2070 = vmatprep.subr.mxu0 0.0
    %2071 = vmatpush1.msra.mxu0 %v1313
    %2072 = vmatprep.subr.mxu0 0.0
    %2073 = vmatpush2.msra.mxu0 0.0
    %2074 = vmatprep.subr.mxu0 0.0
    %2075 = vmatpush2.msra.mxu0 0.0
    %2076 = vmatprep.subr.mxu0 0.0
    %2077 = vmatpush2.msra.mxu0 0.0
    %2078 = vmatprep.subr.mxu0 0.0
    %2079 = vmatpush2.msra.mxu0 0.0
    %2080 = vmatprep.subr.mxu0 0.0
    %2081 = vmatpush2.msra.mxu0 0.0
    %2082 = vmatprep.subr.mxu0 0.0
    %2083 = vmatpush2.msra.mxu0 0.0
    %2084 = vmatprep.subr.mxu0 0.0
    %2085 = vmatpush2.msra.mxu0 0.0
    %2086 = vmatprep.subr.mxu0 0.0
    %2087 = vmatpush2.msra.mxu0 0.0
    %2088 = vmatprep.subr.mxu0 0.0
    %2089 = vmatpush2.msra.mxu0 0.0
    %2090 = vmatprep.subr.mxu0 0.0
    %2091 = vmatpush2.msra.mxu0 0.0
    %2092 = vmatprep.subr.mxu0 0.0
    %2093 = vmatpush2.msra.mxu0 0.0
    %2094 = vmatprep.subr.mxu0 0.0
    %2095 = vmatpush2.msra.mxu0 0.0
    %2096 = vmatprep.subr.mxu0 0.0
    %2097 = vmatpush2.msra.mxu0 0.0
    %2098 = vmatprep.subr.mxu0 0.0
    %2099 = vmatpush2.msra.mxu0 0.0
    %2100 = vmatprep.subr.mxu0 0.0
    %2101 = vmatpush2.msra.mxu0 0.0
    %2102 = vmatprep.subr.mxu0 0.0
    %2103 = vmatpush2.msra.mxu0 0.0
    %2104 = vmatprep.mubr.f32.mxu0 0.0
    %2105 = vmatmul.mubr.f32.gmra.mxu0 %v2038
    %v2106 = vpop.f32.mrf.mxu0
    %v2107 = vadd.f32 0.0, %v2106
    %v2108 = vpop.f32.mrf.mxu0
    %2109 = vdwg.mxu0
    %v2110 = vadd.f32 %v2034, %v2107
    %v2111 = vsub.f32 0.0, %v2110
    %v2112 = vmul.f32 %v2111, 1.442695
    %v2113 = vpow.pop %v2112
    %v2114 = vadd.f32 %v2113, 1.0
    %v2115 = vrcp.pop %v2114
    %v2116 = vmul.f32 1.0, %v2115
    %v2117 = vtanh.pop %v2110
    %v2118 = vmul.f32 %v2116, %v1722
    %2120 = vrot.lane.b32.xlu0 %v2117, 64
    %v2121 = vpop.permute.xlu0 %2120
    %v2123 = vmul.f32 %v2116, %v2121
    %2125 = vrot.lane.b32.xlu0 %v2123, 32
    %v2126 = vpop.permute.xlu0 %2125
    %v2128 = vadd.f32 %v2118, %v2126
    %v2129 = vtanh.pop %v2128
    %2131 = vrot.lane.b32.xlu0 %v2129, 64
    %v2132 = vpop.permute.xlu0 %2131
    %v2134 = vmul.f32 %v2116, %v2132
    %s2135 = smul.u32 %s1710, 2
    %s2136 = sadd.s32 %s2135, 1
    %s2137 = smul.u32 %s2136, 32
    %s2138 = scalar_lea.vmem [#allocation2], %s2137
    %v2139 = vld [vmem:[%s2138] sm:$0xff]
    %2141 = vrot.lane.b32.xlu0 %v1825, 32
    %v2142 = vpop.permute.xlu0 %2141
    %v2143 = vsel %vm79, %v2142, 0
    %2145 = vmatprep.subr.mxu0 0.0
    %2146 = vmatpush1.msra.mxu0 0.0
    %2147 = vmatprep.subr.mxu0 0.0
    %2148 = vmatpush1.msra.mxu0 0.0
    %2149 = vmatprep.subr.mxu0 0.0
    %2150 = vmatpush1.msra.mxu0 0.0
    %2151 = vmatprep.subr.mxu0 0.0
    %2152 = vmatpush1.msra.mxu0 0.0
    %2153 = vmatprep.subr.mxu0 0.0
    %2154 = vmatpush1.msra.mxu0 0.0
    %2155 = vmatprep.subr.mxu0 0.0
    %2156 = vmatpush1.msra.mxu0 0.0
    %2157 = vmatprep.subr.mxu0 0.0
    %2158 = vmatpush1.msra.mxu0 0.0
    %2159 = vmatprep.subr.mxu0 0.0
    %2160 = vmatpush1.msra.mxu0 0.0
    %2161 = vmatprep.subr.mxu0 0.0
    %2162 = vmatpush1.msra.mxu0 0.0
    %2163 = vmatprep.subr.mxu0 0.0
    %2164 = vmatpush1.msra.mxu0 0.0
    %2165 = vmatprep.subr.mxu0 0.0
    %2166 = vmatpush1.msra.mxu0 0.0
    %2167 = vmatprep.subr.mxu0 0.0
    %2168 = vmatpush1.msra.mxu0 0.0
    %2169 = vmatprep.subr.mxu0 0.0
    %2170 = vmatpush1.msra.mxu0 %v1316
    %2171 = vmatprep.subr.mxu0 0.0
    %2172 = vmatpush1.msra.mxu0 %v1315
    %2173 = vmatprep.subr.mxu0 0.0
    %2174 = vmatpush1.msra.mxu0 %v1314
    %2175 = vmatprep.subr.mxu0 0.0
    %2176 = vmatpush1.msra.mxu0 %v1313
    %2177 = vmatprep.subr.mxu0 0.0
    %2178 = vmatpush2.msra.mxu0 0.0
    %2179 = vmatprep.subr.mxu0 0.0
    %2180 = vmatpush2.msra.mxu0 0.0
    %2181 = vmatprep.subr.mxu0 0.0
    %2182 = vmatpush2.msra.mxu0 0.0
    %2183 = vmatprep.subr.mxu0 0.0
    %2184 = vmatpush2.msra.mxu0 0.0
    %2185 = vmatprep.subr.mxu0 0.0
    %2186 = vmatpush2.msra.mxu0 0.0
    %2187 = vmatprep.subr.mxu0 0.0
    %2188 = vmatpush2.msra.mxu0 0.0
    %2189 = vmatprep.subr.mxu0 0.0
    %2190 = vmatpush2.msra.mxu0 0.0
    %2191 = vmatprep.subr.mxu0 0.0
    %2192 = vmatpush2.msra.mxu0 0.0
    %2193 = vmatprep.subr.mxu0 0.0
    %2194 = vmatpush2.msra.mxu0 0.0
    %2195 = vmatprep.subr.mxu0 0.0
    %2196 = vmatpush2.msra.mxu0 0.0
    %2197 = vmatprep.subr.mxu0 0.0
    %2198 = vmatpush2.msra.mxu0 0.0
    %2199 = vmatprep.subr.mxu0 0.0
    %2200 = vmatpush2.msra.mxu0 0.0
    %2201 = vmatprep.subr.mxu0 0.0
    %2202 = vmatpush2.msra.mxu0 0.0
    %2203 = vmatprep.subr.mxu0 0.0
    %2204 = vmatpush2.msra.mxu0 0.0
    %2205 = vmatprep.subr.mxu0 0.0
    %2206 = vmatpush2.msra.mxu0 0.0
    %2207 = vmatprep.subr.mxu0 0.0
    %2208 = vmatpush2.msra.mxu0 0.0
    %2209 = vmatprep.mubr.f32.mxu0 0.0
    %2210 = vmatmul.mubr.f32.gmra.mxu0 %v2143
    %v2211 = vpop.f32.mrf.mxu0
    %v2212 = vadd.f32 0.0, %v2211
    %v2213 = vpop.f32.mrf.mxu0
    %2214 = vdwg.mxu0
    %v2215 = vadd.f32 %v2139, %v2212
    %v2216 = vsub.f32 0.0, %v2215
    %v2217 = vmul.f32 %v2216, 1.442695
    %v2218 = vpow.pop %v2217
    %v2219 = vadd.f32 %v2218, 1.0
    %v2220 = vrcp.pop %v2219
    %v2221 = vmul.f32 1.0, %v2220
    %v2222 = vtanh.pop %v2215
    %v2223 = vmul.f32 %v2221, %v1819
    %2225 = vrot.lane.b32.xlu0 %v2222, 64
    %v2226 = vpop.permute.xlu0 %2225
    %v2228 = vmul.f32 %v2221, %v2226
    %2230 = vrot.lane.b32.xlu0 %v2228, 32
    %v2231 = vpop.permute.xlu0 %2230
    %v2233 = vadd.f32 %v2223, %v2231
    %v2234 = vtanh.pop %v2233
    %2236 = vrot.lane.b32.xlu0 %v2234, 64
    %v2237 = vpop.permute.xlu0 %2236
    %v2239 = vmul.f32 %v2221, %v2237
    %s2240 = sadd.s32 %s2137, 8
    %s2241 = scalar_lea.vmem [#allocation2], %s2240
    %v2242 = vld [vmem:[%s2241] sm:$0xff]
    %2244 = vrot.lane.b32.xlu0 %v1928, 32
    %v2245 = vpop.permute.xlu0 %2244
    %v2246 = vsel %vm79, %v2245, 0
    %2248 = vmatprep.subr.mxu0 0.0
    %2249 = vmatpush1.msra.mxu0 0.0
    %2250 = vmatprep.subr.mxu0 0.0
    %2251 = vmatpush1.msra.mxu0 0.0
    %2252 = vmatprep.subr.mxu0 0.0
    %2253 = vmatpush1.msra.mxu0 0.0
    %2254 = vmatprep.subr.mxu0 0.0
    %2255 = vmatpush1.msra.mxu0 0.0
    %2256 = vmatprep.subr.mxu0 0.0
    %2257 = vmatpush1.msra.mxu0 0.0
    %2258 = vmatprep.subr.mxu0 0.0
    %2259 = vmatpush1.msra.mxu0 0.0
    %2260 = vmatprep.subr.mxu0 0.0
    %2261 = vmatpush1.msra.mxu0 0.0
    %2262 = vmatprep.subr.mxu0 0.0
    %2263 = vmatpush1.msra.mxu0 0.0
    %2264 = vmatprep.subr.mxu0 0.0
    %2265 = vmatpush1.msra.mxu0 0.0
    %2266 = vmatprep.subr.mxu0 0.0
    %2267 = vmatpush1.msra.mxu0 0.0
    %2268 = vmatprep.subr.mxu0 0.0
    %2269 = vmatpush1.msra.mxu0 0.0
    %2270 = vmatprep.subr.mxu0 0.0
    %2271 = vmatpush1.msra.mxu0 0.0
    %2272 = vmatprep.subr.mxu0 0.0
    %2273 = vmatpush1.msra.mxu0 %v1316
    %2274 = vmatprep.subr.mxu0 0.0
    %2275 = vmatpush1.msra.mxu0 %v1315
    %2276 = vmatprep.subr.mxu0 0.0
    %2277 = vmatpush1.msra.mxu0 %v1314
    %2278 = vmatprep.subr.mxu0 0.0
    %2279 = vmatpush1.msra.mxu0 %v1313
    %2280 = vmatprep.subr.mxu0 0.0
    %2281 = vmatpush2.msra.mxu0 0.0
    %2282 = vmatprep.subr.mxu0 0.0
    %2283 = vmatpush2.msra.mxu0 0.0
    %2284 = vmatprep.subr.mxu0 0.0
    %2285 = vmatpush2.msra.mxu0 0.0
    %2286 = vmatprep.subr.mxu0 0.0
    %2287 = vmatpush2.msra.mxu0 0.0
    %2288 = vmatprep.subr.mxu0 0.0
    %2289 = vmatpush2.msra.mxu0 0.0
    %2290 = vmatprep.subr.mxu0 0.0
    %2291 = vmatpush2.msra.mxu0 0.0
    %2292 = vmatprep.subr.mxu0 0.0
    %2293 = vmatpush2.msra.mxu0 0.0
    %2294 = vmatprep.subr.mxu0 0.0
    %2295 = vmatpush2.msra.mxu0 0.0
    %2296 = vmatprep.subr.mxu0 0.0
    %2297 = vmatpush2.msra.mxu0 0.0
    %2298 = vmatprep.subr.mxu0 0.0
    %2299 = vmatpush2.msra.mxu0 0.0
    %2300 = vmatprep.subr.mxu0 0.0
    %2301 = vmatpush2.msra.mxu0 0.0
    %2302 = vmatprep.subr.mxu0 0.0
    %2303 = vmatpush2.msra.mxu0 0.0
    %2304 = vmatprep.subr.mxu0 0.0
    %2305 = vmatpush2.msra.mxu0 0.0
    %2306 = vmatprep.subr.mxu0 0.0
    %2307 = vmatpush2.msra.mxu0 0.0
    %2308 = vmatprep.subr.mxu0 0.0
    %2309 = vmatpush2.msra.mxu0 0.0
    %2310 = vmatprep.subr.mxu0 0.0
    %2311 = vmatpush2.msra.mxu0 0.0
    %2312 = vmatprep.mubr.f32.mxu0 0.0
    %2313 = vmatmul.mubr.f32.gmra.mxu0 %v2246
    %v2314 = vpop.f32.mrf.mxu0
    %v2315 = vadd.f32 0.0, %v2314
    %v2316 = vpop.f32.mrf.mxu0
    %2317 = vdwg.mxu0
    %v2318 = vadd.f32 %v2242, %v2315
    %v2319 = vsub.f32 0.0, %v2318
    %v2320 = vmul.f32 %v2319, 1.442695
    %v2321 = vpow.pop %v2320
    %v2322 = vadd.f32 %v2321, 1.0
    %v2323 = vrcp.pop %v2322
    %v2324 = vmul.f32 1.0, %v2323
    %v2325 = vtanh.pop %v2318
    %v2326 = vmul.f32 %v2324, %v1922
    %2328 = vrot.lane.b32.xlu0 %v2325, 64
    %v2329 = vpop.permute.xlu0 %2328
    %v2331 = vmul.f32 %v2324, %v2329
    %2333 = vrot.lane.b32.xlu0 %v2331, 32
    %v2334 = vpop.permute.xlu0 %2333
    %v2336 = vadd.f32 %v2326, %v2334
    %v2337 = vtanh.pop %v2336
    %2339 = vrot.lane.b32.xlu0 %v2337, 64
    %v2340 = vpop.permute.xlu0 %2339
    %v2342 = vmul.f32 %v2324, %v2340
    %s2343 = sadd.s32 %s2137, 16
    %s2344 = scalar_lea.vmem [#allocation2], %s2343
    %v2345 = vld [vmem:[%s2344] sm:$0xff]
    %2347 = vrot.lane.b32.xlu0 %v2031, 32
    %v2348 = vpop.permute.xlu0 %2347
    %v2349 = vsel %vm79, %v2348, 0
    %2351 = vmatprep.subr.mxu0 0.0
    %2352 = vmatpush1.msra.mxu0 0.0
    %2353 = vmatprep.subr.mxu0 0.0
    %2354 = vmatpush1.msra.mxu0 0.0
    %2355 = vmatprep.subr.mxu0 0.0
    %2356 = vmatpush1.msra.mxu0 0.0
    %2357 = vmatprep.subr.mxu0 0.0
    %2358 = vmatpush1.msra.mxu0 0.0
    %2359 = vmatprep.subr.mxu0 0.0
    %2360 = vmatpush1.msra.mxu0 0.0
    %2361 = vmatprep.subr.mxu0 0.0
    %2362 = vmatpush1.msra.mxu0 0.0
    %2363 = vmatprep.subr.mxu0 0.0
    %2364 = vmatpush1.msra.mxu0 0.0
    %2365 = vmatprep.subr.mxu0 0.0
    %2366 = vmatpush1.msra.mxu0 0.0
    %2367 = vmatprep.subr.mxu0 0.0
    %2368 = vmatpush1.msra.mxu0 0.0
    %2369 = vmatprep.subr.mxu0 0.0
    %2370 = vmatpush1.msra.mxu0 0.0
    %2371 = vmatprep.subr.mxu0 0.0
    %2372 = vmatpush1.msra.mxu0 0.0
    %2373 = vmatprep.subr.mxu0 0.0
    %2374 = vmatpush1.msra.mxu0 0.0
    %2375 = vmatprep.subr.mxu0 0.0
    %2376 = vmatpush1.msra.mxu0 %v1316
    %2377 = vmatprep.subr.mxu0 0.0
    %2378 = vmatpush1.msra.mxu0 %v1315
    %2379 = vmatprep.subr.mxu0 0.0
    %2380 = vmatpush1.msra.mxu0 %v1314
    %2381 = vmatprep.subr.mxu0 0.0
    %2382 = vmatpush1.msra.mxu0 %v1313
    %2383 = vmatprep.subr.mxu0 0.0
    %2384 = vmatpush2.msra.mxu0 0.0
    %2385 = vmatprep.subr.mxu0 0.0
    %2386 = vmatpush2.msra.mxu0 0.0
    %2387 = vmatprep.subr.mxu0 0.0
    %2388 = vmatpush2.msra.mxu0 0.0
    %2389 = vmatprep.subr.mxu0 0.0
    %2390 = vmatpush2.msra.mxu0 0.0
    %2391 = vmatprep.subr.mxu0 0.0
    %2392 = vmatpush2.msra.mxu0 0.0
    %2393 = vmatprep.subr.mxu0 0.0
    %2394 = vmatpush2.msra.mxu0 0.0
    %2395 = vmatprep.subr.mxu0 0.0
    %2396 = vmatpush2.msra.mxu0 0.0
    %2397 = vmatprep.subr.mxu0 0.0
    %2398 = vmatpush2.msra.mxu0 0.0
    %2399 = vmatprep.subr.mxu0 0.0
    %2400 = vmatpush2.msra.mxu0 0.0
    %2401 = vmatprep.subr.mxu0 0.0
    %2402 = vmatpush2.msra.mxu0 0.0
    %2403 = vmatprep.subr.mxu0 0.0
    %2404 = vmatpush2.msra.mxu0 0.0
    %2405 = vmatprep.subr.mxu0 0.0
    %2406 = vmatpush2.msra.mxu0 0.0
    %2407 = vmatprep.subr.mxu0 0.0
    %2408 = vmatpush2.msra.mxu0 0.0
    %2409 = vmatprep.subr.mxu0 0.0
    %2410 = vmatpush2.msra.mxu0 0.0
    %2411 = vmatprep.subr.mxu0 0.0
    %2412 = vmatpush2.msra.mxu0 0.0
    %2413 = vmatprep.subr.mxu0 0.0
    %2414 = vmatpush2.msra.mxu0 0.0
    %2415 = vmatprep.mubr.f32.mxu0 0.0
    %2416 = vmatmul.mubr.f32.gmra.mxu0 %v2349
    %v2417 = vpop.f32.mrf.mxu0
    %v2418 = vadd.f32 0.0, %v2417
    %v2419 = vpop.f32.mrf.mxu0
    %2420 = vdwg.mxu0
    %v2421 = vadd.f32 %v2345, %v2418
    %v2422 = vsub.f32 0.0, %v2421
    %v2423 = vmul.f32 %v2422, 1.442695
    %v2424 = vpow.pop %v2423
    %v2425 = vadd.f32 %v2424, 1.0
    %v2426 = vrcp.pop %v2425
    %v2427 = vmul.f32 1.0, %v2426
    %v2428 = vtanh.pop %v2421
    %v2429 = vmul.f32 %v2427, %v2025
    %2431 = vrot.lane.b32.xlu0 %v2428, 64
    %v2432 = vpop.permute.xlu0 %2431
    %v2434 = vmul.f32 %v2427, %v2432
    %2436 = vrot.lane.b32.xlu0 %v2434, 32
    %v2437 = vpop.permute.xlu0 %2436
    %v2439 = vadd.f32 %v2429, %v2437
    %v2440 = vtanh.pop %v2439
    %2442 = vrot.lane.b32.xlu0 %v2440, 64
    %v2443 = vpop.permute.xlu0 %2442
    %v2445 = vmul.f32 %v2427, %v2443
    %s2446 = sadd.s32 %s2137, 24
    %s2447 = scalar_lea.vmem [#allocation2], %s2446
    %v2448 = vld [vmem:[%s2447] sm:$0xff]
    %2450 = vrot.lane.b32.xlu0 %v2134, 32
    %v2451 = vpop.permute.xlu0 %2450
    %v2452 = vsel %vm79, %v2451, 0
    %2454 = vmatprep.subr.mxu0 0.0
    %2455 = vmatpush1.msra.mxu0 0.0
    %2456 = vmatprep.subr.mxu0 0.0
    %2457 = vmatpush1.msra.mxu0 0.0
    %2458 = vmatprep.subr.mxu0 0.0
    %2459 = vmatpush1.msra.mxu0 0.0
    %2460 = vmatprep.subr.mxu0 0.0
    %2461 = vmatpush1.msra.mxu0 0.0
    %2462 = vmatprep.subr.mxu0 0.0
    %2463 = vmatpush1.msra.mxu0 0.0
    %2464 = vmatprep.subr.mxu0 0.0
    %2465 = vmatpush1.msra.mxu0 0.0
    %2466 = vmatprep.subr.mxu0 0.0
    %2467 = vmatpush1.msra.mxu0 0.0
    %2468 = vmatprep.subr.mxu0 0.0
    %2469 = vmatpush1.msra.mxu0 0.0
    %2470 = vmatprep.subr.mxu0 0.0
    %2471 = vmatpush1.msra.mxu0 0.0
    %2472 = vmatprep.subr.mxu0 0.0
    %2473 = vmatpush1.msra.mxu0 0.0
    %2474 = vmatprep.subr.mxu0 0.0
    %2475 = vmatpush1.msra.mxu0 0.0
    %2476 = vmatprep.subr.mxu0 0.0
    %2477 = vmatpush1.msra.mxu0 0.0
    %2478 = vmatprep.subr.mxu0 0.0
    %2479 = vmatpush1.msra.mxu0 %v1316
    %2480 = vmatprep.subr.mxu0 0.0
    %2481 = vmatpush1.msra.mxu0 %v1315
    %2482 = vmatprep.subr.mxu0 0.0
    %2483 = vmatpush1.msra.mxu0 %v1314
    %2484 = vmatprep.subr.mxu0 0.0
    %2485 = vmatpush1.msra.mxu0 %v1313
    %2486 = vmatprep.subr.mxu0 0.0
    %2487 = vmatpush2.msra.mxu0 0.0
    %2488 = vmatprep.subr.mxu0 0.0
    %2489 = vmatpush2.msra.mxu0 0.0
    %2490 = vmatprep.subr.mxu0 0.0
    %2491 = vmatpush2.msra.mxu0 0.0
    %2492 = vmatprep.subr.mxu0 0.0
    %2493 = vmatpush2.msra.mxu0 0.0
    %2494 = vmatprep.subr.mxu0 0.0
    %2495 = vmatpush2.msra.mxu0 0.0
    %2496 = vmatprep.subr.mxu0 0.0
    %2497 = vmatpush2.msra.mxu0 0.0
    %2498 = vmatprep.subr.mxu0 0.0
    %2499 = vmatpush2.msra.mxu0 0.0
    %2500 = vmatprep.subr.mxu0 0.0
    %2501 = vmatpush2.msra.mxu0 0.0
    %2502 = vmatprep.subr.mxu0 0.0
    %2503 = vmatpush2.msra.mxu0 0.0
    %2504 = vmatprep.subr.mxu0 0.0
    %2505 = vmatpush2.msra.mxu0 0.0
    %2506 = vmatprep.subr.mxu0 0.0
    %2507 = vmatpush2.msra.mxu0 0.0
    %2508 = vmatprep.subr.mxu0 0.0
    %2509 = vmatpush2.msra.mxu0 0.0
    %2510 = vmatprep.subr.mxu0 0.0
    %2511 = vmatpush2.msra.mxu0 0.0
    %2512 = vmatprep.subr.mxu0 0.0
    %2513 = vmatpush2.msra.mxu0 0.0
    %2514 = vmatprep.subr.mxu0 0.0
    %2515 = vmatpush2.msra.mxu0 0.0
    %2516 = vmatprep.subr.mxu0 0.0
    %2517 = vmatpush2.msra.mxu0 0.0
    %2518 = vmatprep.mubr.f32.mxu0 0.0
    %2519 = vmatmul.mubr.f32.gmra.mxu0 %v2452
    %v2520 = vpop.f32.mrf.mxu0
    %v2521 = vadd.f32 0.0, %v2520
    %v2522 = vpop.f32.mrf.mxu0
    %2523 = vdwg.mxu0
    %v2524 = vadd.f32 %v2448, %v2521
    %v2525 = vsub.f32 0.0, %v2524
    %v2526 = vmul.f32 %v2525, 1.442695
    %v2527 = vpow.pop %v2526
    %v2528 = vadd.f32 %v2527, 1.0
    %v2529 = vrcp.pop %v2528
    %v2530 = vmul.f32 1.0, %v2529
    %v2531 = vtanh.pop %v2524
    %v2532 = vmul.f32 %v2530, %v2128
    %2534 = vrot.lane.b32.xlu0 %v2531, 64
    %v2535 = vpop.permute.xlu0 %2534
    %v2537 = vmul.f32 %v2530, %v2535
    %2539 = vrot.lane.b32.xlu0 %v2537, 32
    %v2540 = vpop.permute.xlu0 %2539
    %v2542 = vadd.f32 %v2532, %v2540
    %v2543 = vtanh.pop %v2542
    %2545 = vrot.lane.b32.xlu0 %v2543, 64
    %v2546 = vpop.permute.xlu0 %2545
    %v2548 = vmul.f32 %v2530, %v2546
  $region49: #{tpu_custom_call.1} parent=0 // loop_footer
    %s1714 = sadd.s32 1, %s1710
  $region50: #{tpu_custom_call.1} parent=0 // loop_footer_branch
    %1709 = sbr.rel target = $region46
  $region51: #{tpu_custom_call.1} parent=0 // loop_exit
    _
  %v2549 = vld [vmem:[%s7] sm:$0xff]
  %v2550 = vld [vmem:[%s7 + $0x8] sm:$0xff]
  %v2551 = vld [vmem:[%s7 + $0x10] sm:$0xff]
  %v2552 = vld [vmem:[%s7 + $0x18] sm:$0xff]
  %v2553 = vld [vmem:[%s8] sm:$0x1]
  %v2555 = vlaneseq
  %v2556 = vshrl.u32 %v2555, 7
  %v2557 = vsub.s32 0, %v2556
  %v2558 = vrot.slane %v2553, %v2557
  %2564 = vrot.lane.b32.xlu0 %v1715, 32
  %v2565 = vpop.permute.xlu0 %2564
  %2566 = vrot.lane.b32.xlu0 %v1717, 32
  %v2567 = vpop.permute.xlu0 %2566
  %2568 = vrot.lane.b32.xlu0 %v1719, 32
  %v2569 = vpop.permute.xlu0 %2568
  %2570 = vrot.lane.b32.xlu0 %v1721, 32
  %v2571 = vpop.permute.xlu0 %2570
  %v2572 = vsel %vm79, %v2565, 0
  %v2574 = vsel %vm79, %v2567, 0
  %v2576 = vsel %vm79, %v2569, 0
  %v2578 = vsel %vm79, %v2571, 0
  %2580 = vmatprep.subr.mxu0 0.0
  %2581 = vmatpush1.msra.mxu0 0.0
  %2582 = vmatprep.subr.mxu0 0.0
  %2583 = vmatpush1.msra.mxu0 0.0
  %2584 = vmatprep.subr.mxu0 0.0
  %2585 = vmatpush1.msra.mxu0 0.0
  %2586 = vmatprep.subr.mxu0 0.0
  %2587 = vmatpush1.msra.mxu0 0.0
  %2588 = vmatprep.subr.mxu0 0.0
  %2589 = vmatpush1.msra.mxu0 0.0
  %2590 = vmatprep.subr.mxu0 0.0
  %2591 = vmatpush1.msra.mxu0 0.0
  %2592 = vmatprep.subr.mxu0 0.0
  %2593 = vmatpush1.msra.mxu0 0.0
  %2594 = vmatprep.subr.mxu0 0.0
  %2595 = vmatpush1.msra.mxu0 0.0
  %2596 = vmatprep.subr.mxu0 0.0
  %2597 = vmatpush1.msra.mxu0 0.0
  %2598 = vmatprep.subr.mxu0 0.0
  %2599 = vmatpush1.msra.mxu0 0.0
  %2600 = vmatprep.subr.mxu0 0.0
  %2601 = vmatpush1.msra.mxu0 0.0
  %2602 = vmatprep.subr.mxu0 0.0
  %2603 = vmatpush1.msra.mxu0 0.0
  %2604 = vmatprep.subr.mxu0 0.0
  %2605 = vmatpush1.msra.mxu0 %v2552
  %2606 = vmatprep.subr.mxu0 0.0
  %2607 = vmatpush1.msra.mxu0 %v2551
  %2608 = vmatprep.subr.mxu0 0.0
  %2609 = vmatpush1.msra.mxu0 %v2550
  %2610 = vmatprep.subr.mxu0 0.0
  %2611 = vmatpush1.msra.mxu0 %v2549
  %2612 = vmatprep.subr.mxu0 0.0
  %2613 = vmatpush2.msra.mxu0 0.0
  %2614 = vmatprep.subr.mxu0 0.0
  %2615 = vmatpush2.msra.mxu0 0.0
  %2616 = vmatprep.subr.mxu0 0.0
  %2617 = vmatpush2.msra.mxu0 0.0
  %2618 = vmatprep.subr.mxu0 0.0
  %2619 = vmatpush2.msra.mxu0 0.0
  %2620 = vmatprep.subr.mxu0 0.0
  %2621 = vmatpush2.msra.mxu0 0.0
  %2622 = vmatprep.subr.mxu0 0.0
  %2623 = vmatpush2.msra.mxu0 0.0
  %2624 = vmatprep.subr.mxu0 0.0
  %2625 = vmatpush2.msra.mxu0 0.0
  %2626 = vmatprep.subr.mxu0 0.0
  %2627 = vmatpush2.msra.mxu0 0.0
  %2628 = vmatprep.subr.mxu0 0.0
  %2629 = vmatpush2.msra.mxu0 0.0
  %2630 = vmatprep.subr.mxu0 0.0
  %2631 = vmatpush2.msra.mxu0 0.0
  %2632 = vmatprep.subr.mxu0 0.0
  %2633 = vmatpush2.msra.mxu0 0.0
  %2634 = vmatprep.subr.mxu0 0.0
  %2635 = vmatpush2.msra.mxu0 0.0
  %2636 = vmatprep.subr.mxu0 0.0
  %2637 = vmatpush2.msra.mxu0 0.0
  %2638 = vmatprep.subr.mxu0 0.0
  %2639 = vmatpush2.msra.mxu0 0.0
  %2640 = vmatprep.subr.mxu0 0.0
  %2641 = vmatpush2.msra.mxu0 0.0
  %2642 = vmatprep.subr.mxu0 0.0
  %2643 = vmatpush2.msra.mxu0 0.0
  %2644 = vmatprep.mubr.f32.mxu0 0.0
  %2645 = vmatmul.mubr.f32.gmra.mxu0 %v2572
  %v2646 = vpop.f32.mrf.mxu0
  %v2647 = vadd.f32 %v2558, %v2646
  %v2648 = vpop.f32.mrf.mxu0
  %2649 = vmatprep.mubr.f32.mxu0 0.0
  %2650 = vmatmul.mubr.f32.gmra.mxu0 %v2574
  %v2651 = vpop.f32.mrf.mxu0
  %v2652 = vadd.f32 %v2558, %v2651
  %v2653 = vpop.f32.mrf.mxu0
  %2654 = vmatprep.mubr.f32.mxu0 0.0
  %2655 = vmatmul.mubr.f32.gmra.mxu0 %v2576
  %v2656 = vpop.f32.mrf.mxu0
  %v2657 = vadd.f32 %v2558, %v2656
  %v2658 = vpop.f32.mrf.mxu0
  %2659 = vmatprep.mubr.f32.mxu0 0.0
  %2660 = vmatmul.mubr.f32.gmra.mxu0 %v2578
  %v2661 = vpop.f32.mrf.mxu0
  %v2662 = vadd.f32 %v2558, %v2661
  %v2663 = vpop.f32.mrf.mxu0
  %2664 = vdwg.mxu0
  %vm2665 = vcmask 130048
  %2666 = vst.msk [vmem:[%s9] sm:$0xff] %vm2665, %v2647
  %2667 = vst.msk [vmem:[%s9 + $0x8] sm:$0xff] %vm2665, %v2652
  %2668 = vst.msk [vmem:[%s9 + $0x10] sm:$0xff] %vm2665, %v2657
  %2669 = vst.msk [vmem:[%s9 + $0x18] sm:$0xff] %vm2665, %v2662
  // Predicated region
  $region52: #{tpu_custom_call.1} parent=0 // pred_check
    _
  $region53: #{tpu_custom_call.1} parent=0 // pred_check_branch
    %2671 = sbr.rel (0) target = $region55
  $region54: #{tpu_custom_call.1} parent=0 // pred_region
    _
  $region55: #{tpu_custom_call.1} parent=0 // pred_fallthru
    _
  // Predicated region
  $region56: #{tpu_custom_call.1} parent=0 // pred_check
    _
  $region57: #{tpu_custom_call.1} parent=0 // pred_check_branch
    %2673 = sbr.rel (0) target = $region59
  $region58: #{tpu_custom_call.1} parent=0 // pred_region
    _
  $region59: #{tpu_custom_call.1} parent=0 // pred_fallthru
    _

</llo_original>
